<compile_context>
chip_gen: v7x
topology: tpu7x:2x2x1
jax: 0.10.0
libtpu: 0.0.40
codegen_flags: <defaults>
</compile_context>

<pallas_src>
import functools
import math

import jax
import jax.numpy as jnp
from jax import lax
from jax.experimental import pallas as pl
from jax.experimental.pallas import tpu as pltpu

_MXU_DTYPE = jnp.bfloat16     # MXU input dtype; accumulation is always f32.


def _round_up(x, m):
    return (x + m - 1) // m * m


# ----------------------------------------------------------------------------
# In-kernel building blocks.  Everything below runs inside ONE pallas_call, so
# all intermediates live in VMEM / vregs -- no HBM round trips between layers.
# Activations are (B_blk*T, C); all data movement (causal shift, decimation,
# upsample) is concat / reshape / broadcast work -- never a selection matmul.
# ----------------------------------------------------------------------------
def _causal_shift(x, shift, t_len, row_mod):
    """out[b*T+t, :] = x[b*T+t-shift, :] if t >= shift else 0 (per element)."""
    if shift == 0:
        return x
    n, c = x.shape
    if shift >= t_len:                 # tap lies entirely in the causal zero-pad
        return jnp.zeros_like(x)
    shifted = jnp.concatenate(
        [jnp.zeros((shift, c), x.dtype), x[: n - shift, :]], axis=0)
    if row_mod is not None:            # >1 stacked batch element: kill rows that
        shifted = jnp.where(row_mod >= shift, shifted,      # leaked across elems
                            jnp.zeros_like(shifted))
    return shifted


def _decimate(x, s):
    """Keep every s-th row: (N, C) -> (N//s, C)."""
    n, c = x.shape
    return x.reshape(n // s, s, c)[:, 0, :]


def _upsample(x, s):
    """Nearest-neighbour x s upsample along rows: (N, C) -> (N*s, C)."""
    n, c = x.shape
    return jnp.broadcast_to(x[:, None, :], (n, s, c)).reshape(n * s, c)


def _conv(x, layer, w_ref, b_ref, *, t_len, act=None, stride=1):
    """Causal dilated Conv1d as ONE fused im2col MXU matmul.

    out[t] = b + sum_k w[k] . x[t*stride - (K-1-k)*dilation]   (x[<0] == 0)
    The K shifted (and, for strided convs, decimated) taps are concatenated
    along lanes and multiplied by the host-reshaped (K*Cin, Cout) weight block.
    """
    k, dil, cout = layer["k"], layer["dilation"], layer["cout"]
    n = x.shape[0]

    row_mod = None
    if k > 1 and n > t_len:            # within-element time index, for the mask
        row_mod = lax.broadcasted_iota(jnp.int32, x.shape, 0) % t_len

    cols = []
    for kk in range(k):
        shift = (k - 1 - kk) * dil
        tap = _causal_shift(x, shift, t_len, row_mod)
        if stride > 1:                 # compute the strided conv at the
            tap = _decimate(tap, stride)   # decimated rate (no wasted rows)
        cols.append(tap)
    im2col = cols[0] if k == 1 else jnp.concatenate(cols, axis=-1)

    w = w_ref[layer["w_off"]: layer["w_off"] + layer["kc"], :cout]   # bf16 slab
    y = jnp.dot(im2col.astype(_MXU_DTYPE), w,
                preferred_element_type=jnp.float32)
    y = y + b_ref[layer["b_row"]: layer["b_row"] + 1, :cout]         # f32 bias
    if act == "relu":
        y = jnp.maximum(y, 0.0)
    return y


def _res_block(x, rb, w_ref, b_ref, *, t_len):
    # ResConv1DBlock: x + conv1x1(relu(causal_conv3_dilated(relu(x))))
    h = _conv(jnp.maximum(x, 0.0), rb["c1"], w_ref, b_ref, t_len=t_len)
    h = _conv(jnp.maximum(h, 0.0), rb["c2"], w_ref, b_ref, t_len=t_len)
    return x + h


def _tae_kernel(x_ref, eps_ref, w_ref, b_ref, o_ref, ml_ref, *,
                plan, stride_t, latent, t_len):
    t = t_len
    # ----------------------------- encoder -----------------------------
    h = _conv(x_ref[...], plan["enc_in"], w_ref, b_ref, t_len=t, act="relu")
    for st in plan["downs"]:
        h = _conv(h, st["down"], w_ref, b_ref, t_len=t, stride=stride_t)
        t //= stride_t
        for rb in st["res"]:
            h = _res_block(h, rb, w_ref, b_ref, t_len=t)
    h = _conv(h, plan["enc_out"], w_ref, b_ref, t_len=t)
    ml = _conv(h, plan["mu_logvar"], w_ref, b_ref, t_len=t)   # fused mu|logvar
    mu = ml[:, :latent]
    logvar = ml[:, latent: 2 * latent]
    z = mu + eps_ref[...] * jnp.exp(0.5 * logvar)             # reparameterize

    # ------------------------ decode_proj + decoder ---------------------
    h = _conv(z, plan["proj"], w_ref, b_ref, t_len=t)         # Linear (K=1 conv)
    h = _conv(h, plan["dec_in"], w_ref, b_ref, t_len=t, act="relu")
    for st in plan["ups"]:
        for rb in st["res"]:
            h = _res_block(h, rb, w_ref, b_ref, t_len=t)
        h = _upsample(h, stride_t)                            # nearest x stride
        t *= stride_t
        h = _conv(h, st["conv"], w_ref, b_ref, t_len=t)
    h = _conv(h, plan["dec_out1"], w_ref, b_ref, t_len=t, act="relu")
    h = _conv(h, plan["dec_out2"], w_ref, b_ref, t_len=t)

    o_ref[...] = h.astype(o_ref.dtype)
    ml_ref[...] = ml.astype(ml_ref.dtype)


# ----------------------------------------------------------------------------
# Parameter init (deterministic, synthetic, f32 master weights)
# ----------------------------------------------------------------------------
def _conv_params(key, k, cin, cout):
    kw, kb = jax.random.split(key)
    w = jax.random.normal(kw, (k, cin, cout), jnp.float32) / jnp.sqrt(k * cin)
    b = 0.01 * jax.random.normal(kb, (1, cout), jnp.float32)
    return {"w": w, "b": b}


def init_causal_tae(key, in_dim=272, hidden_size=32, down_t=2, stride_t=2,
                    width=32, depth=2, dilation_growth_rate=3, latent_dim=16):
    keys = iter(jax.random.split(key, 256))
    filter_t = stride_t * 2

    def res_stack():
        return [{"conv1": _conv_params(next(keys), 3, width, width),
                 "conv2": _conv_params(next(keys), 1, width, width)}
                for _ in range(depth)]

    enc = {"in_conv": _conv_params(next(keys), 3, in_dim, width)}
    enc["downs"] = [{"down_conv": _conv_params(next(keys), filter_t, width, width),
                     "res": res_stack()} for _ in range(down_t)]
    enc["out_conv"] = _conv_params(next(keys), 3, width, hidden_size)
    enc["mu"] = _conv_params(next(keys), 3, hidden_size, latent_dim)
    enc["logvar"] = _conv_params(next(keys), 3, hidden_size, latent_dim)

    kw, kb = jax.random.split(next(keys))
    decode_proj = {
        "w": jax.random.normal(kw, (latent_dim, width), jnp.float32)
             / jnp.sqrt(latent_dim),
        "b": 0.01 * jax.random.normal(kb, (1, width), jnp.float32),
    }

    dec = {"in_conv": _conv_params(next(keys), 3, width, width)}
    dec["ups"] = [{"res": res_stack(),
                   "conv": _conv_params(next(keys), 3, width, width)}
                  for _ in range(down_t)]
    dec["out_conv1"] = _conv_params(next(keys), 3, width, width)
    dec["out_conv2"] = _conv_params(next(keys), 3, width, in_dim)

    params = {"encoder": enc, "decode_proj": decode_proj, "decoder": dec}
    meta = dict(down_t=down_t, stride_t=stride_t, depth=depth,
                dilation_growth_rate=dilation_growth_rate)
    return params, meta


# ----------------------------------------------------------------------------
# Host-side packing: one bf16 weight slab + one f32 bias slab + static plan
# ----------------------------------------------------------------------------
def _pack_params_and_plan(params, meta, t_len, b_sz):
    stride_t = meta["stride_t"]
    dgr = meta["dilation_growth_rate"]
    enc, dec, dp = params["encoder"], params["decoder"], params["decode_proj"]

    entries = []                             # (entry, w_mat_f32, b_vec_f32)
    state = {"w_off": 0, "b_row": 0, "flops": 0}

    def add(w, b, dilation, n_rows):
        if w.ndim == 2:                      # Linear weight -> K=1 conv weight
            w = w[None]
        k, cin, cout = w.shape
        kc = k * cin
        e = dict(w_off=state["w_off"], kc=kc, cout=cout, k=k,
                 dilation=dilation, b_row=state["b_row"])
        entries.append((e, w.reshape(kc, cout), b.reshape(-1)))
        state["w_off"] += _round_up(kc, 8)   # keep slab slices sublane-aligned
        state["b_row"] += 1
        state["flops"] += 2 * n_rows * kc * cout
        return e

    def add_cp(cp, dilation, n_rows):
        return add(cp["w"], cp["b"], dilation, n_rows)

    t = t_len
    plan = {"enc_in": add_cp(enc["in_conv"], 1, b_sz * t), "downs": []}
    for st in enc["downs"]:
        down_e = add_cp(st["down_conv"], 1, b_sz * (t // stride_t))
        t //= stride_t
        res_e = []
        for j, rp in enumerate(st["res"]):
            res_e.append({"c1": add_cp(rp["conv1"], dgr ** j, b_sz * t),
                          "c2": add_cp(rp["conv2"], 1, b_sz * t)})
        plan["downs"].append({"down": down_e, "res": res_e})
    plan["enc_out"] = add_cp(enc["out_conv"], 1, b_sz * t)
    # mu / logvar heads share their input taps -> fuse into one conv.
    w_ml = jnp.concatenate([enc["mu"]["w"], enc["logvar"]["w"]], axis=-1)
    b_ml = jnp.concatenate([enc["mu"]["b"], enc["logvar"]["b"]], axis=-1)
    plan["mu_logvar"] = add(w_ml, b_ml, 1, b_sz * t)
    plan["proj"] = add(dp["w"], dp["b"], 1, b_sz * t)
    plan["dec_in"] = add_cp(dec["in_conv"], 1, b_sz * t)
    plan["ups"] = []
    for st in dec["ups"]:
        res_e = []
        for j, rp in enumerate(st["res"]):
            res_e.append({"c1": add_cp(rp["conv1"], dgr ** j, b_sz * t),
                          "c2": add_cp(rp["conv2"], 1, b_sz * t)})
        t *= stride_t
        plan["ups"].append({"res": res_e, "conv": add_cp(st["conv"], 1, b_sz * t)})
    plan["dec_out1"] = add_cp(dec["out_conv1"], 1, b_sz * t)
    plan["dec_out2"] = add_cp(dec["out_conv2"], 1, b_sz * t)

    max_cout = max(e["cout"] for e, _, _ in entries)
    w_slab = jnp.zeros((state["w_off"], max_cout), jnp.float32)
    b_slab = jnp.zeros((_round_up(state["b_row"], 8), max_cout), jnp.float32)
    for e, wm, bv in entries:
        w_slab = w_slab.at[e["w_off"]: e["w_off"] + e["kc"], : e["cout"]].set(wm)
        b_slab = b_slab.at[e["b_row"], : e["cout"]].set(bv)
    # f32 master weights; bf16 only at the MXU boundary (single cast here).
    return plan, w_slab.astype(_MXU_DTYPE), b_slab, state["flops"]


# ----------------------------------------------------------------------------
# Wrapper: one fused pallas_call for the whole forward pass
# ----------------------------------------------------------------------------
def causal_tae_forward(params, meta, x, eps):
    """x:(B,T,272), eps:(B,T//s**d,L) -> (x_out:(B,T,272), mu, logvar)."""
    b_sz, t_len, c_in = x.shape
    stride_t, down_t = meta["stride_t"], meta["down_t"]
    total_stride = stride_t ** down_t
    if t_len % total_stride != 0:
        raise ValueError(
            f"T={t_len} must be divisible by stride_t**down_t={total_stride}")
    t_down = t_len // total_stride
    latent = params["encoder"]["mu"]["w"].shape[-1]
    assert eps.shape == (b_sz, t_down, latent), eps.shape

    plan, w_slab, b_slab, flops = _pack_params_and_plan(params, meta, t_len, b_sz)

    # Batch stacking: largest batch chunk whose stacked rows keep the MXU fed,
    # keep all blocks (8,128)-legal, and stay well inside VMEM (incl. v7x 64MiB).
    divs = [c for c in range(1, b_sz + 1) if b_sz % c == 0]
    valid = [c for c in divs
             if c == b_sz or ((c * t_len) % 8 == 0 and (c * t_down) % 8 == 0)]
    small = [c for c in valid if c * t_len <= 512]
    b_blk = max(small) if small else min(valid)
    grid = (b_sz // b_blk,)

    x_flat = x.reshape(b_sz * t_len, c_in).astype(jnp.float32)
    eps_flat = eps.reshape(b_sz * t_down, latent).astype(jnp.float32)

    kernel = functools.partial(_tae_kernel, plan=plan, stride_t=stride_t,
                               latent=latent, t_len=t_len)

    in_specs = [
        pl.BlockSpec((b_blk * t_len, c_in), lambda i: (i, 0)),
        pl.BlockSpec((b_blk * t_down, latent), lambda i: (i, 0)),
        # weight / bias slabs: one DMA each, resident across the whole grid
        pl.BlockSpec(w_slab.shape, lambda i: (0, 0)),
        pl.BlockSpec(b_slab.shape, lambda i: (0, 0)),
    ]
    out_shape = (
        jax.ShapeDtypeStruct((b_sz * t_len, c_in), jnp.float32),
        jax.ShapeDtypeStruct((b_sz * t_down, 2 * latent), jnp.float32),
    )
    out_specs = (
        pl.BlockSpec((b_blk * t_len, c_in), lambda i: (i, 0)),
        pl.BlockSpec((b_blk * t_down, 2 * latent), lambda i: (i, 0)),
    )

    bytes_accessed = (x_flat.nbytes + eps_flat.nbytes + w_slab.nbytes
                      + b_slab.nbytes
                      + sum(math.prod(s.shape) * 4 for s in out_shape))
    cost = pl.CostEstimate(flops=int(flops),
                           transcendentals=int(b_sz * t_down * latent),
                           bytes_accessed=int(bytes_accessed))

    x_out_flat, ml_flat = pl.pallas_call(
        kernel,
        out_shape=out_shape,
        grid=grid,
        in_specs=in_specs,
        out_specs=out_specs,
        compiler_params=pltpu.CompilerParams(
            dimension_semantics=("parallel",),
            vmem_limit_bytes=48 * 1024 * 1024),   # <= v7x's 64 MiB physical VMEM
        cost_estimate=cost,
    )(x_flat, eps_flat, w_slab, b_slab)

    x_out = x_out_flat.reshape(b_sz, t_len, c_in)
    ml = ml_flat.reshape(b_sz, t_down, 2 * latent)
    return x_out, ml[..., :latent], ml[..., latent:]


# ----------------------------------------------------------------------------
# Pure-JAX reference (f32) for a correctness sanity check
# ----------------------------------------------------------------------------
def _ref_conv(x, w, b, stride=1, dilation=1, act=None):
    t_len, _ = x.shape
    k_size = w.shape[0]
    pad = dilation * (k_size - 1)
    xp = jnp.pad(x.astype(jnp.float32), ((pad, 0), (0, 0)))
    t_out = (t_len - 1) // stride + 1
    y = jnp.zeros((t_out, w.shape[2]), jnp.float32)
    for k in range(k_size):
        tap = xp[k * dilation: k * dilation + (t_out - 1) * stride + 1: stride]
        y = y + tap @ w[k].astype(jnp.float32)
    y = y + b
    return jnp.maximum(y, 0.0) if act == "relu" else y


def _ref_res_block(x, p, dilation):
    h = _ref_conv(jnp.maximum(x, 0.0), p["conv1"]["w"], p["conv1"]["b"],
                  dilation=dilation)
    h = _ref_conv(jnp.maximum(h, 0.0), p["conv2"]["w"], p["conv2"]["b"])
    return x + h


def _ref_forward_single(params, meta, x, eps):
    enc, dec, dp = params["encoder"], params["decoder"], params["decode_proj"]
    dgr, stride_t = meta["dilation_growth_rate"], meta["stride_t"]
    h = _ref_conv(x, enc["in_conv"]["w"], enc["in_conv"]["b"], act="relu")
    for down in enc["downs"]:
        h = _ref_conv(h, down["down_conv"]["w"], down["down_conv"]["b"],
                      stride=stride_t)
        for j, rp in enumerate(down["res"]):
            h = _ref_res_block(h, rp, dgr ** j)
    h = _ref_conv(h, enc["out_conv"]["w"], enc["out_conv"]["b"])
    mu = _ref_conv(h, enc["mu"]["w"], enc["mu"]["b"])
    logvar = _ref_conv(h, enc["logvar"]["w"], enc["logvar"]["b"])
    z = mu + eps * jnp.exp(0.5 * logvar)
    h = z @ dp["w"].astype(jnp.float32) + dp["b"]
    h = _ref_conv(h, dec["in_conv"]["w"], dec["in_conv"]["b"], act="relu")
    for up in dec["ups"]:
        for j, rp in enumerate(up["res"]):
            h = _ref_res_block(h, rp, dgr ** j)
        h = jnp.repeat(h, stride_t, axis=0)
        h = _ref_conv(h, up["conv"]["w"], up["conv"]["b"])
    h = _ref_conv(h, dec["out_conv1"]["w"], dec["out_conv1"]["b"], act="relu")
    h = _ref_conv(h, dec["out_conv2"]["w"], dec["out_conv2"]["b"])
    return h, mu, logvar


# ----------------------------------------------------------------------------
if __name__ == "__main__":
    key = jax.random.PRNGKey(0)
    k_param, k_x, k_eps = jax.random.split(key, 3)

    B, T, C_IN = 2, 8, 272          # 272 input channels hardcoded by the module
    HIDDEN, WIDTH, DEPTH = 32, 32, 2
    DOWN_T, STRIDE_T, DGR, LATENT = 2, 2, 3, 16

    params, meta = init_causal_tae(
        k_param, in_dim=C_IN, hidden_size=HIDDEN, down_t=DOWN_T,
        stride_t=STRIDE_T, width=WIDTH, depth=DEPTH,
        dilation_growth_rate=DGR, latent_dim=LATENT)

    x = jax.random.normal(k_x, (B, T, C_IN), jnp.float32)
    t_down = T // (STRIDE_T ** DOWN_T)
    eps = jax.random.normal(k_eps, (B, t_down, LATENT), jnp.float32)

    x_out, mu, logvar = causal_tae_forward(params, meta, x, eps)
    (x_out, mu, logvar) = jax.block_until_ready((x_out, mu, logvar))

    assert x_out.shape == (B, T, C_IN), x_out.shape
    assert mu.shape == (B, t_down, LATENT), mu.shape
    assert logvar.shape == (B, t_down, LATENT), logvar.shape
    assert bool(jnp.all(jnp.isfinite(x_out)))
    assert bool(jnp.all(jnp.isfinite(mu))) and bool(jnp.all(jnp.isfinite(logvar)))

    # Compare against the pure-JAX f32 reference (generous tolerance: the
    # kernel feeds the MXU in bf16 with f32 accumulation).
    ref_out, ref_mu, ref_lv = jax.vmap(
        lambda xb, eb: _ref_forward_single(params, meta, xb, eb))(x, eps)
    for got, ref in ((x_out, ref_out), (mu, ref_mu), (logvar, ref_lv)):
        tol = 0.1 + 0.08 * float(jnp.max(jnp.abs(ref)))
        err = float(jnp.max(jnp.abs(got - ref)))
        assert err < tol, f"mismatch vs reference: {err} >= {tol}"

    print("KERNEL_OK")
</pallas_src>

<mosaic_0001>
module attributes {stable_mosaic.version = 11 : i64} {
  func.func @_tae_kernel(%arg0: i32, %arg1: memref<16x272xf32, #tpu.memory_space<vmem>>, %arg2: memref<4x16xf32, #tpu.memory_space<vmem>>, %arg3: memref<2784x272xbf16, #tpu.memory_space<vmem>>, %arg4: memref<32x272xf32, #tpu.memory_space<vmem>>, %arg5: memref<16x272xf32, #tpu.memory_space<vmem>>, %arg6: memref<4x32xf32, #tpu.memory_space<vmem>>) attributes {dimension_semantics = [#tpu.dimension_semantics<parallel>], iteration_bounds = array<i64: 1>, scalar_prefetch = 0 : i64, scratch_operands = 0 : i64, tpu.core_type = #tpu.core_type<tc>, window_params = [{transform_indices = @transform_0, window_bounds = array<i64: 16, 272>}, {transform_indices = @transform_1, window_bounds = array<i64: 4, 16>}, {pipeline_mode = #tpu.pipeline_mode<synchronous>, transform_indices = @transform_2, window_bounds = array<i64: 2784, 272>}, {pipeline_mode = #tpu.pipeline_mode<synchronous>, transform_indices = @transform_3, window_bounds = array<i64: 32, 272>}, {transform_indices = @transform_4, window_bounds = array<i64: 16, 272>}, {transform_indices = @transform_5, window_bounds = array<i64: 4, 32>}]} {
    %c0 = arith.constant 0 : index
    %c0_0 = arith.constant 0 : index
    %0 = vector.load %arg1[%c0, %c0_0] : memref<16x272xf32, #tpu.memory_space<vmem>>, vector<16x272xf32>
    %1 = tpu.iota {dimensions = array<i32: 0>} : vector<16x272xi32>
    %c8_i32 = arith.constant 8 : i32
    %c0_i32 = arith.constant 0 : i32
    %2 = arith.cmpi eq, %c8_i32, %c0_i32 : i32
    %c1_i32 = arith.constant 1 : i32
    %3 = arith.select %2, %c1_i32, %c8_i32 : i32
    %4 = vector.broadcast %3 : i32 to vector<16x272xi32>
    %5 = arith.remsi %1, %4 : vector<16x272xi32>
    %c0_i32_1 = arith.constant 0 : i32
    %6 = vector.broadcast %c0_i32_1 : i32 to vector<16x272xi32>
    %7 = arith.cmpi ne, %5, %6 : vector<16x272xi32>
    %c0_i32_2 = arith.constant 0 : i32
    %8 = vector.broadcast %c0_i32_2 : i32 to vector<16x272xi32>
    %9 = arith.cmpi slt, %5, %8 : vector<16x272xi32>
    %c0_i32_3 = arith.constant 0 : i32
    %10 = arith.cmpi slt, %3, %c0_i32_3 : i32
    %11 = vector.broadcast %10 : i1 to vector<16x272xi1>
    %12 = vector.broadcast %11 : vector<16x272xi1> to vector<16x272xi1>
    %13 = arith.xori %9, %12 : vector<16x272xi1>
    %14 = arith.andi %13, %7 : vector<16x272xi1>
    %15 = vector.broadcast %3 : i32 to vector<16x272xi32>
    %16 = arith.addi %5, %15 : vector<16x272xi32>
    %17 = arith.select %14, %16, %5 : vector<16x272xi1>, vector<16x272xi32>
    %cst = arith.constant 0.000000e+00 : f32
    %18 = vector.broadcast %cst : f32 to vector<2x272xf32>
    %19 = vector.extract_strided_slice %0 {offsets = [0, 0], sizes = [14, 272], strides = [1, 1]} : vector<16x272xf32> to vector<14x272xf32>
    %20 = tpu.concatenate %18, %19 in 0 : vector<2x272xf32>, vector<14x272xf32> -> vector<16x272xf32>
    %c2_i32 = arith.constant 2 : i32
    %21 = vector.broadcast %c2_i32 : i32 to vector<16x272xi32>
    %22 = arith.cmpi sge, %17, %21 : vector<16x272xi32>
    %cst_4 = arith.constant 0.000000e+00 : f32
    %23 = vector.broadcast %cst_4 : f32 to vector<16x272xf32>
    %24 = arith.select %22, %20, %23 : vector<16x272xi1>, vector<16x272xf32>
    %cst_5 = arith.constant 0.000000e+00 : f32
    %25 = vector.broadcast %cst_5 : f32 to vector<1x272xf32>
    %26 = vector.extract_strided_slice %0 {offsets = [0, 0], sizes = [15, 272], strides = [1, 1]} : vector<16x272xf32> to vector<15x272xf32>
    %27 = tpu.concatenate %25, %26 in 0 : vector<1x272xf32>, vector<15x272xf32> -> vector<16x272xf32>
    %c1_i32_6 = arith.constant 1 : i32
    %28 = vector.broadcast %c1_i32_6 : i32 to vector<16x272xi32>
    %29 = arith.cmpi sge, %17, %28 : vector<16x272xi32>
    %cst_7 = arith.constant 0.000000e+00 : f32
    %30 = vector.broadcast %cst_7 : f32 to vector<16x272xf32>
    %31 = arith.select %29, %27, %30 : vector<16x272xi1>, vector<16x272xf32>
    %32 = tpu.concatenate %24, %31, %0 in 1 : vector<16x272xf32>, vector<16x272xf32>, vector<16x272xf32> -> vector<16x816xf32>
    %c0_8 = arith.constant 0 : index
    %c0_9 = arith.constant 0 : index
    %33 = vector.load %arg3[%c0_8, %c0_9] : memref<2784x272xbf16, #tpu.memory_space<vmem>>, vector<816x32xbf16>
    %34 = arith.truncf %32 : vector<16x816xf32> to vector<16x816xbf16>
    %cst_10 = arith.constant dense<0.000000e+00> : vector<16x32xf32>
    %35 = tpu.matmul %34, %33, %cst_10 {dimension_numbers = #tpu.dot_dimension_numbers<[1], [0], [0], [1], [0, 0, 1, 1], [], []>} : vector<16x816xbf16>, vector<816x32xbf16>, vector<16x32xf32> -> vector<16x32xf32>
    %c0_11 = arith.constant 0 : index
    %c0_12 = arith.constant 0 : index
    %36 = vector.load %arg4[%c0_11, %c0_12] : memref<32x272xf32, #tpu.memory_space<vmem>>, vector<1x32xf32>
    %37 = vector.broadcast %36 : vector<1x32xf32> to vector<16x32xf32>
    %38 = arith.addf %35, %37 : vector<16x32xf32>
    %cst_13 = arith.constant 0.000000e+00 : f32
    %39 = vector.broadcast %cst_13 : f32 to vector<16x32xf32>
    %40 = arith.maximumf %38, %39 : vector<16x32xf32>
    %41 = tpu.iota {dimensions = array<i32: 0>} : vector<16x32xi32>
    %c8_i32_14 = arith.constant 8 : i32
    %c0_i32_15 = arith.constant 0 : i32
    %42 = arith.cmpi eq, %c8_i32_14, %c0_i32_15 : i32
    %c1_i32_16 = arith.constant 1 : i32
    %43 = arith.select %42, %c1_i32_16, %c8_i32_14 : i32
    %44 = vector.broadcast %43 : i32 to vector<16x32xi32>
    %45 = arith.remsi %41, %44 : vector<16x32xi32>
    %c0_i32_17 = arith.constant 0 : i32
    %46 = vector.broadcast %c0_i32_17 : i32 to vector<16x32xi32>
    %47 = arith.cmpi ne, %45, %46 : vector<16x32xi32>
    %c0_i32_18 = arith.constant 0 : i32
    %48 = vector.broadcast %c0_i32_18 : i32 to vector<16x32xi32>
    %49 = arith.cmpi slt, %45, %48 : vector<16x32xi32>
    %c0_i32_19 = arith.constant 0 : i32
    %50 = arith.cmpi slt, %43, %c0_i32_19 : i32
    %51 = vector.broadcast %50 : i1 to vector<16x32xi1>
    %52 = vector.broadcast %51 : vector<16x32xi1> to vector<16x32xi1>
    %53 = arith.xori %49, %52 : vector<16x32xi1>
    %54 = arith.andi %53, %47 : vector<16x32xi1>
    %55 = vector.broadcast %43 : i32 to vector<16x32xi32>
    %56 = arith.addi %45, %55 : vector<16x32xi32>
    %57 = arith.select %54, %56, %45 : vector<16x32xi1>, vector<16x32xi32>
    %cst_20 = arith.constant 0.000000e+00 : f32
    %58 = vector.broadcast %cst_20 : f32 to vector<3x32xf32>
    %59 = vector.extract_strided_slice %40 {offsets = [0, 0], sizes = [13, 32], strides = [1, 1]} : vector<16x32xf32> to vector<13x32xf32>
    %60 = tpu.concatenate %58, %59 in 0 : vector<3x32xf32>, vector<13x32xf32> -> vector<16x32xf32>
    %c3_i32 = arith.constant 3 : i32
    %61 = vector.broadcast %c3_i32 : i32 to vector<16x32xi32>
    %62 = arith.cmpi sge, %57, %61 : vector<16x32xi32>
    %cst_21 = arith.constant 0.000000e+00 : f32
    %63 = vector.broadcast %cst_21 : f32 to vector<16x32xf32>
    %64 = arith.select %62, %60, %63 : vector<16x32xi1>, vector<16x32xf32>
    %65 = vector.shape_cast %64 : vector<16x32xf32> to vector<8x2x32xf32>
    %66 = vector.extract_strided_slice %65 {offsets = [0, 0, 0], sizes = [8, 1, 32], strides = [1, 1, 1]} : vector<8x2x32xf32> to vector<8x1x32xf32>
    %67 = vector.shape_cast %66 : vector<8x1x32xf32> to vector<8x32xf32>
    %cst_22 = arith.constant 0.000000e+00 : f32
    %68 = vector.broadcast %cst_22 : f32 to vector<2x32xf32>
    %69 = vector.extract_strided_slice %40 {offsets = [0, 0], sizes = [14, 32], strides = [1, 1]} : vector<16x32xf32> to vector<14x32xf32>
    %70 = tpu.concatenate %68, %69 in 0 : vector<2x32xf32>, vector<14x32xf32> -> vector<16x32xf32>
    %c2_i32_23 = arith.constant 2 : i32
    %71 = vector.broadcast %c2_i32_23 : i32 to vector<16x32xi32>
    %72 = arith.cmpi sge, %57, %71 : vector<16x32xi32>
    %cst_24 = arith.constant 0.000000e+00 : f32
    %73 = vector.broadcast %cst_24 : f32 to vector<16x32xf32>
    %74 = arith.select %72, %70, %73 : vector<16x32xi1>, vector<16x32xf32>
    %75 = vector.shape_cast %74 : vector<16x32xf32> to vector<8x2x32xf32>
    %76 = vector.extract_strided_slice %75 {offsets = [0, 0, 0], sizes = [8, 1, 32], strides = [1, 1, 1]} : vector<8x2x32xf32> to vector<8x1x32xf32>
    %77 = vector.shape_cast %76 : vector<8x1x32xf32> to vector<8x32xf32>
    %cst_25 = arith.constant 0.000000e+00 : f32
    %78 = vector.broadcast %cst_25 : f32 to vector<1x32xf32>
    %79 = vector.extract_strided_slice %40 {offsets = [0, 0], sizes = [15, 32], strides = [1, 1]} : vector<16x32xf32> to vector<15x32xf32>
    %80 = tpu.concatenate %78, %79 in 0 : vector<1x32xf32>, vector<15x32xf32> -> vector<16x32xf32>
    %c1_i32_26 = arith.constant 1 : i32
    %81 = vector.broadcast %c1_i32_26 : i32 to vector<16x32xi32>
    %82 = arith.cmpi sge, %57, %81 : vector<16x32xi32>
    %cst_27 = arith.constant 0.000000e+00 : f32
    %83 = vector.broadcast %cst_27 : f32 to vector<16x32xf32>
    %84 = arith.select %82, %80, %83 : vector<16x32xi1>, vector<16x32xf32>
    %85 = vector.shape_cast %84 : vector<16x32xf32> to vector<8x2x32xf32>
    %86 = vector.extract_strided_slice %85 {offsets = [0, 0, 0], sizes = [8, 1, 32], strides = [1, 1, 1]} : vector<8x2x32xf32> to vector<8x1x32xf32>
    %87 = vector.shape_cast %86 : vector<8x1x32xf32> to vector<8x32xf32>
    %88 = vector.shape_cast %40 : vector<16x32xf32> to vector<8x2x32xf32>
    %89 = vector.extract_strided_slice %88 {offsets = [0, 0, 0], sizes = [8, 1, 32], strides = [1, 1, 1]} : vector<8x2x32xf32> to vector<8x1x32xf32>
    %90 = vector.shape_cast %89 : vector<8x1x32xf32> to vector<8x32xf32>
    %91 = tpu.concatenate %67, %77, %87, %90 in 1 : vector<8x32xf32>, vector<8x32xf32>, vector<8x32xf32>, vector<8x32xf32> -> vector<8x128xf32>
    %c816 = arith.constant 816 : index
    %c0_28 = arith.constant 0 : index
    %92 = vector.load %arg3[%c816, %c0_28] : memref<2784x272xbf16, #tpu.memory_space<vmem>>, vector<128x32xbf16>
    %93 = arith.truncf %91 : vector<8x128xf32> to vector<8x128xbf16>
    %cst_29 = arith.constant dense<0.000000e+00> : vector<8x32xf32>
    %94 = tpu.matmul %93, %92, %cst_29 {dimension_numbers = #tpu.dot_dimension_numbers<[1], [0], [0], [1], [0, 0, 1, 1], [], []>} : vector<8x128xbf16>, vector<128x32xbf16>, vector<8x32xf32> -> vector<8x32xf32>
    %c1 = arith.constant 1 : index
    %c0_30 = arith.constant 0 : index
    %95 = vector.load %arg4[%c1, %c0_30] : memref<32x272xf32, #tpu.memory_space<vmem>>, vector<1x32xf32>
    %96 = vector.broadcast %95 : vector<1x32xf32> to vector<8x32xf32>
    %97 = arith.addf %94, %96 : vector<8x32xf32>
    %cst_31 = arith.constant 0.000000e+00 : f32
    %98 = vector.broadcast %cst_31 : f32 to vector<8x32xf32>
    %99 = arith.maximumf %97, %98 : vector<8x32xf32>
    %100 = tpu.iota {dimensions = array<i32: 0>} : vector<8x32xi32>
    %c4_i32 = arith.constant 4 : i32
    %c0_i32_32 = arith.constant 0 : i32
    %101 = arith.cmpi eq, %c4_i32, %c0_i32_32 : i32
    %c1_i32_33 = arith.constant 1 : i32
    %102 = arith.select %101, %c1_i32_33, %c4_i32 : i32
    %103 = vector.broadcast %102 : i32 to vector<8x32xi32>
    %104 = arith.remsi %100, %103 : vector<8x32xi32>
    %c0_i32_34 = arith.constant 0 : i32
    %105 = vector.broadcast %c0_i32_34 : i32 to vector<8x32xi32>
    %106 = arith.cmpi ne, %104, %105 : vector<8x32xi32>
    %c0_i32_35 = arith.constant 0 : i32
    %107 = vector.broadcast %c0_i32_35 : i32 to vector<8x32xi32>
    %108 = arith.cmpi slt, %104, %107 : vector<8x32xi32>
    %c0_i32_36 = arith.constant 0 : i32
    %109 = arith.cmpi slt, %102, %c0_i32_36 : i32
    %110 = vector.broadcast %109 : i1 to vector<8x32xi1>
    %111 = vector.broadcast %110 : vector<8x32xi1> to vector<8x32xi1>
    %112 = arith.xori %108, %111 : vector<8x32xi1>
    %113 = arith.andi %112, %106 : vector<8x32xi1>
    %114 = vector.broadcast %102 : i32 to vector<8x32xi32>
    %115 = arith.addi %104, %114 : vector<8x32xi32>
    %116 = arith.select %113, %115, %104 : vector<8x32xi1>, vector<8x32xi32>
    %cst_37 = arith.constant 0.000000e+00 : f32
    %117 = vector.broadcast %cst_37 : f32 to vector<2x32xf32>
    %118 = vector.extract_strided_slice %99 {offsets = [0, 0], sizes = [6, 32], strides = [1, 1]} : vector<8x32xf32> to vector<6x32xf32>
    %119 = tpu.concatenate %117, %118 in 0 : vector<2x32xf32>, vector<6x32xf32> -> vector<8x32xf32>
    %c2_i32_38 = arith.constant 2 : i32
    %120 = vector.broadcast %c2_i32_38 : i32 to vector<8x32xi32>
    %121 = arith.cmpi sge, %116, %120 : vector<8x32xi32>
    %cst_39 = arith.constant 0.000000e+00 : f32
    %122 = vector.broadcast %cst_39 : f32 to vector<8x32xf32>
    %123 = arith.select %121, %119, %122 : vector<8x32xi1>, vector<8x32xf32>
    %cst_40 = arith.constant 0.000000e+00 : f32
    %124 = vector.broadcast %cst_40 : f32 to vector<1x32xf32>
    %125 = vector.extract_strided_slice %99 {offsets = [0, 0], sizes = [7, 32], strides = [1, 1]} : vector<8x32xf32> to vector<7x32xf32>
    %126 = tpu.concatenate %124, %125 in 0 : vector<1x32xf32>, vector<7x32xf32> -> vector<8x32xf32>
    %c1_i32_41 = arith.constant 1 : i32
    %127 = vector.broadcast %c1_i32_41 : i32 to vector<8x32xi32>
    %128 = arith.cmpi sge, %116, %127 : vector<8x32xi32>
    %cst_42 = arith.constant 0.000000e+00 : f32
    %129 = vector.broadcast %cst_42 : f32 to vector<8x32xf32>
    %130 = arith.select %128, %126, %129 : vector<8x32xi1>, vector<8x32xf32>
    %131 = tpu.concatenate %123, %130, %99 in 1 : vector<8x32xf32>, vector<8x32xf32>, vector<8x32xf32> -> vector<8x96xf32>
    %c944 = arith.constant 944 : index
    %c0_43 = arith.constant 0 : index
    %132 = vector.load %arg3[%c944, %c0_43] : memref<2784x272xbf16, #tpu.memory_space<vmem>>, vector<96x32xbf16>
    %133 = arith.truncf %131 : vector<8x96xf32> to vector<8x96xbf16>
    %cst_44 = arith.constant dense<0.000000e+00> : vector<8x32xf32>
    %134 = tpu.matmul %133, %132, %cst_44 {dimension_numbers = #tpu.dot_dimension_numbers<[1], [0], [0], [1], [0, 0, 1, 1], [], []>} : vector<8x96xbf16>, vector<96x32xbf16>, vector<8x32xf32> -> vector<8x32xf32>
    %c2 = arith.constant 2 : index
    %c0_45 = arith.constant 0 : index
    %135 = vector.load %arg4[%c2, %c0_45] : memref<32x272xf32, #tpu.memory_space<vmem>>, vector<1x32xf32>
    %136 = vector.broadcast %135 : vector<1x32xf32> to vector<8x32xf32>
    %137 = arith.addf %134, %136 : vector<8x32xf32>
    %cst_46 = arith.constant 0.000000e+00 : f32
    %138 = vector.broadcast %cst_46 : f32 to vector<8x32xf32>
    %139 = arith.maximumf %137, %138 : vector<8x32xf32>
    %c1040 = arith.constant 1040 : index
    %c0_47 = arith.constant 0 : index
    %140 = vector.load %arg3[%c1040, %c0_47] : memref<2784x272xbf16, #tpu.memory_space<vmem>>, vector<32x32xbf16>
    %141 = arith.truncf %139 : vector<8x32xf32> to vector<8x32xbf16>
    %cst_48 = arith.constant dense<0.000000e+00> : vector<8x32xf32>
    %142 = tpu.matmul %141, %140, %cst_48 {dimension_numbers = #tpu.dot_dimension_numbers<[1], [0], [0], [1], [0, 0, 1, 1], [], []>} : vector<8x32xbf16>, vector<32x32xbf16>, vector<8x32xf32> -> vector<8x32xf32>
    %c3 = arith.constant 3 : index
    %c0_49 = arith.constant 0 : index
    %143 = vector.load %arg4[%c3, %c0_49] : memref<32x272xf32, #tpu.memory_space<vmem>>, vector<1x32xf32>
    %144 = vector.broadcast %143 : vector<1x32xf32> to vector<8x32xf32>
    %145 = arith.addf %142, %144 : vector<8x32xf32>
    %146 = arith.addf %97, %145 : vector<8x32xf32>
    %cst_50 = arith.constant 0.000000e+00 : f32
    %147 = vector.broadcast %cst_50 : f32 to vector<8x32xf32>
    %148 = arith.maximumf %146, %147 : vector<8x32xf32>
    %149 = tpu.iota {dimensions = array<i32: 0>} : vector<8x32xi32>
    %c4_i32_51 = arith.constant 4 : i32
    %c0_i32_52 = arith.constant 0 : i32
    %150 = arith.cmpi eq, %c4_i32_51, %c0_i32_52 : i32
    %c1_i32_53 = arith.constant 1 : i32
    %151 = arith.select %150, %c1_i32_53, %c4_i32_51 : i32
    %152 = vector.broadcast %151 : i32 to vector<8x32xi32>
    %153 = arith.remsi %149, %152 : vector<8x32xi32>
    %c0_i32_54 = arith.constant 0 : i32
    %154 = vector.broadcast %c0_i32_54 : i32 to vector<8x32xi32>
    %155 = arith.cmpi ne, %153, %154 : vector<8x32xi32>
    %c0_i32_55 = arith.constant 0 : i32
    %156 = vector.broadcast %c0_i32_55 : i32 to vector<8x32xi32>
    %157 = arith.cmpi slt, %153, %156 : vector<8x32xi32>
    %c0_i32_56 = arith.constant 0 : i32
    %158 = arith.cmpi slt, %151, %c0_i32_56 : i32
    %159 = vector.broadcast %158 : i1 to vector<8x32xi1>
    %160 = vector.broadcast %159 : vector<8x32xi1> to vector<8x32xi1>
    %161 = arith.xori %157, %160 : vector<8x32xi1>
    %162 = arith.andi %161, %155 : vector<8x32xi1>
    %163 = vector.broadcast %151 : i32 to vector<8x32xi32>
    %164 = arith.addi %153, %163 : vector<8x32xi32>
    %165 = arith.select %162, %164, %153 : vector<8x32xi1>, vector<8x32xi32>
    %cst_57 = arith.constant 0.000000e+00 : f32
    %166 = vector.broadcast %cst_57 : f32 to vector<8x32xf32>
    %cst_58 = arith.constant 0.000000e+00 : f32
    %167 = vector.broadcast %cst_58 : f32 to vector<3x32xf32>
    %168 = vector.extract_strided_slice %148 {offsets = [0, 0], sizes = [5, 32], strides = [1, 1]} : vector<8x32xf32> to vector<5x32xf32>
    %169 = tpu.concatenate %167, %168 in 0 : vector<3x32xf32>, vector<5x32xf32> -> vector<8x32xf32>
    %c3_i32_59 = arith.constant 3 : i32
    %170 = vector.broadcast %c3_i32_59 : i32 to vector<8x32xi32>
    %171 = arith.cmpi sge, %165, %170 : vector<8x32xi32>
    %cst_60 = arith.constant 0.000000e+00 : f32
    %172 = vector.broadcast %cst_60 : f32 to vector<8x32xf32>
    %173 = arith.select %171, %169, %172 : vector<8x32xi1>, vector<8x32xf32>
    %174 = tpu.concatenate %166, %173, %148 in 1 : vector<8x32xf32>, vector<8x32xf32>, vector<8x32xf32> -> vector<8x96xf32>
    %c1072 = arith.constant 1072 : index
    %c0_61 = arith.constant 0 : index
    %175 = vector.load %arg3[%c1072, %c0_61] : memref<2784x272xbf16, #tpu.memory_space<vmem>>, vector<96x32xbf16>
    %176 = arith.truncf %174 : vector<8x96xf32> to vector<8x96xbf16>
    %cst_62 = arith.constant dense<0.000000e+00> : vector<8x32xf32>
    %177 = tpu.matmul %176, %175, %cst_62 {dimension_numbers = #tpu.dot_dimension_numbers<[1], [0], [0], [1], [0, 0, 1, 1], [], []>} : vector<8x96xbf16>, vector<96x32xbf16>, vector<8x32xf32> -> vector<8x32xf32>
    %c4 = arith.constant 4 : index
    %c0_63 = arith.constant 0 : index
    %178 = vector.load %arg4[%c4, %c0_63] : memref<32x272xf32, #tpu.memory_space<vmem>>, vector<1x32xf32>
    %179 = vector.broadcast %178 : vector<1x32xf32> to vector<8x32xf32>
    %180 = arith.addf %177, %179 : vector<8x32xf32>
    %cst_64 = arith.constant 0.000000e+00 : f32
    %181 = vector.broadcast %cst_64 : f32 to vector<8x32xf32>
    %182 = arith.maximumf %180, %181 : vector<8x32xf32>
    %c1168 = arith.constant 1168 : index
    %c0_65 = arith.constant 0 : index
    %183 = vector.load %arg3[%c1168, %c0_65] : memref<2784x272xbf16, #tpu.memory_space<vmem>>, vector<32x32xbf16>
    %184 = arith.truncf %182 : vector<8x32xf32> to vector<8x32xbf16>
    %cst_66 = arith.constant dense<0.000000e+00> : vector<8x32xf32>
    %185 = tpu.matmul %184, %183, %cst_66 {dimension_numbers = #tpu.dot_dimension_numbers<[1], [0], [0], [1], [0, 0, 1, 1], [], []>} : vector<8x32xbf16>, vector<32x32xbf16>, vector<8x32xf32> -> vector<8x32xf32>
    %c5 = arith.constant 5 : index
    %c0_67 = arith.constant 0 : index
    %186 = vector.load %arg4[%c5, %c0_67] : memref<32x272xf32, #tpu.memory_space<vmem>>, vector<1x32xf32>
    %187 = vector.broadcast %186 : vector<1x32xf32> to vector<8x32xf32>
    %188 = arith.addf %185, %187 : vector<8x32xf32>
    %189 = arith.addf %146, %188 : vector<8x32xf32>
    %190 = tpu.iota {dimensions = array<i32: 0>} : vector<8x32xi32>
    %c4_i32_68 = arith.constant 4 : i32
    %c0_i32_69 = arith.constant 0 : i32
    %191 = arith.cmpi eq, %c4_i32_68, %c0_i32_69 : i32
    %c1_i32_70 = arith.constant 1 : i32
    %192 = arith.select %191, %c1_i32_70, %c4_i32_68 : i32
    %193 = vector.broadcast %192 : i32 to vector<8x32xi32>
    %194 = arith.remsi %190, %193 : vector<8x32xi32>
    %c0_i32_71 = arith.constant 0 : i32
    %195 = vector.broadcast %c0_i32_71 : i32 to vector<8x32xi32>
    %196 = arith.cmpi ne, %194, %195 : vector<8x32xi32>
    %c0_i32_72 = arith.constant 0 : i32
    %197 = vector.broadcast %c0_i32_72 : i32 to vector<8x32xi32>
    %198 = arith.cmpi slt, %194, %197 : vector<8x32xi32>
    %c0_i32_73 = arith.constant 0 : i32
    %199 = arith.cmpi slt, %192, %c0_i32_73 : i32
    %200 = vector.broadcast %199 : i1 to vector<8x32xi1>
    %201 = vector.broadcast %200 : vector<8x32xi1> to vector<8x32xi1>
    %202 = arith.xori %198, %201 : vector<8x32xi1>
    %203 = arith.andi %202, %196 : vector<8x32xi1>
    %204 = vector.broadcast %192 : i32 to vector<8x32xi32>
    %205 = arith.addi %194, %204 : vector<8x32xi32>
    %206 = arith.select %203, %205, %194 : vector<8x32xi1>, vector<8x32xi32>
    %cst_74 = arith.constant 0.000000e+00 : f32
    %207 = vector.broadcast %cst_74 : f32 to vector<3x32xf32>
    %208 = vector.extract_strided_slice %189 {offsets = [0, 0], sizes = [5, 32], strides = [1, 1]} : vector<8x32xf32> to vector<5x32xf32>
    %209 = tpu.concatenate %207, %208 in 0 : vector<3x32xf32>, vector<5x32xf32> -> vector<8x32xf32>
    %c3_i32_75 = arith.constant 3 : i32
    %210 = vector.broadcast %c3_i32_75 : i32 to vector<8x32xi32>
    %211 = arith.cmpi sge, %206, %210 : vector<8x32xi32>
    %cst_76 = arith.constant 0.000000e+00 : f32
    %212 = vector.broadcast %cst_76 : f32 to vector<8x32xf32>
    %213 = arith.select %211, %209, %212 : vector<8x32xi1>, vector<8x32xf32>
    %214 = vector.shape_cast %213 : vector<8x32xf32> to vector<4x2x32xf32>
    %215 = vector.extract_strided_slice %214 {offsets = [0, 0, 0], sizes = [4, 1, 32], strides = [1, 1, 1]} : vector<4x2x32xf32> to vector<4x1x32xf32>
    %216 = vector.shape_cast %215 : vector<4x1x32xf32> to vector<4x32xf32>
    %cst_77 = arith.constant 0.000000e+00 : f32
    %217 = vector.broadcast %cst_77 : f32 to vector<2x32xf32>
    %218 = vector.extract_strided_slice %189 {offsets = [0, 0], sizes = [6, 32], strides = [1, 1]} : vector<8x32xf32> to vector<6x32xf32>
    %219 = tpu.concatenate %217, %218 in 0 : vector<2x32xf32>, vector<6x32xf32> -> vector<8x32xf32>
    %c2_i32_78 = arith.constant 2 : i32
    %220 = vector.broadcast %c2_i32_78 : i32 to vector<8x32xi32>
    %221 = arith.cmpi sge, %206, %220 : vector<8x32xi32>
    %cst_79 = arith.constant 0.000000e+00 : f32
    %222 = vector.broadcast %cst_79 : f32 to vector<8x32xf32>
    %223 = arith.select %221, %219, %222 : vector<8x32xi1>, vector<8x32xf32>
    %224 = vector.shape_cast %223 : vector<8x32xf32> to vector<4x2x32xf32>
    %225 = vector.extract_strided_slice %224 {offsets = [0, 0, 0], sizes = [4, 1, 32], strides = [1, 1, 1]} : vector<4x2x32xf32> to vector<4x1x32xf32>
    %226 = vector.shape_cast %225 : vector<4x1x32xf32> to vector<4x32xf32>
    %cst_80 = arith.constant 0.000000e+00 : f32
    %227 = vector.broadcast %cst_80 : f32 to vector<1x32xf32>
    %228 = vector.extract_strided_slice %189 {offsets = [0, 0], sizes = [7, 32], strides = [1, 1]} : vector<8x32xf32> to vector<7x32xf32>
    %229 = tpu.concatenate %227, %228 in 0 : vector<1x32xf32>, vector<7x32xf32> -> vector<8x32xf32>
    %c1_i32_81 = arith.constant 1 : i32
    %230 = vector.broadcast %c1_i32_81 : i32 to vector<8x32xi32>
    %231 = arith.cmpi sge, %206, %230 : vector<8x32xi32>
    %cst_82 = arith.constant 0.000000e+00 : f32
    %232 = vector.broadcast %cst_82 : f32 to vector<8x32xf32>
    %233 = arith.select %231, %229, %232 : vector<8x32xi1>, vector<8x32xf32>
    %234 = vector.shape_cast %233 : vector<8x32xf32> to vector<4x2x32xf32>
    %235 = vector.extract_strided_slice %234 {offsets = [0, 0, 0], sizes = [4, 1, 32], strides = [1, 1, 1]} : vector<4x2x32xf32> to vector<4x1x32xf32>
    %236 = vector.shape_cast %235 : vector<4x1x32xf32> to vector<4x32xf32>
    %237 = vector.shape_cast %189 : vector<8x32xf32> to vector<4x2x32xf32>
    %238 = vector.extract_strided_slice %237 {offsets = [0, 0, 0], sizes = [4, 1, 32], strides = [1, 1, 1]} : vector<4x2x32xf32> to vector<4x1x32xf32>
    %239 = vector.shape_cast %238 : vector<4x1x32xf32> to vector<4x32xf32>
    %240 = tpu.concatenate %216, %226, %236, %239 in 1 : vector<4x32xf32>, vector<4x32xf32>, vector<4x32xf32>, vector<4x32xf32> -> vector<4x128xf32>
    %c1200 = arith.constant 1200 : index
    %c0_83 = arith.constant 0 : index
    %241 = vector.load %arg3[%c1200, %c0_83] : memref<2784x272xbf16, #tpu.memory_space<vmem>>, vector<128x32xbf16>
    %242 = arith.truncf %240 : vector<4x128xf32> to vector<4x128xbf16>
    %cst_84 = arith.constant dense<0.000000e+00> : vector<4x32xf32>
    %243 = tpu.matmul %242, %241, %cst_84 {dimension_numbers = #tpu.dot_dimension_numbers<[1], [0], [0], [1], [0, 0, 1, 1], [], []>} : vector<4x128xbf16>, vector<128x32xbf16>, vector<4x32xf32> -> vector<4x32xf32>
    %c6 = arith.constant 6 : index
    %c0_85 = arith.constant 0 : index
    %244 = vector.load %arg4[%c6, %c0_85] : memref<32x272xf32, #tpu.memory_space<vmem>>, vector<1x32xf32>
    %245 = vector.broadcast %244 : vector<1x32xf32> to vector<4x32xf32>
    %246 = arith.addf %243, %245 : vector<4x32xf32>
    %cst_86 = arith.constant 0.000000e+00 : f32
    %247 = vector.broadcast %cst_86 : f32 to vector<4x32xf32>
    %248 = arith.maximumf %246, %247 : vector<4x32xf32>
    %249 = tpu.iota {dimensions = array<i32: 0>} : vector<4x32xi32>
    %c2_i32_87 = arith.constant 2 : i32
    %c0_i32_88 = arith.constant 0 : i32
    %250 = arith.cmpi eq, %c2_i32_87, %c0_i32_88 : i32
    %c1_i32_89 = arith.constant 1 : i32
    %251 = arith.select %250, %c1_i32_89, %c2_i32_87 : i32
    %252 = vector.broadcast %251 : i32 to vector<4x32xi32>
    %253 = arith.remsi %249, %252 : vector<4x32xi32>
    %c0_i32_90 = arith.constant 0 : i32
    %254 = vector.broadcast %c0_i32_90 : i32 to vector<4x32xi32>
    %255 = arith.cmpi ne, %253, %254 : vector<4x32xi32>
    %c0_i32_91 = arith.constant 0 : i32
    %256 = vector.broadcast %c0_i32_91 : i32 to vector<4x32xi32>
    %257 = arith.cmpi slt, %253, %256 : vector<4x32xi32>
    %c0_i32_92 = arith.constant 0 : i32
    %258 = arith.cmpi slt, %251, %c0_i32_92 : i32
    %259 = vector.broadcast %258 : i1 to vector<4x32xi1>
    %260 = vector.broadcast %259 : vector<4x32xi1> to vector<4x32xi1>
    %261 = arith.xori %257, %260 : vector<4x32xi1>
    %262 = arith.andi %261, %255 : vector<4x32xi1>
    %263 = vector.broadcast %251 : i32 to vector<4x32xi32>
    %264 = arith.addi %253, %263 : vector<4x32xi32>
    %265 = arith.select %262, %264, %253 : vector<4x32xi1>, vector<4x32xi32>
    %cst_93 = arith.constant 0.000000e+00 : f32
    %266 = vector.broadcast %cst_93 : f32 to vector<4x32xf32>
    %cst_94 = arith.constant 0.000000e+00 : f32
    %267 = vector.broadcast %cst_94 : f32 to vector<1x32xf32>
    %268 = vector.extract_strided_slice %248 {offsets = [0, 0], sizes = [3, 32], strides = [1, 1]} : vector<4x32xf32> to vector<3x32xf32>
    %269 = tpu.concatenate %267, %268 in 0 : vector<1x32xf32>, vector<3x32xf32> -> vector<4x32xf32>
    %c1_i32_95 = arith.constant 1 : i32
    %270 = vector.broadcast %c1_i32_95 : i32 to vector<4x32xi32>
    %271 = arith.cmpi sge, %265, %270 : vector<4x32xi32>
    %cst_96 = arith.constant 0.000000e+00 : f32
    %272 = vector.broadcast %cst_96 : f32 to vector<4x32xf32>
    %273 = arith.select %271, %269, %272 : vector<4x32xi1>, vector<4x32xf32>
    %274 = tpu.concatenate %266, %273, %248 in 1 : vector<4x32xf32>, vector<4x32xf32>, vector<4x32xf32> -> vector<4x96xf32>
    %c1328 = arith.constant 1328 : index
    %c0_97 = arith.constant 0 : index
    %275 = vector.load %arg3[%c1328, %c0_97] : memref<2784x272xbf16, #tpu.memory_space<vmem>>, vector<96x32xbf16>
    %276 = arith.truncf %274 : vector<4x96xf32> to vector<4x96xbf16>
    %cst_98 = arith.constant dense<0.000000e+00> : vector<4x32xf32>
    %277 = tpu.matmul %276, %275, %cst_98 {dimension_numbers = #tpu.dot_dimension_numbers<[1], [0], [0], [1], [0, 0, 1, 1], [], []>} : vector<4x96xbf16>, vector<96x32xbf16>, vector<4x32xf32> -> vector<4x32xf32>
    %c7 = arith.constant 7 : index
    %c0_99 = arith.constant 0 : index
    %278 = vector.load %arg4[%c7, %c0_99] : memref<32x272xf32, #tpu.memory_space<vmem>>, vector<1x32xf32>
    %279 = vector.broadcast %278 : vector<1x32xf32> to vector<4x32xf32>
    %280 = arith.addf %277, %279 : vector<4x32xf32>
    %cst_100 = arith.constant 0.000000e+00 : f32
    %281 = vector.broadcast %cst_100 : f32 to vector<4x32xf32>
    %282 = arith.maximumf %280, %281 : vector<4x32xf32>
    %c1424 = arith.constant 1424 : index
    %c0_101 = arith.constant 0 : index
    %283 = vector.load %arg3[%c1424, %c0_101] : memref<2784x272xbf16, #tpu.memory_space<vmem>>, vector<32x32xbf16>
    %284 = arith.truncf %282 : vector<4x32xf32> to vector<4x32xbf16>
    %cst_102 = arith.constant dense<0.000000e+00> : vector<4x32xf32>
    %285 = tpu.matmul %284, %283, %cst_102 {dimension_numbers = #tpu.dot_dimension_numbers<[1], [0], [0], [1], [0, 0, 1, 1], [], []>} : vector<4x32xbf16>, vector<32x32xbf16>, vector<4x32xf32> -> vector<4x32xf32>
    %c8 = arith.constant 8 : index
    %c0_103 = arith.constant 0 : index
    %286 = vector.load %arg4[%c8, %c0_103] : memref<32x272xf32, #tpu.memory_space<vmem>>, vector<1x32xf32>
    %287 = vector.broadcast %286 : vector<1x32xf32> to vector<4x32xf32>
    %288 = arith.addf %285, %287 : vector<4x32xf32>
    %289 = arith.addf %246, %288 : vector<4x32xf32>
    %cst_104 = arith.constant 0.000000e+00 : f32
    %290 = vector.broadcast %cst_104 : f32 to vector<4x32xf32>
    %291 = arith.maximumf %289, %290 : vector<4x32xf32>
    %cst_105 = arith.constant 0.000000e+00 : f32
    %292 = vector.broadcast %cst_105 : f32 to vector<4x32xf32>
    %cst_106 = arith.constant 0.000000e+00 : f32
    %293 = vector.broadcast %cst_106 : f32 to vector<4x32xf32>
    %294 = tpu.concatenate %292, %293, %291 in 1 : vector<4x32xf32>, vector<4x32xf32>, vector<4x32xf32> -> vector<4x96xf32>
    %c1456 = arith.constant 1456 : index
    %c0_107 = arith.constant 0 : index
    %295 = vector.load %arg3[%c1456, %c0_107] : memref<2784x272xbf16, #tpu.memory_space<vmem>>, vector<96x32xbf16>
    %296 = arith.truncf %294 : vector<4x96xf32> to vector<4x96xbf16>
    %cst_108 = arith.constant dense<0.000000e+00> : vector<4x32xf32>
    %297 = tpu.matmul %296, %295, %cst_108 {dimension_numbers = #tpu.dot_dimension_numbers<[1], [0], [0], [1], [0, 0, 1, 1], [], []>} : vector<4x96xbf16>, vector<96x32xbf16>, vector<4x32xf32> -> vector<4x32xf32>
    %c9 = arith.constant 9 : index
    %c0_109 = arith.constant 0 : index
    %298 = vector.load %arg4[%c9, %c0_109] : memref<32x272xf32, #tpu.memory_space<vmem>>, vector<1x32xf32>
    %299 = vector.broadcast %298 : vector<1x32xf32> to vector<4x32xf32>
    %300 = arith.addf %297, %299 : vector<4x32xf32>
    %cst_110 = arith.constant 0.000000e+00 : f32
    %301 = vector.broadcast %cst_110 : f32 to vector<4x32xf32>
    %302 = arith.maximumf %300, %301 : vector<4x32xf32>
    %c1552 = arith.constant 1552 : index
    %c0_111 = arith.constant 0 : index
    %303 = vector.load %arg3[%c1552, %c0_111] : memref<2784x272xbf16, #tpu.memory_space<vmem>>, vector<32x32xbf16>
    %304 = arith.truncf %302 : vector<4x32xf32> to vector<4x32xbf16>
    %cst_112 = arith.constant dense<0.000000e+00> : vector<4x32xf32>
    %305 = tpu.matmul %304, %303, %cst_112 {dimension_numbers = #tpu.dot_dimension_numbers<[1], [0], [0], [1], [0, 0, 1, 1], [], []>} : vector<4x32xbf16>, vector<32x32xbf16>, vector<4x32xf32> -> vector<4x32xf32>
    %c10 = arith.constant 10 : index
    %c0_113 = arith.constant 0 : index
    %306 = vector.load %arg4[%c10, %c0_113] : memref<32x272xf32, #tpu.memory_space<vmem>>, vector<1x32xf32>
    %307 = vector.broadcast %306 : vector<1x32xf32> to vector<4x32xf32>
    %308 = arith.addf %305, %307 : vector<4x32xf32>
    %309 = arith.addf %289, %308 : vector<4x32xf32>
    %310 = tpu.iota {dimensions = array<i32: 0>} : vector<4x32xi32>
    %c2_i32_114 = arith.constant 2 : i32
    %c0_i32_115 = arith.constant 0 : i32
    %311 = arith.cmpi eq, %c2_i32_114, %c0_i32_115 : i32
    %c1_i32_116 = arith.constant 1 : i32
    %312 = arith.select %311, %c1_i32_116, %c2_i32_114 : i32
    %313 = vector.broadcast %312 : i32 to vector<4x32xi32>
    %314 = arith.remsi %310, %313 : vector<4x32xi32>
    %c0_i32_117 = arith.constant 0 : i32
    %315 = vector.broadcast %c0_i32_117 : i32 to vector<4x32xi32>
    %316 = arith.cmpi ne, %314, %315 : vector<4x32xi32>
    %c0_i32_118 = arith.constant 0 : i32
    %317 = vector.broadcast %c0_i32_118 : i32 to vector<4x32xi32>
    %318 = arith.cmpi slt, %314, %317 : vector<4x32xi32>
    %c0_i32_119 = arith.constant 0 : i32
    %319 = arith.cmpi slt, %312, %c0_i32_119 : i32
    %320 = vector.broadcast %319 : i1 to vector<4x32xi1>
    %321 = vector.broadcast %320 : vector<4x32xi1> to vector<4x32xi1>
    %322 = arith.xori %318, %321 : vector<4x32xi1>
    %323 = arith.andi %322, %316 : vector<4x32xi1>
    %324 = vector.broadcast %312 : i32 to vector<4x32xi32>
    %325 = arith.addi %314, %324 : vector<4x32xi32>
    %326 = arith.select %323, %325, %314 : vector<4x32xi1>, vector<4x32xi32>
    %cst_120 = arith.constant 0.000000e+00 : f32
    %327 = vector.broadcast %cst_120 : f32 to vector<4x32xf32>
    %cst_121 = arith.constant 0.000000e+00 : f32
    %328 = vector.broadcast %cst_121 : f32 to vector<1x32xf32>
    %329 = vector.extract_strided_slice %309 {offsets = [0, 0], sizes = [3, 32], strides = [1, 1]} : vector<4x32xf32> to vector<3x32xf32>
    %330 = tpu.concatenate %328, %329 in 0 : vector<1x32xf32>, vector<3x32xf32> -> vector<4x32xf32>
    %c1_i32_122 = arith.constant 1 : i32
    %331 = vector.broadcast %c1_i32_122 : i32 to vector<4x32xi32>
    %332 = arith.cmpi sge, %326, %331 : vector<4x32xi32>
    %cst_123 = arith.constant 0.000000e+00 : f32
    %333 = vector.broadcast %cst_123 : f32 to vector<4x32xf32>
    %334 = arith.select %332, %330, %333 : vector<4x32xi1>, vector<4x32xf32>
    %335 = tpu.concatenate %327, %334, %309 in 1 : vector<4x32xf32>, vector<4x32xf32>, vector<4x32xf32> -> vector<4x96xf32>
    %c1584 = arith.constant 1584 : index
    %c0_124 = arith.constant 0 : index
    %336 = vector.load %arg3[%c1584, %c0_124] : memref<2784x272xbf16, #tpu.memory_space<vmem>>, vector<96x32xbf16>
    %337 = arith.truncf %335 : vector<4x96xf32> to vector<4x96xbf16>
    %cst_125 = arith.constant dense<0.000000e+00> : vector<4x32xf32>
    %338 = tpu.matmul %337, %336, %cst_125 {dimension_numbers = #tpu.dot_dimension_numbers<[1], [0], [0], [1], [0, 0, 1, 1], [], []>} : vector<4x96xbf16>, vector<96x32xbf16>, vector<4x32xf32> -> vector<4x32xf32>
    %c11 = arith.constant 11 : index
    %c0_126 = arith.constant 0 : index
    %339 = vector.load %arg4[%c11, %c0_126] : memref<32x272xf32, #tpu.memory_space<vmem>>, vector<1x32xf32>
    %340 = vector.broadcast %339 : vector<1x32xf32> to vector<4x32xf32>
    %341 = arith.addf %338, %340 : vector<4x32xf32>
    %342 = tpu.iota {dimensions = array<i32: 0>} : vector<4x32xi32>
    %c2_i32_127 = arith.constant 2 : i32
    %c0_i32_128 = arith.constant 0 : i32
    %343 = arith.cmpi eq, %c2_i32_127, %c0_i32_128 : i32
    %c1_i32_129 = arith.constant 1 : i32
    %344 = arith.select %343, %c1_i32_129, %c2_i32_127 : i32
    %345 = vector.broadcast %344 : i32 to vector<4x32xi32>
    %346 = arith.remsi %342, %345 : vector<4x32xi32>
    %c0_i32_130 = arith.constant 0 : i32
    %347 = vector.broadcast %c0_i32_130 : i32 to vector<4x32xi32>
    %348 = arith.cmpi ne, %346, %347 : vector<4x32xi32>
    %c0_i32_131 = arith.constant 0 : i32
    %349 = vector.broadcast %c0_i32_131 : i32 to vector<4x32xi32>
    %350 = arith.cmpi slt, %346, %349 : vector<4x32xi32>
    %c0_i32_132 = arith.constant 0 : i32
    %351 = arith.cmpi slt, %344, %c0_i32_132 : i32
    %352 = vector.broadcast %351 : i1 to vector<4x32xi1>
    %353 = vector.broadcast %352 : vector<4x32xi1> to vector<4x32xi1>
    %354 = arith.xori %350, %353 : vector<4x32xi1>
    %355 = arith.andi %354, %348 : vector<4x32xi1>
    %356 = vector.broadcast %344 : i32 to vector<4x32xi32>
    %357 = arith.addi %346, %356 : vector<4x32xi32>
    %358 = arith.select %355, %357, %346 : vector<4x32xi1>, vector<4x32xi32>
    %cst_133 = arith.constant 0.000000e+00 : f32
    %359 = vector.broadcast %cst_133 : f32 to vector<4x32xf32>
    %cst_134 = arith.constant 0.000000e+00 : f32
    %360 = vector.broadcast %cst_134 : f32 to vector<1x32xf32>
    %361 = vector.extract_strided_slice %341 {offsets = [0, 0], sizes = [3, 32], strides = [1, 1]} : vector<4x32xf32> to vector<3x32xf32>
    %362 = tpu.concatenate %360, %361 in 0 : vector<1x32xf32>, vector<3x32xf32> -> vector<4x32xf32>
    %c1_i32_135 = arith.constant 1 : i32
    %363 = vector.broadcast %c1_i32_135 : i32 to vector<4x32xi32>
    %364 = arith.cmpi sge, %358, %363 : vector<4x32xi32>
    %cst_136 = arith.constant 0.000000e+00 : f32
    %365 = vector.broadcast %cst_136 : f32 to vector<4x32xf32>
    %366 = arith.select %364, %362, %365 : vector<4x32xi1>, vector<4x32xf32>
    %367 = tpu.concatenate %359, %366, %341 in 1 : vector<4x32xf32>, vector<4x32xf32>, vector<4x32xf32> -> vector<4x96xf32>
    %c1680 = arith.constant 1680 : index
    %c0_137 = arith.constant 0 : index
    %368 = vector.load %arg3[%c1680, %c0_137] : memref<2784x272xbf16, #tpu.memory_space<vmem>>, vector<96x32xbf16>
    %369 = arith.truncf %367 : vector<4x96xf32> to vector<4x96xbf16>
    %cst_138 = arith.constant dense<0.000000e+00> : vector<4x32xf32>
    %370 = tpu.matmul %369, %368, %cst_138 {dimension_numbers = #tpu.dot_dimension_numbers<[1], [0], [0], [1], [0, 0, 1, 1], [], []>} : vector<4x96xbf16>, vector<96x32xbf16>, vector<4x32xf32> -> vector<4x32xf32>
    %c12 = arith.constant 12 : index
    %c0_139 = arith.constant 0 : index
    %371 = vector.load %arg4[%c12, %c0_139] : memref<32x272xf32, #tpu.memory_space<vmem>>, vector<1x32xf32>
    %372 = vector.broadcast %371 : vector<1x32xf32> to vector<4x32xf32>
    %373 = arith.addf %370, %372 : vector<4x32xf32>
    %374 = vector.extract_strided_slice %373 {offsets = [0, 0], sizes = [4, 16], strides = [1, 1]} : vector<4x32xf32> to vector<4x16xf32>
    %375 = vector.extract_strided_slice %373 {offsets = [0, 16], sizes = [4, 16], strides = [1, 1]} : vector<4x32xf32> to vector<4x16xf32>
    %c0_140 = arith.constant 0 : index
    %c0_141 = arith.constant 0 : index
    %376 = vector.load %arg2[%c0_140, %c0_141] : memref<4x16xf32, #tpu.memory_space<vmem>>, vector<4x16xf32>
    %cst_142 = arith.constant 5.000000e-01 : f32
    %377 = vector.broadcast %cst_142 : f32 to vector<4x16xf32>
    %378 = arith.mulf %377, %375 : vector<4x16xf32>
    %379 = math.exp %378 : vector<4x16xf32>
    %380 = arith.mulf %376, %379 : vector<4x16xf32>
    %381 = arith.addf %374, %380 : vector<4x16xf32>
    %c1776 = arith.constant 1776 : index
    %c0_143 = arith.constant 0 : index
    %382 = vector.load %arg3[%c1776, %c0_143] : memref<2784x272xbf16, #tpu.memory_space<vmem>>, vector<16x32xbf16>
    %383 = arith.truncf %381 : vector<4x16xf32> to vector<4x16xbf16>
    %cst_144 = arith.constant dense<0.000000e+00> : vector<4x32xf32>
    %384 = tpu.matmul %383, %382, %cst_144 {dimension_numbers = #tpu.dot_dimension_numbers<[1], [0], [0], [1], [0, 0, 1, 1], [], []>} : vector<4x16xbf16>, vector<16x32xbf16>, vector<4x32xf32> -> vector<4x32xf32>
    %c13 = arith.constant 13 : index
    %c0_145 = arith.constant 0 : index
    %385 = vector.load %arg4[%c13, %c0_145] : memref<32x272xf32, #tpu.memory_space<vmem>>, vector<1x32xf32>
    %386 = vector.broadcast %385 : vector<1x32xf32> to vector<4x32xf32>
    %387 = arith.addf %384, %386 : vector<4x32xf32>
    %388 = tpu.iota {dimensions = array<i32: 0>} : vector<4x32xi32>
    %c2_i32_146 = arith.constant 2 : i32
    %c0_i32_147 = arith.constant 0 : i32
    %389 = arith.cmpi eq, %c2_i32_146, %c0_i32_147 : i32
    %c1_i32_148 = arith.constant 1 : i32
    %390 = arith.select %389, %c1_i32_148, %c2_i32_146 : i32
    %391 = vector.broadcast %390 : i32 to vector<4x32xi32>
    %392 = arith.remsi %388, %391 : vector<4x32xi32>
    %c0_i32_149 = arith.constant 0 : i32
    %393 = vector.broadcast %c0_i32_149 : i32 to vector<4x32xi32>
    %394 = arith.cmpi ne, %392, %393 : vector<4x32xi32>
    %c0_i32_150 = arith.constant 0 : i32
    %395 = vector.broadcast %c0_i32_150 : i32 to vector<4x32xi32>
    %396 = arith.cmpi slt, %392, %395 : vector<4x32xi32>
    %c0_i32_151 = arith.constant 0 : i32
    %397 = arith.cmpi slt, %390, %c0_i32_151 : i32
    %398 = vector.broadcast %397 : i1 to vector<4x32xi1>
    %399 = vector.broadcast %398 : vector<4x32xi1> to vector<4x32xi1>
    %400 = arith.xori %396, %399 : vector<4x32xi1>
    %401 = arith.andi %400, %394 : vector<4x32xi1>
    %402 = vector.broadcast %390 : i32 to vector<4x32xi32>
    %403 = arith.addi %392, %402 : vector<4x32xi32>
    %404 = arith.select %401, %403, %392 : vector<4x32xi1>, vector<4x32xi32>
    %cst_152 = arith.constant 0.000000e+00 : f32
    %405 = vector.broadcast %cst_152 : f32 to vector<4x32xf32>
    %cst_153 = arith.constant 0.000000e+00 : f32
    %406 = vector.broadcast %cst_153 : f32 to vector<1x32xf32>
    %407 = vector.extract_strided_slice %387 {offsets = [0, 0], sizes = [3, 32], strides = [1, 1]} : vector<4x32xf32> to vector<3x32xf32>
    %408 = tpu.concatenate %406, %407 in 0 : vector<1x32xf32>, vector<3x32xf32> -> vector<4x32xf32>
    %c1_i32_154 = arith.constant 1 : i32
    %409 = vector.broadcast %c1_i32_154 : i32 to vector<4x32xi32>
    %410 = arith.cmpi sge, %404, %409 : vector<4x32xi32>
    %cst_155 = arith.constant 0.000000e+00 : f32
    %411 = vector.broadcast %cst_155 : f32 to vector<4x32xf32>
    %412 = arith.select %410, %408, %411 : vector<4x32xi1>, vector<4x32xf32>
    %413 = tpu.concatenate %405, %412, %387 in 1 : vector<4x32xf32>, vector<4x32xf32>, vector<4x32xf32> -> vector<4x96xf32>
    %c1792 = arith.constant 1792 : index
    %c0_156 = arith.constant 0 : index
    %414 = vector.load %arg3[%c1792, %c0_156] : memref<2784x272xbf16, #tpu.memory_space<vmem>>, vector<96x32xbf16>
    %415 = arith.truncf %413 : vector<4x96xf32> to vector<4x96xbf16>
    %cst_157 = arith.constant dense<0.000000e+00> : vector<4x32xf32>
    %416 = tpu.matmul %415, %414, %cst_157 {dimension_numbers = #tpu.dot_dimension_numbers<[1], [0], [0], [1], [0, 0, 1, 1], [], []>} : vector<4x96xbf16>, vector<96x32xbf16>, vector<4x32xf32> -> vector<4x32xf32>
    %c14 = arith.constant 14 : index
    %c0_158 = arith.constant 0 : index
    %417 = vector.load %arg4[%c14, %c0_158] : memref<32x272xf32, #tpu.memory_space<vmem>>, vector<1x32xf32>
    %418 = vector.broadcast %417 : vector<1x32xf32> to vector<4x32xf32>
    %419 = arith.addf %416, %418 : vector<4x32xf32>
    %cst_159 = arith.constant 0.000000e+00 : f32
    %420 = vector.broadcast %cst_159 : f32 to vector<4x32xf32>
    %421 = arith.maximumf %419, %420 : vector<4x32xf32>
    %cst_160 = arith.constant 0.000000e+00 : f32
    %422 = vector.broadcast %cst_160 : f32 to vector<4x32xf32>
    %423 = arith.maximumf %421, %422 : vector<4x32xf32>
    %424 = tpu.iota {dimensions = array<i32: 0>} : vector<4x32xi32>
    %c2_i32_161 = arith.constant 2 : i32
    %c0_i32_162 = arith.constant 0 : i32
    %425 = arith.cmpi eq, %c2_i32_161, %c0_i32_162 : i32
    %c1_i32_163 = arith.constant 1 : i32
    %426 = arith.select %425, %c1_i32_163, %c2_i32_161 : i32
    %427 = vector.broadcast %426 : i32 to vector<4x32xi32>
    %428 = arith.remsi %424, %427 : vector<4x32xi32>
    %c0_i32_164 = arith.constant 0 : i32
    %429 = vector.broadcast %c0_i32_164 : i32 to vector<4x32xi32>
    %430 = arith.cmpi ne, %428, %429 : vector<4x32xi32>
    %c0_i32_165 = arith.constant 0 : i32
    %431 = vector.broadcast %c0_i32_165 : i32 to vector<4x32xi32>
    %432 = arith.cmpi slt, %428, %431 : vector<4x32xi32>
    %c0_i32_166 = arith.constant 0 : i32
    %433 = arith.cmpi slt, %426, %c0_i32_166 : i32
    %434 = vector.broadcast %433 : i1 to vector<4x32xi1>
    %435 = vector.broadcast %434 : vector<4x32xi1> to vector<4x32xi1>
    %436 = arith.xori %432, %435 : vector<4x32xi1>
    %437 = arith.andi %436, %430 : vector<4x32xi1>
    %438 = vector.broadcast %426 : i32 to vector<4x32xi32>
    %439 = arith.addi %428, %438 : vector<4x32xi32>
    %440 = arith.select %437, %439, %428 : vector<4x32xi1>, vector<4x32xi32>
    %cst_167 = arith.constant 0.000000e+00 : f32
    %441 = vector.broadcast %cst_167 : f32 to vector<4x32xf32>
    %cst_168 = arith.constant 0.000000e+00 : f32
    %442 = vector.broadcast %cst_168 : f32 to vector<1x32xf32>
    %443 = vector.extract_strided_slice %423 {offsets = [0, 0], sizes = [3, 32], strides = [1, 1]} : vector<4x32xf32> to vector<3x32xf32>
    %444 = tpu.concatenate %442, %443 in 0 : vector<1x32xf32>, vector<3x32xf32> -> vector<4x32xf32>
    %c1_i32_169 = arith.constant 1 : i32
    %445 = vector.broadcast %c1_i32_169 : i32 to vector<4x32xi32>
    %446 = arith.cmpi sge, %440, %445 : vector<4x32xi32>
    %cst_170 = arith.constant 0.000000e+00 : f32
    %447 = vector.broadcast %cst_170 : f32 to vector<4x32xf32>
    %448 = arith.select %446, %444, %447 : vector<4x32xi1>, vector<4x32xf32>
    %449 = tpu.concatenate %441, %448, %423 in 1 : vector<4x32xf32>, vector<4x32xf32>, vector<4x32xf32> -> vector<4x96xf32>
    %c1888 = arith.constant 1888 : index
    %c0_171 = arith.constant 0 : index
    %450 = vector.load %arg3[%c1888, %c0_171] : memref<2784x272xbf16, #tpu.memory_space<vmem>>, vector<96x32xbf16>
    %451 = arith.truncf %449 : vector<4x96xf32> to vector<4x96xbf16>
    %cst_172 = arith.constant dense<0.000000e+00> : vector<4x32xf32>
    %452 = tpu.matmul %451, %450, %cst_172 {dimension_numbers = #tpu.dot_dimension_numbers<[1], [0], [0], [1], [0, 0, 1, 1], [], []>} : vector<4x96xbf16>, vector<96x32xbf16>, vector<4x32xf32> -> vector<4x32xf32>
    %c15 = arith.constant 15 : index
    %c0_173 = arith.constant 0 : index
    %453 = vector.load %arg4[%c15, %c0_173] : memref<32x272xf32, #tpu.memory_space<vmem>>, vector<1x32xf32>
    %454 = vector.broadcast %453 : vector<1x32xf32> to vector<4x32xf32>
    %455 = arith.addf %452, %454 : vector<4x32xf32>
    %cst_174 = arith.constant 0.000000e+00 : f32
    %456 = vector.broadcast %cst_174 : f32 to vector<4x32xf32>
    %457 = arith.maximumf %455, %456 : vector<4x32xf32>
    %c1984 = arith.constant 1984 : index
    %c0_175 = arith.constant 0 : index
    %458 = vector.load %arg3[%c1984, %c0_175] : memref<2784x272xbf16, #tpu.memory_space<vmem>>, vector<32x32xbf16>
    %459 = arith.truncf %457 : vector<4x32xf32> to vector<4x32xbf16>
    %cst_176 = arith.constant dense<0.000000e+00> : vector<4x32xf32>
    %460 = tpu.matmul %459, %458, %cst_176 {dimension_numbers = #tpu.dot_dimension_numbers<[1], [0], [0], [1], [0, 0, 1, 1], [], []>} : vector<4x32xbf16>, vector<32x32xbf16>, vector<4x32xf32> -> vector<4x32xf32>
    %c16 = arith.constant 16 : index
    %c0_177 = arith.constant 0 : index
    %461 = vector.load %arg4[%c16, %c0_177] : memref<32x272xf32, #tpu.memory_space<vmem>>, vector<1x32xf32>
    %462 = vector.broadcast %461 : vector<1x32xf32> to vector<4x32xf32>
    %463 = arith.addf %460, %462 : vector<4x32xf32>
    %464 = arith.addf %421, %463 : vector<4x32xf32>
    %cst_178 = arith.constant 0.000000e+00 : f32
    %465 = vector.broadcast %cst_178 : f32 to vector<4x32xf32>
    %466 = arith.maximumf %464, %465 : vector<4x32xf32>
    %cst_179 = arith.constant 0.000000e+00 : f32
    %467 = vector.broadcast %cst_179 : f32 to vector<4x32xf32>
    %cst_180 = arith.constant 0.000000e+00 : f32
    %468 = vector.broadcast %cst_180 : f32 to vector<4x32xf32>
    %469 = tpu.concatenate %467, %468, %466 in 1 : vector<4x32xf32>, vector<4x32xf32>, vector<4x32xf32> -> vector<4x96xf32>
    %c2016 = arith.constant 2016 : index
    %c0_181 = arith.constant 0 : index
    %470 = vector.load %arg3[%c2016, %c0_181] : memref<2784x272xbf16, #tpu.memory_space<vmem>>, vector<96x32xbf16>
    %471 = arith.truncf %469 : vector<4x96xf32> to vector<4x96xbf16>
    %cst_182 = arith.constant dense<0.000000e+00> : vector<4x32xf32>
    %472 = tpu.matmul %471, %470, %cst_182 {dimension_numbers = #tpu.dot_dimension_numbers<[1], [0], [0], [1], [0, 0, 1, 1], [], []>} : vector<4x96xbf16>, vector<96x32xbf16>, vector<4x32xf32> -> vector<4x32xf32>
    %c17 = arith.constant 17 : index
    %c0_183 = arith.constant 0 : index
    %473 = vector.load %arg4[%c17, %c0_183] : memref<32x272xf32, #tpu.memory_space<vmem>>, vector<1x32xf32>
    %474 = vector.broadcast %473 : vector<1x32xf32> to vector<4x32xf32>
    %475 = arith.addf %472, %474 : vector<4x32xf32>
    %cst_184 = arith.constant 0.000000e+00 : f32
    %476 = vector.broadcast %cst_184 : f32 to vector<4x32xf32>
    %477 = arith.maximumf %475, %476 : vector<4x32xf32>
    %c2112 = arith.constant 2112 : index
    %c0_185 = arith.constant 0 : index
    %478 = vector.load %arg3[%c2112, %c0_185] : memref<2784x272xbf16, #tpu.memory_space<vmem>>, vector<32x32xbf16>
    %479 = arith.truncf %477 : vector<4x32xf32> to vector<4x32xbf16>
    %cst_186 = arith.constant dense<0.000000e+00> : vector<4x32xf32>
    %480 = tpu.matmul %479, %478, %cst_186 {dimension_numbers = #tpu.dot_dimension_numbers<[1], [0], [0], [1], [0, 0, 1, 1], [], []>} : vector<4x32xbf16>, vector<32x32xbf16>, vector<4x32xf32> -> vector<4x32xf32>
    %c18 = arith.constant 18 : index
    %c0_187 = arith.constant 0 : index
    %481 = vector.load %arg4[%c18, %c0_187] : memref<32x272xf32, #tpu.memory_space<vmem>>, vector<1x32xf32>
    %482 = vector.broadcast %481 : vector<1x32xf32> to vector<4x32xf32>
    %483 = arith.addf %480, %482 : vector<4x32xf32>
    %484 = arith.addf %464, %483 : vector<4x32xf32>
    %485 = vector.shape_cast %484 : vector<4x32xf32> to vector<4x1x32xf32>
    %486 = vector.shape_cast %485 : vector<4x1x32xf32> to vector<4x1x32xf32>
    %487 = vector.broadcast %486 : vector<4x1x32xf32> to vector<4x2x32xf32>
    %488 = vector.shape_cast %487 : vector<4x2x32xf32> to vector<8x32xf32>
    %489 = tpu.iota {dimensions = array<i32: 0>} : vector<8x32xi32>
    %c4_i32_188 = arith.constant 4 : i32
    %c0_i32_189 = arith.constant 0 : i32
    %490 = arith.cmpi eq, %c4_i32_188, %c0_i32_189 : i32
    %c1_i32_190 = arith.constant 1 : i32
    %491 = arith.select %490, %c1_i32_190, %c4_i32_188 : i32
    %492 = vector.broadcast %491 : i32 to vector<8x32xi32>
    %493 = arith.remsi %489, %492 : vector<8x32xi32>
    %c0_i32_191 = arith.constant 0 : i32
    %494 = vector.broadcast %c0_i32_191 : i32 to vector<8x32xi32>
    %495 = arith.cmpi ne, %493, %494 : vector<8x32xi32>
    %c0_i32_192 = arith.constant 0 : i32
    %496 = vector.broadcast %c0_i32_192 : i32 to vector<8x32xi32>
    %497 = arith.cmpi slt, %493, %496 : vector<8x32xi32>
    %c0_i32_193 = arith.constant 0 : i32
    %498 = arith.cmpi slt, %491, %c0_i32_193 : i32
    %499 = vector.broadcast %498 : i1 to vector<8x32xi1>
    %500 = vector.broadcast %499 : vector<8x32xi1> to vector<8x32xi1>
    %501 = arith.xori %497, %500 : vector<8x32xi1>
    %502 = arith.andi %501, %495 : vector<8x32xi1>
    %503 = vector.broadcast %491 : i32 to vector<8x32xi32>
    %504 = arith.addi %493, %503 : vector<8x32xi32>
    %505 = arith.select %502, %504, %493 : vector<8x32xi1>, vector<8x32xi32>
    %cst_194 = arith.constant 0.000000e+00 : f32
    %506 = vector.broadcast %cst_194 : f32 to vector<2x32xf32>
    %507 = vector.extract_strided_slice %488 {offsets = [0, 0], sizes = [6, 32], strides = [1, 1]} : vector<8x32xf32> to vector<6x32xf32>
    %508 = tpu.concatenate %506, %507 in 0 : vector<2x32xf32>, vector<6x32xf32> -> vector<8x32xf32>
    %c2_i32_195 = arith.constant 2 : i32
    %509 = vector.broadcast %c2_i32_195 : i32 to vector<8x32xi32>
    %510 = arith.cmpi sge, %505, %509 : vector<8x32xi32>
    %cst_196 = arith.constant 0.000000e+00 : f32
    %511 = vector.broadcast %cst_196 : f32 to vector<8x32xf32>
    %512 = arith.select %510, %508, %511 : vector<8x32xi1>, vector<8x32xf32>
    %cst_197 = arith.constant 0.000000e+00 : f32
    %513 = vector.broadcast %cst_197 : f32 to vector<1x32xf32>
    %514 = vector.extract_strided_slice %488 {offsets = [0, 0], sizes = [7, 32], strides = [1, 1]} : vector<8x32xf32> to vector<7x32xf32>
    %515 = tpu.concatenate %513, %514 in 0 : vector<1x32xf32>, vector<7x32xf32> -> vector<8x32xf32>
    %c1_i32_198 = arith.constant 1 : i32
    %516 = vector.broadcast %c1_i32_198 : i32 to vector<8x32xi32>
    %517 = arith.cmpi sge, %505, %516 : vector<8x32xi32>
    %cst_199 = arith.constant 0.000000e+00 : f32
    %518 = vector.broadcast %cst_199 : f32 to vector<8x32xf32>
    %519 = arith.select %517, %515, %518 : vector<8x32xi1>, vector<8x32xf32>
    %520 = tpu.concatenate %512, %519, %488 in 1 : vector<8x32xf32>, vector<8x32xf32>, vector<8x32xf32> -> vector<8x96xf32>
    %c2144 = arith.constant 2144 : index
    %c0_200 = arith.constant 0 : index
    %521 = vector.load %arg3[%c2144, %c0_200] : memref<2784x272xbf16, #tpu.memory_space<vmem>>, vector<96x32xbf16>
    %522 = arith.truncf %520 : vector<8x96xf32> to vector<8x96xbf16>
    %cst_201 = arith.constant dense<0.000000e+00> : vector<8x32xf32>
    %523 = tpu.matmul %522, %521, %cst_201 {dimension_numbers = #tpu.dot_dimension_numbers<[1], [0], [0], [1], [0, 0, 1, 1], [], []>} : vector<8x96xbf16>, vector<96x32xbf16>, vector<8x32xf32> -> vector<8x32xf32>
    %c19 = arith.constant 19 : index
    %c0_202 = arith.constant 0 : index
    %524 = vector.load %arg4[%c19, %c0_202] : memref<32x272xf32, #tpu.memory_space<vmem>>, vector<1x32xf32>
    %525 = vector.broadcast %524 : vector<1x32xf32> to vector<8x32xf32>
    %526 = arith.addf %523, %525 : vector<8x32xf32>
    %cst_203 = arith.constant 0.000000e+00 : f32
    %527 = vector.broadcast %cst_203 : f32 to vector<8x32xf32>
    %528 = arith.maximumf %526, %527 : vector<8x32xf32>
    %529 = tpu.iota {dimensions = array<i32: 0>} : vector<8x32xi32>
    %c4_i32_204 = arith.constant 4 : i32
    %c0_i32_205 = arith.constant 0 : i32
    %530 = arith.cmpi eq, %c4_i32_204, %c0_i32_205 : i32
    %c1_i32_206 = arith.constant 1 : i32
    %531 = arith.select %530, %c1_i32_206, %c4_i32_204 : i32
    %532 = vector.broadcast %531 : i32 to vector<8x32xi32>
    %533 = arith.remsi %529, %532 : vector<8x32xi32>
    %c0_i32_207 = arith.constant 0 : i32
    %534 = vector.broadcast %c0_i32_207 : i32 to vector<8x32xi32>
    %535 = arith.cmpi ne, %533, %534 : vector<8x32xi32>
    %c0_i32_208 = arith.constant 0 : i32
    %536 = vector.broadcast %c0_i32_208 : i32 to vector<8x32xi32>
    %537 = arith.cmpi slt, %533, %536 : vector<8x32xi32>
    %c0_i32_209 = arith.constant 0 : i32
    %538 = arith.cmpi slt, %531, %c0_i32_209 : i32
    %539 = vector.broadcast %538 : i1 to vector<8x32xi1>
    %540 = vector.broadcast %539 : vector<8x32xi1> to vector<8x32xi1>
    %541 = arith.xori %537, %540 : vector<8x32xi1>
    %542 = arith.andi %541, %535 : vector<8x32xi1>
    %543 = vector.broadcast %531 : i32 to vector<8x32xi32>
    %544 = arith.addi %533, %543 : vector<8x32xi32>
    %545 = arith.select %542, %544, %533 : vector<8x32xi1>, vector<8x32xi32>
    %cst_210 = arith.constant 0.000000e+00 : f32
    %546 = vector.broadcast %cst_210 : f32 to vector<2x32xf32>
    %547 = vector.extract_strided_slice %528 {offsets = [0, 0], sizes = [6, 32], strides = [1, 1]} : vector<8x32xf32> to vector<6x32xf32>
    %548 = tpu.concatenate %546, %547 in 0 : vector<2x32xf32>, vector<6x32xf32> -> vector<8x32xf32>
    %c2_i32_211 = arith.constant 2 : i32
    %549 = vector.broadcast %c2_i32_211 : i32 to vector<8x32xi32>
    %550 = arith.cmpi sge, %545, %549 : vector<8x32xi32>
    %cst_212 = arith.constant 0.000000e+00 : f32
    %551 = vector.broadcast %cst_212 : f32 to vector<8x32xf32>
    %552 = arith.select %550, %548, %551 : vector<8x32xi1>, vector<8x32xf32>
    %cst_213 = arith.constant 0.000000e+00 : f32
    %553 = vector.broadcast %cst_213 : f32 to vector<1x32xf32>
    %554 = vector.extract_strided_slice %528 {offsets = [0, 0], sizes = [7, 32], strides = [1, 1]} : vector<8x32xf32> to vector<7x32xf32>
    %555 = tpu.concatenate %553, %554 in 0 : vector<1x32xf32>, vector<7x32xf32> -> vector<8x32xf32>
    %c1_i32_214 = arith.constant 1 : i32
    %556 = vector.broadcast %c1_i32_214 : i32 to vector<8x32xi32>
    %557 = arith.cmpi sge, %545, %556 : vector<8x32xi32>
    %cst_215 = arith.constant 0.000000e+00 : f32
    %558 = vector.broadcast %cst_215 : f32 to vector<8x32xf32>
    %559 = arith.select %557, %555, %558 : vector<8x32xi1>, vector<8x32xf32>
    %560 = tpu.concatenate %552, %559, %528 in 1 : vector<8x32xf32>, vector<8x32xf32>, vector<8x32xf32> -> vector<8x96xf32>
    %c2240 = arith.constant 2240 : index
    %c0_216 = arith.constant 0 : index
    %561 = vector.load %arg3[%c2240, %c0_216] : memref<2784x272xbf16, #tpu.memory_space<vmem>>, vector<96x32xbf16>
    %562 = arith.truncf %560 : vector<8x96xf32> to vector<8x96xbf16>
    %cst_217 = arith.constant dense<0.000000e+00> : vector<8x32xf32>
    %563 = tpu.matmul %562, %561, %cst_217 {dimension_numbers = #tpu.dot_dimension_numbers<[1], [0], [0], [1], [0, 0, 1, 1], [], []>} : vector<8x96xbf16>, vector<96x32xbf16>, vector<8x32xf32> -> vector<8x32xf32>
    %c20 = arith.constant 20 : index
    %c0_218 = arith.constant 0 : index
    %564 = vector.load %arg4[%c20, %c0_218] : memref<32x272xf32, #tpu.memory_space<vmem>>, vector<1x32xf32>
    %565 = vector.broadcast %564 : vector<1x32xf32> to vector<8x32xf32>
    %566 = arith.addf %563, %565 : vector<8x32xf32>
    %cst_219 = arith.constant 0.000000e+00 : f32
    %567 = vector.broadcast %cst_219 : f32 to vector<8x32xf32>
    %568 = arith.maximumf %566, %567 : vector<8x32xf32>
    %c2336 = arith.constant 2336 : index
    %c0_220 = arith.constant 0 : index
    %569 = vector.load %arg3[%c2336, %c0_220] : memref<2784x272xbf16, #tpu.memory_space<vmem>>, vector<32x32xbf16>
    %570 = arith.truncf %568 : vector<8x32xf32> to vector<8x32xbf16>
    %cst_221 = arith.constant dense<0.000000e+00> : vector<8x32xf32>
    %571 = tpu.matmul %570, %569, %cst_221 {dimension_numbers = #tpu.dot_dimension_numbers<[1], [0], [0], [1], [0, 0, 1, 1], [], []>} : vector<8x32xbf16>, vector<32x32xbf16>, vector<8x32xf32> -> vector<8x32xf32>
    %c21 = arith.constant 21 : index
    %c0_222 = arith.constant 0 : index
    %572 = vector.load %arg4[%c21, %c0_222] : memref<32x272xf32, #tpu.memory_space<vmem>>, vector<1x32xf32>
    %573 = vector.broadcast %572 : vector<1x32xf32> to vector<8x32xf32>
    %574 = arith.addf %571, %573 : vector<8x32xf32>
    %575 = arith.addf %526, %574 : vector<8x32xf32>
    %cst_223 = arith.constant 0.000000e+00 : f32
    %576 = vector.broadcast %cst_223 : f32 to vector<8x32xf32>
    %577 = arith.maximumf %575, %576 : vector<8x32xf32>
    %578 = tpu.iota {dimensions = array<i32: 0>} : vector<8x32xi32>
    %c4_i32_224 = arith.constant 4 : i32
    %c0_i32_225 = arith.constant 0 : i32
    %579 = arith.cmpi eq, %c4_i32_224, %c0_i32_225 : i32
    %c1_i32_226 = arith.constant 1 : i32
    %580 = arith.select %579, %c1_i32_226, %c4_i32_224 : i32
    %581 = vector.broadcast %580 : i32 to vector<8x32xi32>
    %582 = arith.remsi %578, %581 : vector<8x32xi32>
    %c0_i32_227 = arith.constant 0 : i32
    %583 = vector.broadcast %c0_i32_227 : i32 to vector<8x32xi32>
    %584 = arith.cmpi ne, %582, %583 : vector<8x32xi32>
    %c0_i32_228 = arith.constant 0 : i32
    %585 = vector.broadcast %c0_i32_228 : i32 to vector<8x32xi32>
    %586 = arith.cmpi slt, %582, %585 : vector<8x32xi32>
    %c0_i32_229 = arith.constant 0 : i32
    %587 = arith.cmpi slt, %580, %c0_i32_229 : i32
    %588 = vector.broadcast %587 : i1 to vector<8x32xi1>
    %589 = vector.broadcast %588 : vector<8x32xi1> to vector<8x32xi1>
    %590 = arith.xori %586, %589 : vector<8x32xi1>
    %591 = arith.andi %590, %584 : vector<8x32xi1>
    %592 = vector.broadcast %580 : i32 to vector<8x32xi32>
    %593 = arith.addi %582, %592 : vector<8x32xi32>
    %594 = arith.select %591, %593, %582 : vector<8x32xi1>, vector<8x32xi32>
    %cst_230 = arith.constant 0.000000e+00 : f32
    %595 = vector.broadcast %cst_230 : f32 to vector<8x32xf32>
    %cst_231 = arith.constant 0.000000e+00 : f32
    %596 = vector.broadcast %cst_231 : f32 to vector<3x32xf32>
    %597 = vector.extract_strided_slice %577 {offsets = [0, 0], sizes = [5, 32], strides = [1, 1]} : vector<8x32xf32> to vector<5x32xf32>
    %598 = tpu.concatenate %596, %597 in 0 : vector<3x32xf32>, vector<5x32xf32> -> vector<8x32xf32>
    %c3_i32_232 = arith.constant 3 : i32
    %599 = vector.broadcast %c3_i32_232 : i32 to vector<8x32xi32>
    %600 = arith.cmpi sge, %594, %599 : vector<8x32xi32>
    %cst_233 = arith.constant 0.000000e+00 : f32
    %601 = vector.broadcast %cst_233 : f32 to vector<8x32xf32>
    %602 = arith.select %600, %598, %601 : vector<8x32xi1>, vector<8x32xf32>
    %603 = tpu.concatenate %595, %602, %577 in 1 : vector<8x32xf32>, vector<8x32xf32>, vector<8x32xf32> -> vector<8x96xf32>
    %c2368 = arith.constant 2368 : index
    %c0_234 = arith.constant 0 : index
    %604 = vector.load %arg3[%c2368, %c0_234] : memref<2784x272xbf16, #tpu.memory_space<vmem>>, vector<96x32xbf16>
    %605 = arith.truncf %603 : vector<8x96xf32> to vector<8x96xbf16>
    %cst_235 = arith.constant dense<0.000000e+00> : vector<8x32xf32>
    %606 = tpu.matmul %605, %604, %cst_235 {dimension_numbers = #tpu.dot_dimension_numbers<[1], [0], [0], [1], [0, 0, 1, 1], [], []>} : vector<8x96xbf16>, vector<96x32xbf16>, vector<8x32xf32> -> vector<8x32xf32>
    %c22 = arith.constant 22 : index
    %c0_236 = arith.constant 0 : index
    %607 = vector.load %arg4[%c22, %c0_236] : memref<32x272xf32, #tpu.memory_space<vmem>>, vector<1x32xf32>
    %608 = vector.broadcast %607 : vector<1x32xf32> to vector<8x32xf32>
    %609 = arith.addf %606, %608 : vector<8x32xf32>
    %cst_237 = arith.constant 0.000000e+00 : f32
    %610 = vector.broadcast %cst_237 : f32 to vector<8x32xf32>
    %611 = arith.maximumf %609, %610 : vector<8x32xf32>
    %c2464 = arith.constant 2464 : index
    %c0_238 = arith.constant 0 : index
    %612 = vector.load %arg3[%c2464, %c0_238] : memref<2784x272xbf16, #tpu.memory_space<vmem>>, vector<32x32xbf16>
    %613 = arith.truncf %611 : vector<8x32xf32> to vector<8x32xbf16>
    %cst_239 = arith.constant dense<0.000000e+00> : vector<8x32xf32>
    %614 = tpu.matmul %613, %612, %cst_239 {dimension_numbers = #tpu.dot_dimension_numbers<[1], [0], [0], [1], [0, 0, 1, 1], [], []>} : vector<8x32xbf16>, vector<32x32xbf16>, vector<8x32xf32> -> vector<8x32xf32>
    %c23 = arith.constant 23 : index
    %c0_240 = arith.constant 0 : index
    %615 = vector.load %arg4[%c23, %c0_240] : memref<32x272xf32, #tpu.memory_space<vmem>>, vector<1x32xf32>
    %616 = vector.broadcast %615 : vector<1x32xf32> to vector<8x32xf32>
    %617 = arith.addf %614, %616 : vector<8x32xf32>
    %618 = arith.addf %575, %617 : vector<8x32xf32>
    %619 = vector.shape_cast %618 : vector<8x32xf32> to vector<8x1x32xf32>
    %620 = vector.shape_cast %619 : vector<8x1x32xf32> to vector<8x1x32xf32>
    %621 = vector.broadcast %620 : vector<8x1x32xf32> to vector<8x2x32xf32>
    %622 = vector.shape_cast %621 : vector<8x2x32xf32> to vector<16x32xf32>
    %623 = tpu.iota {dimensions = array<i32: 0>} : vector<16x32xi32>
    %c8_i32_241 = arith.constant 8 : i32
    %c0_i32_242 = arith.constant 0 : i32
    %624 = arith.cmpi eq, %c8_i32_241, %c0_i32_242 : i32
    %c1_i32_243 = arith.constant 1 : i32
    %625 = arith.select %624, %c1_i32_243, %c8_i32_241 : i32
    %626 = vector.broadcast %625 : i32 to vector<16x32xi32>
    %627 = arith.remsi %623, %626 : vector<16x32xi32>
    %c0_i32_244 = arith.constant 0 : i32
    %628 = vector.broadcast %c0_i32_244 : i32 to vector<16x32xi32>
    %629 = arith.cmpi ne, %627, %628 : vector<16x32xi32>
    %c0_i32_245 = arith.constant 0 : i32
    %630 = vector.broadcast %c0_i32_245 : i32 to vector<16x32xi32>
    %631 = arith.cmpi slt, %627, %630 : vector<16x32xi32>
    %c0_i32_246 = arith.constant 0 : i32
    %632 = arith.cmpi slt, %625, %c0_i32_246 : i32
    %633 = vector.broadcast %632 : i1 to vector<16x32xi1>
    %634 = vector.broadcast %633 : vector<16x32xi1> to vector<16x32xi1>
    %635 = arith.xori %631, %634 : vector<16x32xi1>
    %636 = arith.andi %635, %629 : vector<16x32xi1>
    %637 = vector.broadcast %625 : i32 to vector<16x32xi32>
    %638 = arith.addi %627, %637 : vector<16x32xi32>
    %639 = arith.select %636, %638, %627 : vector<16x32xi1>, vector<16x32xi32>
    %cst_247 = arith.constant 0.000000e+00 : f32
    %640 = vector.broadcast %cst_247 : f32 to vector<2x32xf32>
    %641 = vector.extract_strided_slice %622 {offsets = [0, 0], sizes = [14, 32], strides = [1, 1]} : vector<16x32xf32> to vector<14x32xf32>
    %642 = tpu.concatenate %640, %641 in 0 : vector<2x32xf32>, vector<14x32xf32> -> vector<16x32xf32>
    %c2_i32_248 = arith.constant 2 : i32
    %643 = vector.broadcast %c2_i32_248 : i32 to vector<16x32xi32>
    %644 = arith.cmpi sge, %639, %643 : vector<16x32xi32>
    %cst_249 = arith.constant 0.000000e+00 : f32
    %645 = vector.broadcast %cst_249 : f32 to vector<16x32xf32>
    %646 = arith.select %644, %642, %645 : vector<16x32xi1>, vector<16x32xf32>
    %cst_250 = arith.constant 0.000000e+00 : f32
    %647 = vector.broadcast %cst_250 : f32 to vector<1x32xf32>
    %648 = vector.extract_strided_slice %622 {offsets = [0, 0], sizes = [15, 32], strides = [1, 1]} : vector<16x32xf32> to vector<15x32xf32>
    %649 = tpu.concatenate %647, %648 in 0 : vector<1x32xf32>, vector<15x32xf32> -> vector<16x32xf32>
    %c1_i32_251 = arith.constant 1 : i32
    %650 = vector.broadcast %c1_i32_251 : i32 to vector<16x32xi32>
    %651 = arith.cmpi sge, %639, %650 : vector<16x32xi32>
    %cst_252 = arith.constant 0.000000e+00 : f32
    %652 = vector.broadcast %cst_252 : f32 to vector<16x32xf32>
    %653 = arith.select %651, %649, %652 : vector<16x32xi1>, vector<16x32xf32>
    %654 = tpu.concatenate %646, %653, %622 in 1 : vector<16x32xf32>, vector<16x32xf32>, vector<16x32xf32> -> vector<16x96xf32>
    %c2496 = arith.constant 2496 : index
    %c0_253 = arith.constant 0 : index
    %655 = vector.load %arg3[%c2496, %c0_253] : memref<2784x272xbf16, #tpu.memory_space<vmem>>, vector<96x32xbf16>
    %656 = arith.truncf %654 : vector<16x96xf32> to vector<16x96xbf16>
    %cst_254 = arith.constant dense<0.000000e+00> : vector<16x32xf32>
    %657 = tpu.matmul %656, %655, %cst_254 {dimension_numbers = #tpu.dot_dimension_numbers<[1], [0], [0], [1], [0, 0, 1, 1], [], []>} : vector<16x96xbf16>, vector<96x32xbf16>, vector<16x32xf32> -> vector<16x32xf32>
    %c24 = arith.constant 24 : index
    %c0_255 = arith.constant 0 : index
    %658 = vector.load %arg4[%c24, %c0_255] : memref<32x272xf32, #tpu.memory_space<vmem>>, vector<1x32xf32>
    %659 = vector.broadcast %658 : vector<1x32xf32> to vector<16x32xf32>
    %660 = arith.addf %657, %659 : vector<16x32xf32>
    %661 = tpu.iota {dimensions = array<i32: 0>} : vector<16x32xi32>
    %c8_i32_256 = arith.constant 8 : i32
    %c0_i32_257 = arith.constant 0 : i32
    %662 = arith.cmpi eq, %c8_i32_256, %c0_i32_257 : i32
    %c1_i32_258 = arith.constant 1 : i32
    %663 = arith.select %662, %c1_i32_258, %c8_i32_256 : i32
    %664 = vector.broadcast %663 : i32 to vector<16x32xi32>
    %665 = arith.remsi %661, %664 : vector<16x32xi32>
    %c0_i32_259 = arith.constant 0 : i32
    %666 = vector.broadcast %c0_i32_259 : i32 to vector<16x32xi32>
    %667 = arith.cmpi ne, %665, %666 : vector<16x32xi32>
    %c0_i32_260 = arith.constant 0 : i32
    %668 = vector.broadcast %c0_i32_260 : i32 to vector<16x32xi32>
    %669 = arith.cmpi slt, %665, %668 : vector<16x32xi32>
    %c0_i32_261 = arith.constant 0 : i32
    %670 = arith.cmpi slt, %663, %c0_i32_261 : i32
    %671 = vector.broadcast %670 : i1 to vector<16x32xi1>
    %672 = vector.broadcast %671 : vector<16x32xi1> to vector<16x32xi1>
    %673 = arith.xori %669, %672 : vector<16x32xi1>
    %674 = arith.andi %673, %667 : vector<16x32xi1>
    %675 = vector.broadcast %663 : i32 to vector<16x32xi32>
    %676 = arith.addi %665, %675 : vector<16x32xi32>
    %677 = arith.select %674, %676, %665 : vector<16x32xi1>, vector<16x32xi32>
    %cst_262 = arith.constant 0.000000e+00 : f32
    %678 = vector.broadcast %cst_262 : f32 to vector<2x32xf32>
    %679 = vector.extract_strided_slice %660 {offsets = [0, 0], sizes = [14, 32], strides = [1, 1]} : vector<16x32xf32> to vector<14x32xf32>
    %680 = tpu.concatenate %678, %679 in 0 : vector<2x32xf32>, vector<14x32xf32> -> vector<16x32xf32>
    %c2_i32_263 = arith.constant 2 : i32
    %681 = vector.broadcast %c2_i32_263 : i32 to vector<16x32xi32>
    %682 = arith.cmpi sge, %677, %681 : vector<16x32xi32>
    %cst_264 = arith.constant 0.000000e+00 : f32
    %683 = vector.broadcast %cst_264 : f32 to vector<16x32xf32>
    %684 = arith.select %682, %680, %683 : vector<16x32xi1>, vector<16x32xf32>
    %cst_265 = arith.constant 0.000000e+00 : f32
    %685 = vector.broadcast %cst_265 : f32 to vector<1x32xf32>
    %686 = vector.extract_strided_slice %660 {offsets = [0, 0], sizes = [15, 32], strides = [1, 1]} : vector<16x32xf32> to vector<15x32xf32>
    %687 = tpu.concatenate %685, %686 in 0 : vector<1x32xf32>, vector<15x32xf32> -> vector<16x32xf32>
    %c1_i32_266 = arith.constant 1 : i32
    %688 = vector.broadcast %c1_i32_266 : i32 to vector<16x32xi32>
    %689 = arith.cmpi sge, %677, %688 : vector<16x32xi32>
    %cst_267 = arith.constant 0.000000e+00 : f32
    %690 = vector.broadcast %cst_267 : f32 to vector<16x32xf32>
    %691 = arith.select %689, %687, %690 : vector<16x32xi1>, vector<16x32xf32>
    %692 = tpu.concatenate %684, %691, %660 in 1 : vector<16x32xf32>, vector<16x32xf32>, vector<16x32xf32> -> vector<16x96xf32>
    %c2592 = arith.constant 2592 : index
    %c0_268 = arith.constant 0 : index
    %693 = vector.load %arg3[%c2592, %c0_268] : memref<2784x272xbf16, #tpu.memory_space<vmem>>, vector<96x32xbf16>
    %694 = arith.truncf %692 : vector<16x96xf32> to vector<16x96xbf16>
    %cst_269 = arith.constant dense<0.000000e+00> : vector<16x32xf32>
    %695 = tpu.matmul %694, %693, %cst_269 {dimension_numbers = #tpu.dot_dimension_numbers<[1], [0], [0], [1], [0, 0, 1, 1], [], []>} : vector<16x96xbf16>, vector<96x32xbf16>, vector<16x32xf32> -> vector<16x32xf32>
    %c25 = arith.constant 25 : index
    %c0_270 = arith.constant 0 : index
    %696 = vector.load %arg4[%c25, %c0_270] : memref<32x272xf32, #tpu.memory_space<vmem>>, vector<1x32xf32>
    %697 = vector.broadcast %696 : vector<1x32xf32> to vector<16x32xf32>
    %698 = arith.addf %695, %697 : vector<16x32xf32>
    %cst_271 = arith.constant 0.000000e+00 : f32
    %699 = vector.broadcast %cst_271 : f32 to vector<16x32xf32>
    %700 = arith.maximumf %698, %699 : vector<16x32xf32>
    %701 = tpu.iota {dimensions = array<i32: 0>} : vector<16x32xi32>
    %c8_i32_272 = arith.constant 8 : i32
    %c0_i32_273 = arith.constant 0 : i32
    %702 = arith.cmpi eq, %c8_i32_272, %c0_i32_273 : i32
    %c1_i32_274 = arith.constant 1 : i32
    %703 = arith.select %702, %c1_i32_274, %c8_i32_272 : i32
    %704 = vector.broadcast %703 : i32 to vector<16x32xi32>
    %705 = arith.remsi %701, %704 : vector<16x32xi32>
    %c0_i32_275 = arith.constant 0 : i32
    %706 = vector.broadcast %c0_i32_275 : i32 to vector<16x32xi32>
    %707 = arith.cmpi ne, %705, %706 : vector<16x32xi32>
    %c0_i32_276 = arith.constant 0 : i32
    %708 = vector.broadcast %c0_i32_276 : i32 to vector<16x32xi32>
    %709 = arith.cmpi slt, %705, %708 : vector<16x32xi32>
    %c0_i32_277 = arith.constant 0 : i32
    %710 = arith.cmpi slt, %703, %c0_i32_277 : i32
    %711 = vector.broadcast %710 : i1 to vector<16x32xi1>
    %712 = vector.broadcast %711 : vector<16x32xi1> to vector<16x32xi1>
    %713 = arith.xori %709, %712 : vector<16x32xi1>
    %714 = arith.andi %713, %707 : vector<16x32xi1>
    %715 = vector.broadcast %703 : i32 to vector<16x32xi32>
    %716 = arith.addi %705, %715 : vector<16x32xi32>
    %717 = arith.select %714, %716, %705 : vector<16x32xi1>, vector<16x32xi32>
    %cst_278 = arith.constant 0.000000e+00 : f32
    %718 = vector.broadcast %cst_278 : f32 to vector<2x32xf32>
    %719 = vector.extract_strided_slice %700 {offsets = [0, 0], sizes = [14, 32], strides = [1, 1]} : vector<16x32xf32> to vector<14x32xf32>
    %720 = tpu.concatenate %718, %719 in 0 : vector<2x32xf32>, vector<14x32xf32> -> vector<16x32xf32>
    %c2_i32_279 = arith.constant 2 : i32
    %721 = vector.broadcast %c2_i32_279 : i32 to vector<16x32xi32>
    %722 = arith.cmpi sge, %717, %721 : vector<16x32xi32>
    %cst_280 = arith.constant 0.000000e+00 : f32
    %723 = vector.broadcast %cst_280 : f32 to vector<16x32xf32>
    %724 = arith.select %722, %720, %723 : vector<16x32xi1>, vector<16x32xf32>
    %cst_281 = arith.constant 0.000000e+00 : f32
    %725 = vector.broadcast %cst_281 : f32 to vector<1x32xf32>
    %726 = vector.extract_strided_slice %700 {offsets = [0, 0], sizes = [15, 32], strides = [1, 1]} : vector<16x32xf32> to vector<15x32xf32>
    %727 = tpu.concatenate %725, %726 in 0 : vector<1x32xf32>, vector<15x32xf32> -> vector<16x32xf32>
    %c1_i32_282 = arith.constant 1 : i32
    %728 = vector.broadcast %c1_i32_282 : i32 to vector<16x32xi32>
    %729 = arith.cmpi sge, %717, %728 : vector<16x32xi32>
    %cst_283 = arith.constant 0.000000e+00 : f32
    %730 = vector.broadcast %cst_283 : f32 to vector<16x32xf32>
    %731 = arith.select %729, %727, %730 : vector<16x32xi1>, vector<16x32xf32>
    %732 = tpu.concatenate %724, %731, %700 in 1 : vector<16x32xf32>, vector<16x32xf32>, vector<16x32xf32> -> vector<16x96xf32>
    %c2688 = arith.constant 2688 : index
    %c0_284 = arith.constant 0 : index
    %733 = vector.load %arg3[%c2688, %c0_284] : memref<2784x272xbf16, #tpu.memory_space<vmem>>, vector<96x272xbf16>
    %734 = arith.truncf %732 : vector<16x96xf32> to vector<16x96xbf16>
    %cst_285 = arith.constant dense<0.000000e+00> : vector<16x272xf32>
    %735 = tpu.matmul %734, %733, %cst_285 {dimension_numbers = #tpu.dot_dimension_numbers<[1], [0], [0], [1], [0, 0, 1, 1], [], []>} : vector<16x96xbf16>, vector<96x272xbf16>, vector<16x272xf32> -> vector<16x272xf32>
    %c26 = arith.constant 26 : index
    %c0_286 = arith.constant 0 : index
    %736 = vector.load %arg4[%c26, %c0_286] : memref<32x272xf32, #tpu.memory_space<vmem>>, vector<1x272xf32>
    %737 = vector.broadcast %736 : vector<1x272xf32> to vector<16x272xf32>
    %738 = arith.addf %735, %737 : vector<16x272xf32>
    %c0_287 = arith.constant 0 : index
    %c0_288 = arith.constant 0 : index
    %739 = vector.load %arg5[%c0_287, %c0_288] : memref<16x272xf32, #tpu.memory_space<vmem>>, vector<16x272xf32>
    tpu.vector_store %arg5[%c0_287, %c0_288], %738 {strides = array<i32>} : memref<16x272xf32, #tpu.memory_space<vmem>>, vector<16x272xf32>,
    %c0_289 = arith.constant 0 : index
    %c0_290 = arith.constant 0 : index
    %740 = vector.load %arg6[%c0_289, %c0_290] : memref<4x32xf32, #tpu.memory_space<vmem>>, vector<4x32xf32>
    tpu.vector_store %arg6[%c0_289, %c0_290], %373 {strides = array<i32>} : memref<4x32xf32, #tpu.memory_space<vmem>>, vector<4x32xf32>,
    return
  }
  func.func @transform_0(%arg0: i32) -> (i32, i32) {
    %c0_i32 = arith.constant 0 : i32
    %c0_i32_0 = arith.constant 0 : i32
    return %arg0, %c0_i32 : i32, i32
  }
  func.func @transform_1(%arg0: i32) -> (i32, i32) {
    %c0_i32 = arith.constant 0 : i32
    %c0_i32_0 = arith.constant 0 : i32
    return %arg0, %c0_i32 : i32, i32
  }
  func.func @transform_2(%arg0: i32) -> (i32, i32) {
    %c0_i32 = arith.constant 0 : i32
    %c0_i32_0 = arith.constant 0 : i32
    %c0_i32_1 = arith.constant 0 : i32
    return %c0_i32, %c0_i32_0 : i32, i32
  }
  func.func @transform_3(%arg0: i32) -> (i32, i32) {
    %c0_i32 = arith.constant 0 : i32
    %c0_i32_0 = arith.constant 0 : i32
    %c0_i32_1 = arith.constant 0 : i32
    return %c0_i32, %c0_i32_0 : i32, i32
  }
  func.func @transform_4(%arg0: i32) -> (i32, i32) {
    %c0_i32 = arith.constant 0 : i32
    %c0_i32_0 = arith.constant 0 : i32
    return %arg0, %c0_i32 : i32, i32
  }
  func.func @transform_5(%arg0: i32) -> (i32, i32) {
    %c0_i32 = arith.constant 0 : i32
    %c0_i32_0 = arith.constant 0 : i32
    return %arg0, %c0_i32 : i32, i32
  }
}

</mosaic_0001>

<llo_original>
// kernel: tpu_custom_call.1
$region0: #{tpu_custom_call.1}
  #allocation0 [shape = 'u32[]', space=smem, size = 0x4, offset = 0x4, fixed_abs, tag = 'smem constant byte address 0x4 - core index']
  #allocation1 [shape = 'u32[144,128]{1,0:T(1,128)}', space=vmem, size = 0x12000, scoped, tag = 'internal scratch']
  %s0 = inlined_call_operand.vmem [shape: f32[16,272], index: 0, kind: input, shape index: {}]
  %s1 = inlined_call_operand.vmem [shape: f32[4,16], index: 1, kind: input, shape index: {}]
  %s2 = inlined_call_operand.vmem [shape: bf16[2784,272], index: 2, kind: input, shape index: {}]
  %s3 = inlined_call_operand.vmem [shape: f32[32,272], index: 3, kind: input, shape index: {}]
  %s4 = inlined_call_operand.hbm [shape: f32[16,272], index: 4, kind: output, shape index: {0}]
  %s5 = inlined_call_operand.hbm [shape: f32[4,32], index: 5, kind: output, shape index: {1}]
  %6 = xla_tuple %s4, %s5
  %s7 = sld [smem:[#allocation0]]
  $region34: #{tpu_custom_call.1} parent=0
    _
  %s9 = ssub.s32 1, %s7
  %s10 = scalar_select 0, %s9, %s7
  $region1: #{tpu_custom_call.1} parent=0
    #allocation2 [shape = 'u8[24576]{0}', space=vmem, size = 0x6000, scoped, tag = 'output window, operand 0, single buffered']
    #allocation3 [shape = 's32[1]{0}', space=sflag, size = 0x4, scoped, tag = 'scoped memory for tpu_custom_call.1']
    #allocation4 [shape = 'u8[2048]{0}', space=vmem, size = 0x800, scoped, tag = 'output window, operand 1, single buffered']
    #allocation5 [shape = 's32[1]{0}', space=sflag, size = 0x4, scoped, tag = 'scoped memory for tpu_custom_call.1']
    %11 = vsyncpa [#allocation3], 0
    %12 = vsyncpa [#allocation5], 0
    // Predicated region
    $region2: #{tpu_custom_call.1} parent=1 // pred_check
      _
    $region3: #{tpu_custom_call.1} parent=1 // pred_check_branch
      %14 = sbr.rel (0) target = $region5
    $region4: #{tpu_custom_call.1} parent=1 // pred_region
      _
    $region5: #{tpu_custom_call.1} parent=1 // pred_fallthru
      _
    // Predicated region
    $region6: #{tpu_custom_call.1} parent=1 // pred_check
      _
    $region7: #{tpu_custom_call.1} parent=1 // pred_check_branch
      %16 = sbr.rel (0) target = $region9
    $region8: #{tpu_custom_call.1} parent=1 // pred_region
      _
    $region9: #{tpu_custom_call.1} parent=1 // pred_fallthru
      _
    // Predicated region
    $region10: #{tpu_custom_call.1} parent=1 // pred_check
      _
    $region11: #{tpu_custom_call.1} parent=1 // pred_check_branch
      %18 = sbr.rel (0) target = $region13
    $region12: #{tpu_custom_call.1} parent=1 // pred_region
      _
    $region13: #{tpu_custom_call.1} parent=1 // pred_fallthru
      _
    // Predicated region
    $region14: #{tpu_custom_call.1} parent=1 // pred_check
      _
    $region15: #{tpu_custom_call.1} parent=1 // pred_check_branch
      %20 = sbr.rel (0) target = $region17
    $region16: #{tpu_custom_call.1} parent=1 // pred_region
      _
    $region17: #{tpu_custom_call.1} parent=1 // pred_fallthru
      _
    %v22 = vld [vmem:[%s0] sm:$0xff]
    %v23 = vld [vmem:[%s0 + $0x8] sm:$0xff]
    %v24 = vld [vmem:[%s0 + $0x10] sm:$0xff]
    %v25 = vld [vmem:[%s0 + $0x18] sm:$0xff]
    %v26 = vld [vmem:[%s0 + $0x20] sm:$0xff]
    %v27 = vld [vmem:[%s0 + $0x28] sm:$0xff]
    %v28 = vlaneseq
    %v29 = vshrl.u32 %v28, 7
    %v30 = vadd.s32 %v29, 8
    %vm31 = vcmp.lt.s32.totalorder %v29, 0
    %v32 = vsub.s32 0, %v29
    %v33 = vsel %vm31, %v32, %v29
    %v34 = vshrl.u32 %v33, 3
    %v35 = vand.u32 %v33, 7
    %v36 = vsub.s32 0, %v35
    %v37 = vsel %vm31, %v36, %v35
    %vm38 = vcmp.lt.s32.totalorder %v30, 0
    %v39 = vsub.s32 0, %v30
    %v40 = vsel %vm38, %v39, %v30
    %v41 = vshrl.u32 %v40, 3
    %v42 = vand.u32 %v40, 7
    %v43 = vsub.s32 0, %v42
    %v44 = vsel %vm38, %v43, %v42
    %vm45 = vcmp.ne.s32.totalorder %v37, 0
    %vm46 = vcmp.ne.s32.totalorder %v44, 0
    %vm47 = vcmp.lt.s32.totalorder %v37, 0
    %vm48 = vcmp.lt.s32.totalorder %v44, 0
    %vm49 = vmand %vm47, %vm45
    %vm50 = vmand %vm48, %vm46
    %v51 = vadd.s32 %v37, 8
    %v52 = vadd.s32 %v44, 8
    %v53 = vsel %vm49, %v51, %v37
    %v54 = vsel %vm50, %v52, %v44
    %vm61 = vcmask 1041408
    %v62 = vrot.slane %v22, 6
    %v63 = vrot.slane %v23, 6
    %v64 = vrot.slane %v24, 6
    %v65 = vrot.slane %v25, 6
    %v66 = vsel %vm61, %v62, %v65
    %v67 = vrot.slane %v26, 6
    %v68 = vsel %vm61, %v63, %v67
    %v69 = vrot.slane %v27, 6
    %v70 = vsel %vm61, %v64, %v69
    %v77 = vsel %vm61, 0.0, %v62
    %v78 = vsel %vm61, 0.0, %v63
    %v79 = vsel %vm61, 0.0, %v64
    %vm80 = vcmp.ge.s32.totalorder %v53, 2
    %vm81 = vcmp.ge.s32.totalorder %v54, 2
    %v82 = vsel %vm80, %v77, 0.0
    %v83 = vsel %vm80, %v78, 0.0
    %v84 = vsel %vm80, %v79, 0.0
    %v85 = vsel %vm81, %v66, 0.0
    %v86 = vsel %vm81, %v68, 0.0
    %v87 = vsel %vm81, %v70, 0.0
    %vm88 = vcmask 1040384
    %v89 = vrot.slane %v22, 7
    %v90 = vrot.slane %v23, 7
    %v91 = vrot.slane %v24, 7
    %v92 = vrot.slane %v25, 7
    %v93 = vsel %vm88, %v89, %v92
    %v94 = vrot.slane %v26, 7
    %v95 = vsel %vm88, %v90, %v94
    %v96 = vrot.slane %v27, 7
    %v97 = vsel %vm88, %v91, %v96
    %v104 = vsel %vm88, 0.0, %v89
    %v105 = vsel %vm88, 0.0, %v90
    %v106 = vsel %vm88, 0.0, %v91
    %vm107 = vcmp.ge.s32.totalorder %v53, 1
    %vm108 = vcmp.ge.s32.totalorder %v54, 1
    %v109 = vsel %vm107, %v104, 0.0
    %v110 = vsel %vm107, %v105, 0.0
    %v111 = vsel %vm107, %v106, 0.0
    %v112 = vsel %vm108, %v93, 0.0
    %v113 = vsel %vm108, %v95, 0.0
    %v114 = vsel %vm108, %v97, 0.0
    %121 = vrot.lane.b32.xlu0 %v109, 16
    %v122 = vpop.permute.xlu0 %121
    %123 = vrot.lane.b32.xlu0 %v110, 16
    %v124 = vpop.permute.xlu0 %123
    %125 = vrot.lane.b32.xlu0 %v111, 16
    %v126 = vpop.permute.xlu0 %125
    %127 = vrot.lane.b32.xlu0 %v112, 16
    %v128 = vpop.permute.xlu0 %127
    %129 = vrot.lane.b32.xlu0 %v113, 16
    %v130 = vpop.permute.xlu0 %129
    %131 = vrot.lane.b32.xlu0 %v114, 16
    %v132 = vpop.permute.xlu0 %131
    %vm133 = vcmask 130048
    %v134 = vsel %vm133, %v122, %v124
    %v135 = vsel %vm133, %v124, %v126
    %v136 = vsel %vm133, %v128, %v130
    %v137 = vsel %vm133, %v130, %v132
    %144 = vrot.lane.b32.xlu0 %v22, 32
    %v145 = vpop.permute.xlu0 %144
    %146 = vrot.lane.b32.xlu0 %v23, 32
    %v147 = vpop.permute.xlu0 %146
    %148 = vrot.lane.b32.xlu0 %v24, 32
    %v149 = vpop.permute.xlu0 %148
    %150 = vrot.lane.b32.xlu0 %v25, 32
    %v151 = vpop.permute.xlu0 %150
    %152 = vrot.lane.b32.xlu0 %v26, 32
    %v153 = vpop.permute.xlu0 %152
    %154 = vrot.lane.b32.xlu0 %v27, 32
    %v155 = vpop.permute.xlu0 %154
    %vm156 = vcmask 261120
    %v157 = vsel %vm156, %v145, %v147
    %v158 = vsel %vm156, %v147, %v149
    %v159 = vsel %vm156, %v151, %v153
    %v160 = vsel %vm156, %v153, %v155
    %v167 = vsel %vm133, %v84, %v122
    %v168 = vsel %vm133, %v87, %v128
    %v169 = vsel %vm156, %v135, %v145
    %v170 = vsel %vm156, %v137, %v151
    %v171 = vld [vmem:[%s2] sm:$0xf]
    %v172 = vld [vmem:[%s2 + $0xc] sm:$0xf]
    %v173 = vld [vmem:[%s2 + $0x18] sm:$0xf]
    %v174 = vld [vmem:[%s2 + $0x24] sm:$0xf]
    %v175 = vld [vmem:[%s2 + $0x30] sm:$0xf]
    %v176 = vld [vmem:[%s2 + $0x3c] sm:$0xf]
    %v177 = vld [vmem:[%s2 + $0x48] sm:$0xf]
    %v178 = vld [vmem:[%s2 + $0x54] sm:$0xf]
    %v179 = vld [vmem:[%s2 + $0x60] sm:$0xf]
    %v180 = vld [vmem:[%s2 + $0x6c] sm:$0xf]
    %v181 = vld [vmem:[%s2 + $0x78] sm:$0xf]
    %v182 = vld [vmem:[%s2 + $0x84] sm:$0xf]
    %v183 = vld [vmem:[%s2 + $0x90] sm:$0xf]
    %v184 = vld [vmem:[%s2 + $0x9c] sm:$0xf]
    %v185 = vld [vmem:[%s2 + $0xa8] sm:$0xf]
    %v186 = vld [vmem:[%s2 + $0xb4] sm:$0xf]
    %v187 = vld [vmem:[%s2 + $0xc0] sm:$0xf]
    %v188 = vld [vmem:[%s2 + $0xcc] sm:$0xf]
    %v189 = vld [vmem:[%s2 + $0xd8] sm:$0xf]
    %v190 = vld [vmem:[%s2 + $0xe4] sm:$0xf]
    %v191 = vld [vmem:[%s2 + $0xf0] sm:$0xf]
    %v192 = vld [vmem:[%s2 + $0xfc] sm:$0xf]
    %v193 = vld [vmem:[%s2 + $0x108] sm:$0xf]
    %v194 = vld [vmem:[%s2 + $0x114] sm:$0xf]
    %v195 = vld [vmem:[%s2 + $0x120] sm:$0xf]
    %v196 = vld [vmem:[%s2 + $0x12c] sm:$0xf]
    %v197 = vld [vmem:[%s2 + $0x138] sm:$0xf]
    %v198 = vld [vmem:[%s2 + $0x144] sm:$0xf]
    %v199 = vld [vmem:[%s2 + $0x150] sm:$0xf]
    %v200 = vld [vmem:[%s2 + $0x15c] sm:$0xf]
    %v201 = vld [vmem:[%s2 + $0x168] sm:$0xf]
    %v202 = vld [vmem:[%s2 + $0x174] sm:$0xf]
    %v203 = vld [vmem:[%s2 + $0x180] sm:$0xf]
    %v204 = vld [vmem:[%s2 + $0x18c] sm:$0xf]
    %v205 = vld [vmem:[%s2 + $0x198] sm:$0xf]
    %v206 = vld [vmem:[%s2 + $0x1a4] sm:$0xf]
    %v207 = vld [vmem:[%s2 + $0x1b0] sm:$0xf]
    %v208 = vld [vmem:[%s2 + $0x1bc] sm:$0xf]
    %v209 = vld [vmem:[%s2 + $0x1c8] sm:$0xf]
    %v210 = vld [vmem:[%s2 + $0x1d4] sm:$0xf]
    %v211 = vld [vmem:[%s2 + $0x1e0] sm:$0xf]
    %v212 = vld [vmem:[%s2 + $0x1ec] sm:$0xf]
    %v213 = vld [vmem:[%s2 + $0x1f8] sm:$0xf]
    %v214 = vld [vmem:[%s2 + $0x204] sm:$0xf]
    %v215 = vld [vmem:[%s2 + $0x210] sm:$0xf]
    %v216 = vld [vmem:[%s2 + $0x21c] sm:$0xf]
    %v217 = vld [vmem:[%s2 + $0x228] sm:$0xf]
    %v218 = vld [vmem:[%s2 + $0x234] sm:$0xf]
    %v219 = vld [vmem:[%s2 + $0x240] sm:$0xf]
    %v220 = vld [vmem:[%s2 + $0x24c] sm:$0xf]
    %v221 = vld [vmem:[%s2 + $0x258] sm:$0xf]
    %v222 = vld [vmem:[%s2 + $0x264] sm:$0xf]
    %v223 = vld [vmem:[%s2 + $0x270] sm:$0xf]
    %v224 = vld [vmem:[%s2 + $0x27c] sm:$0xf]
    %v225 = vld [vmem:[%s2 + $0x288] sm:$0xf]
    %v226 = vld [vmem:[%s2 + $0x294] sm:$0xf]
    %v227 = vld [vmem:[%s2 + $0x2a0] sm:$0xf]
    %v228 = vld [vmem:[%s2 + $0x2ac] sm:$0xf]
    %v229 = vld [vmem:[%s2 + $0x2b8] sm:$0xf]
    %v230 = vld [vmem:[%s2 + $0x2c4] sm:$0xf]
    %v231 = vld [vmem:[%s2 + $0x2d0] sm:$0xf]
    %v232 = vld [vmem:[%s2 + $0x2dc] sm:$0xf]
    %v233 = vld [vmem:[%s2 + $0x2e8] sm:$0xf]
    %v234 = vld [vmem:[%s2 + $0x2f4] sm:$0xf]
    %v235 = vld [vmem:[%s2 + $0x300] sm:$0xf]
    %v236 = vld [vmem:[%s2 + $0x30c] sm:$0xf]
    %v237 = vld [vmem:[%s2 + $0x318] sm:$0xf]
    %v238 = vld [vmem:[%s2 + $0x324] sm:$0xf]
    %v239 = vld [vmem:[%s2 + $0x330] sm:$0xf]
    %v240 = vld [vmem:[%s2 + $0x33c] sm:$0xf]
    %v241 = vld [vmem:[%s2 + $0x348] sm:$0xf]
    %v242 = vld [vmem:[%s2 + $0x354] sm:$0xf]
    %v243 = vld [vmem:[%s2 + $0x360] sm:$0xf]
    %v244 = vld [vmem:[%s2 + $0x36c] sm:$0xf]
    %v245 = vld [vmem:[%s2 + $0x378] sm:$0xf]
    %v246 = vld [vmem:[%s2 + $0x384] sm:$0xf]
    %v247 = vld [vmem:[%s2 + $0x390] sm:$0xf]
    %v248 = vld [vmem:[%s2 + $0x39c] sm:$0xf]
    %v249 = vld [vmem:[%s2 + $0x3a8] sm:$0xf]
    %v250 = vld [vmem:[%s2 + $0x3b4] sm:$0xf]
    %v251 = vld [vmem:[%s2 + $0x3c0] sm:$0xf]
    %v252 = vld [vmem:[%s2 + $0x3cc] sm:$0xf]
    %v253 = vld [vmem:[%s2 + $0x3d8] sm:$0xf]
    %v254 = vld [vmem:[%s2 + $0x3e4] sm:$0xf]
    %v255 = vld [vmem:[%s2 + $0x3f0] sm:$0xf]
    %v256 = vld [vmem:[%s2 + $0x3fc] sm:$0xf]
    %v257 = vld [vmem:[%s2 + $0x408] sm:$0xf]
    %v258 = vld [vmem:[%s2 + $0x414] sm:$0xf]
    %v259 = vld [vmem:[%s2 + $0x420] sm:$0xf]
    %v260 = vld [vmem:[%s2 + $0x42c] sm:$0xf]
    %v261 = vld [vmem:[%s2 + $0x438] sm:$0xf]
    %v262 = vld [vmem:[%s2 + $0x444] sm:$0xf]
    %v263 = vld [vmem:[%s2 + $0x450] sm:$0xf]
    %v264 = vld [vmem:[%s2 + $0x45c] sm:$0xf]
    %v265 = vld [vmem:[%s2 + $0x468] sm:$0xf]
    %v266 = vld [vmem:[%s2 + $0x474] sm:$0xf]
    %v267 = vld [vmem:[%s2 + $0x480] sm:$0xf]
    %v268 = vld [vmem:[%s2 + $0x48c] sm:$0xf]
    %v269 = vld [vmem:[%s2 + $0x498] sm:$0xf]
    %v270 = vld [vmem:[%s2 + $0x4a4] sm:$0xf]
    %v271 = vld [vmem:[%s2 + $0x4b0] sm:$0xf]
    %v272 = vld [vmem:[%s2 + $0x4bc] sm:$0xf]
    %v273 = vpack.c.bf16 %v85, %v82
    %v274 = vpack.c.bf16 %v86, %v83
    %v275 = vpack.c.bf16 %v168, %v167
    %v276 = vpack.c.bf16 %v136, %v134
    %v277 = vpack.c.bf16 %v170, %v169
    %v278 = vpack.c.bf16 %v159, %v157
    %v279 = vpack.c.bf16 %v160, %v158
    %v280 = vld [vmem:[%s3] ss:$0 sm:$0xff]
    %v383 = vunpack.c.l.b16 %v171
    %v384 = vunpack.c.l.b16 %v172
    %v385 = vunpack.c.l.b16 %v173
    %v386 = vunpack.c.l.b16 %v174
    %v387 = vunpack.c.l.b16 %v175
    %v388 = vunpack.c.l.b16 %v176
    %v389 = vunpack.c.l.b16 %v177
    %v390 = vunpack.c.l.b16 %v178
    %v391 = vunpack.c.l.b16 %v179
    %v392 = vunpack.c.l.b16 %v180
    %v393 = vunpack.c.l.b16 %v181
    %v394 = vunpack.c.l.b16 %v182
    %v395 = vunpack.c.l.b16 %v183
    %v396 = vunpack.c.l.b16 %v184
    %v397 = vunpack.c.l.b16 %v185
    %v398 = vunpack.c.l.b16 %v186
    %v399 = vunpack.c.l.b16 %v187
    %v400 = vunpack.c.l.b16 %v188
    %v401 = vunpack.c.l.b16 %v189
    %v402 = vunpack.c.l.b16 %v190
    %v403 = vunpack.c.l.b16 %v191
    %v404 = vunpack.c.l.b16 %v192
    %v405 = vunpack.c.l.b16 %v193
    %v406 = vunpack.c.l.b16 %v194
    %v407 = vunpack.c.l.b16 %v195
    %v408 = vunpack.c.l.b16 %v196
    %v409 = vunpack.c.l.b16 %v197
    %v410 = vunpack.c.l.b16 %v198
    %v411 = vunpack.c.l.b16 %v199
    %v412 = vunpack.c.l.b16 %v200
    %v413 = vunpack.c.l.b16 %v201
    %v414 = vunpack.c.l.b16 %v202
    %v415 = vunpack.c.l.b16 %v203
    %v416 = vunpack.c.l.b16 %v204
    %v417 = vunpack.c.l.b16 %v205
    %v418 = vunpack.c.l.b16 %v206
    %v419 = vunpack.c.l.b16 %v207
    %v420 = vunpack.c.l.b16 %v208
    %v421 = vunpack.c.l.b16 %v209
    %v422 = vunpack.c.l.b16 %v210
    %v423 = vunpack.c.l.b16 %v211
    %v424 = vunpack.c.l.b16 %v212
    %v425 = vunpack.c.l.b16 %v213
    %v426 = vunpack.c.l.b16 %v214
    %v427 = vunpack.c.l.b16 %v215
    %v428 = vunpack.c.l.b16 %v216
    %v429 = vunpack.c.l.b16 %v217
    %v430 = vunpack.c.l.b16 %v218
    %v431 = vunpack.c.l.b16 %v219
    %v432 = vunpack.c.l.b16 %v220
    %v433 = vunpack.c.l.b16 %v221
    %v434 = vunpack.c.l.b16 %v222
    %v435 = vunpack.c.l.b16 %v223
    %v436 = vunpack.c.l.b16 %v224
    %v437 = vunpack.c.l.b16 %v225
    %v438 = vunpack.c.l.b16 %v226
    %v439 = vunpack.c.l.b16 %v227
    %v440 = vunpack.c.l.b16 %v228
    %v441 = vunpack.c.l.b16 %v229
    %v442 = vunpack.c.l.b16 %v230
    %v443 = vunpack.c.l.b16 %v231
    %v444 = vunpack.c.l.b16 %v232
    %v445 = vunpack.c.l.b16 %v233
    %v446 = vunpack.c.l.b16 %v234
    %v447 = vunpack.c.l.b16 %v235
    %v448 = vunpack.c.l.b16 %v236
    %v449 = vunpack.c.l.b16 %v237
    %v450 = vunpack.c.l.b16 %v238
    %v451 = vunpack.c.l.b16 %v239
    %v452 = vunpack.c.l.b16 %v240
    %v453 = vunpack.c.l.b16 %v241
    %v454 = vunpack.c.l.b16 %v242
    %v455 = vunpack.c.l.b16 %v243
    %v456 = vunpack.c.l.b16 %v244
    %v457 = vunpack.c.l.b16 %v245
    %v458 = vunpack.c.l.b16 %v246
    %v459 = vunpack.c.l.b16 %v247
    %v460 = vunpack.c.l.b16 %v248
    %v461 = vunpack.c.l.b16 %v249
    %v462 = vunpack.c.l.b16 %v250
    %v463 = vunpack.c.l.b16 %v251
    %v464 = vunpack.c.l.b16 %v252
    %v465 = vunpack.c.l.b16 %v253
    %v466 = vunpack.c.l.b16 %v254
    %v467 = vunpack.c.l.b16 %v255
    %v468 = vunpack.c.l.b16 %v256
    %v469 = vunpack.c.l.b16 %v257
    %v470 = vunpack.c.l.b16 %v258
    %v471 = vunpack.c.l.b16 %v259
    %v472 = vunpack.c.l.b16 %v260
    %v473 = vunpack.c.l.b16 %v261
    %v474 = vunpack.c.l.b16 %v262
    %v475 = vunpack.c.l.b16 %v263
    %v476 = vunpack.c.l.b16 %v264
    %v477 = vunpack.c.l.b16 %v265
    %v478 = vunpack.c.l.b16 %v266
    %v479 = vunpack.c.l.b16 %v267
    %v480 = vunpack.c.l.b16 %v268
    %v481 = vunpack.c.l.b16 %v269
    %v482 = vunpack.c.l.b16 %v270
    %v483 = vunpack.c.l.b16 %v271
    %v484 = vunpack.c.l.b16 %v272
    %v485 = vpack.c.b16 %v384, %v383
    %v486 = vpack.c.b16 %v386, %v385
    %v487 = vpack.c.b16 %v388, %v387
    %v488 = vpack.c.b16 %v390, %v389
    %v489 = vpack.c.b16 %v392, %v391
    %v490 = vpack.c.b16 %v394, %v393
    %v491 = vpack.c.b16 %v396, %v395
    %v492 = vpack.c.b16 %v398, %v397
    %v493 = vpack.c.b16 %v400, %v399
    %v494 = vpack.c.b16 %v402, %v401
    %v495 = vpack.c.b16 %v404, %v403
    %v496 = vpack.c.b16 %v406, %v405
    %v497 = vpack.c.b16 %v408, %v407
    %v498 = vpack.c.b16 %v410, %v409
    %v499 = vpack.c.b16 %v412, %v411
    %v500 = vpack.c.b16 %v414, %v413
    %v501 = vpack.c.b16 %v416, %v415
    %v502 = vpack.c.b16 %v418, %v417
    %v503 = vpack.c.b16 %v420, %v419
    %v504 = vpack.c.b16 %v422, %v421
    %v505 = vpack.c.b16 %v424, %v423
    %v506 = vpack.c.b16 %v426, %v425
    %v507 = vpack.c.b16 %v428, %v427
    %v508 = vpack.c.b16 %v430, %v429
    %v509 = vpack.c.b16 %v432, %v431
    %v510 = vpack.c.b16 %v434, %v433
    %v511 = vpack.c.b16 %v436, %v435
    %v512 = vpack.c.b16 %v438, %v437
    %v513 = vpack.c.b16 %v440, %v439
    %v514 = vpack.c.b16 %v442, %v441
    %v515 = vpack.c.b16 %v444, %v443
    %v516 = vpack.c.b16 %v446, %v445
    %v517 = vpack.c.b16 %v448, %v447
    %v518 = vpack.c.b16 %v450, %v449
    %v519 = vpack.c.b16 %v452, %v451
    %v520 = vpack.c.b16 %v454, %v453
    %v521 = vpack.c.b16 %v456, %v455
    %v522 = vpack.c.b16 %v458, %v457
    %v523 = vpack.c.b16 %v460, %v459
    %v524 = vpack.c.b16 %v462, %v461
    %v525 = vpack.c.b16 %v464, %v463
    %v526 = vpack.c.b16 %v466, %v465
    %v527 = vpack.c.b16 %v468, %v467
    %v528 = vpack.c.b16 %v470, %v469
    %v529 = vpack.c.b16 %v472, %v471
    %v530 = vpack.c.b16 %v474, %v473
    %v531 = vpack.c.b16 %v476, %v475
    %v532 = vpack.c.b16 %v478, %v477
    %v533 = vpack.c.b16 %v480, %v479
    %v534 = vpack.c.b16 %v482, %v481
    %v535 = vpack.c.b16 %v484, %v483
    %vm587 = vcmask 392192
    %v589 = vsel %vm587, %v279, 0
    %591 = vmatprep.subr.bf16.mxu0 0
    %592 = vmatpush1.bf16.msra.mxu0 %v485
    %593 = vmatprep.subr.bf16.mxu0 0
    %594 = vmatpush1.bf16.msra.mxu0 %v486
    %595 = vmatprep.subr.bf16.mxu0 0
    %596 = vmatpush1.bf16.msra.mxu0 %v487
    %597 = vmatprep.subr.bf16.mxu0 0
    %598 = vmatpush1.bf16.msra.mxu0 %v488
    %599 = vmatprep.subr.bf16.mxu0 0
    %600 = vmatpush1.bf16.msra.mxu0 %v489
    %601 = vmatprep.subr.bf16.mxu0 0
    %602 = vmatpush1.bf16.msra.mxu0 %v490
    %603 = vmatprep.subr.bf16.mxu0 0
    %604 = vmatpush1.bf16.msra.mxu0 %v491
    %605 = vmatprep.subr.bf16.mxu0 0
    %606 = vmatpush1.bf16.msra.mxu0 %v492
    %607 = vmatprep.subr.bf16.mxu0 0
    %608 = vmatpush1.bf16.msra.mxu0 %v493
    %609 = vmatprep.subr.bf16.mxu0 0
    %610 = vmatpush1.bf16.msra.mxu0 %v494
    %611 = vmatprep.subr.bf16.mxu0 0
    %612 = vmatpush1.bf16.msra.mxu0 %v495
    %613 = vmatprep.subr.bf16.mxu0 0
    %614 = vmatpush1.bf16.msra.mxu0 %v496
    %615 = vmatprep.subr.bf16.mxu0 0
    %616 = vmatpush1.bf16.msra.mxu0 %v497
    %617 = vmatprep.subr.bf16.mxu0 0
    %618 = vmatpush1.bf16.msra.mxu0 %v498
    %619 = vmatprep.subr.bf16.mxu0 0
    %620 = vmatpush1.bf16.msra.mxu0 %v499
    %621 = vmatprep.subr.bf16.mxu0 0
    %622 = vmatpush1.bf16.msra.mxu0 %v500
    %623 = vmatprep.mubr.bf16.mxu0 %v274
    %624 = vmatmul.mubr.bf16.gmra.mrb[0].mxu0 %v273
    %v625 = vpop.f32.mrb[0].mxu0
    %v626 = vadd.f32 %v280, %v625
    %v627 = vpop.f32.mrb[0].mxu0
    %v628 = vpop.f32.mrb[0].mxu0
    %v629 = vadd.f32 %v280, %v628
    %v630 = vpop.f32.mrb[0].mxu0
    %631 = vdwg.mxu0
    %632 = vmatprep.subr.bf16.mxu0 0
    %633 = vmatpush1.bf16.msra.mxu0 %v501
    %634 = vmatprep.subr.bf16.mxu0 0
    %635 = vmatpush1.bf16.msra.mxu0 %v502
    %636 = vmatprep.subr.bf16.mxu0 0
    %637 = vmatpush1.bf16.msra.mxu0 %v503
    %638 = vmatprep.subr.bf16.mxu0 0
    %639 = vmatpush1.bf16.msra.mxu0 %v504
    %640 = vmatprep.subr.bf16.mxu0 0
    %641 = vmatpush1.bf16.msra.mxu0 %v505
    %642 = vmatprep.subr.bf16.mxu0 0
    %643 = vmatpush1.bf16.msra.mxu0 %v506
    %644 = vmatprep.subr.bf16.mxu0 0
    %645 = vmatpush1.bf16.msra.mxu0 %v507
    %646 = vmatprep.subr.bf16.mxu0 0
    %647 = vmatpush1.bf16.msra.mxu0 %v508
    %648 = vmatprep.subr.bf16.mxu0 0
    %649 = vmatpush1.bf16.msra.mxu0 %v509
    %650 = vmatprep.subr.bf16.mxu0 0
    %651 = vmatpush1.bf16.msra.mxu0 %v510
    %652 = vmatprep.subr.bf16.mxu0 0
    %653 = vmatpush1.bf16.msra.mxu0 %v511
    %654 = vmatprep.subr.bf16.mxu0 0
    %655 = vmatpush1.bf16.msra.mxu0 %v512
    %656 = vmatprep.subr.bf16.mxu0 0
    %657 = vmatpush1.bf16.msra.mxu0 %v513
    %658 = vmatprep.subr.bf16.mxu0 0
    %659 = vmatpush1.bf16.msra.mxu0 %v514
    %660 = vmatprep.subr.bf16.mxu0 0
    %661 = vmatpush1.bf16.msra.mxu0 %v515
    %662 = vmatprep.subr.bf16.mxu0 0
    %663 = vmatpush1.bf16.msra.mxu0 %v516
    %664 = vmatprep.mubr.bf16.mxu0 %v276
    %665 = vmatmul.mubr.bf16.gmra.mrb[0].mxu0 %v275
    %v666 = vpop.f32.mrb[0].mxu0
    %v667 = vadd.f32 %v626, %v666
    %v668 = vpop.f32.mrb[0].mxu0
    %v669 = vpop.f32.mrb[0].mxu0
    %v670 = vadd.f32 %v629, %v669
    %v671 = vpop.f32.mrb[0].mxu0
    %672 = vdwg.mxu0
    %673 = vmatprep.subr.bf16.mxu0 0
    %674 = vmatpush1.bf16.msra.mxu0 %v517
    %675 = vmatprep.subr.bf16.mxu0 0
    %676 = vmatpush1.bf16.msra.mxu0 %v518
    %677 = vmatprep.subr.bf16.mxu0 0
    %678 = vmatpush1.bf16.msra.mxu0 %v519
    %679 = vmatprep.subr.bf16.mxu0 0
    %680 = vmatpush1.bf16.msra.mxu0 %v520
    %681 = vmatprep.subr.bf16.mxu0 0
    %682 = vmatpush1.bf16.msra.mxu0 %v521
    %683 = vmatprep.subr.bf16.mxu0 0
    %684 = vmatpush1.bf16.msra.mxu0 %v522
    %685 = vmatprep.subr.bf16.mxu0 0
    %686 = vmatpush1.bf16.msra.mxu0 %v523
    %687 = vmatprep.subr.bf16.mxu0 0
    %688 = vmatpush1.bf16.msra.mxu0 %v524
    %689 = vmatprep.subr.bf16.mxu0 0
    %690 = vmatpush1.bf16.msra.mxu0 %v525
    %691 = vmatprep.subr.bf16.mxu0 0
    %692 = vmatpush1.bf16.msra.mxu0 %v526
    %693 = vmatprep.subr.bf16.mxu0 0
    %694 = vmatpush1.bf16.msra.mxu0 %v527
    %695 = vmatprep.subr.bf16.mxu0 0
    %696 = vmatpush1.bf16.msra.mxu0 %v528
    %697 = vmatprep.subr.bf16.mxu0 0
    %698 = vmatpush1.bf16.msra.mxu0 %v529
    %699 = vmatprep.subr.bf16.mxu0 0
    %700 = vmatpush1.bf16.msra.mxu0 %v530
    %701 = vmatprep.subr.bf16.mxu0 0
    %702 = vmatpush1.bf16.msra.mxu0 %v531
    %703 = vmatprep.subr.bf16.mxu0 0
    %704 = vmatpush1.bf16.msra.mxu0 %v532
    %705 = vmatprep.mubr.bf16.mxu0 %v278
    %706 = vmatmul.mubr.bf16.gmra.mrb[0].mxu0 %v277
    %v707 = vpop.f32.mrb[0].mxu0
    %v708 = vadd.f32 %v667, %v707
    %v709 = vpop.f32.mrb[0].mxu0
    %v710 = vpop.f32.mrb[0].mxu0
    %v711 = vadd.f32 %v670, %v710
    %v712 = vpop.f32.mrb[0].mxu0
    %713 = vdwg.mxu0
    %714 = vmatprep.subr.bf16.mxu0 0
    %715 = vmatpush1.bf16.msra.mxu0 %v533
    %716 = vmatprep.subr.bf16.mxu0 0
    %717 = vmatpush1.bf16.msra.mxu0 %v534
    %718 = vmatprep.subr.bf16.mxu0 0
    %719 = vmatpush1.bf16.msra.mxu0 %v535
    %720 = vmatprep.subr.bf16.mxu0 0
    %721 = vmatpush1.bf16.msra.mxu0 0
    %722 = vmatprep.subr.bf16.mxu0 0
    %723 = vmatpush1.bf16.msra.mxu0 0
    %724 = vmatprep.subr.bf16.mxu0 0
    %725 = vmatpush1.bf16.msra.mxu0 0
    %726 = vmatprep.subr.bf16.mxu0 0
    %727 = vmatpush1.bf16.msra.mxu0 0
    %728 = vmatprep.subr.bf16.mxu0 0
    %729 = vmatpush1.bf16.msra.mxu0 0
    %730 = vmatprep.subr.bf16.mxu0 0
    %731 = vmatpush1.bf16.msra.mxu0 0
    %732 = vmatprep.subr.bf16.mxu0 0
    %733 = vmatpush1.bf16.msra.mxu0 0
    %734 = vmatprep.subr.bf16.mxu0 0
    %735 = vmatpush1.bf16.msra.mxu0 0
    %736 = vmatprep.subr.bf16.mxu0 0
    %737 = vmatpush1.bf16.msra.mxu0 0
    %738 = vmatprep.subr.bf16.mxu0 0
    %739 = vmatpush1.bf16.msra.mxu0 0
    %740 = vmatprep.subr.bf16.mxu0 0
    %741 = vmatpush1.bf16.msra.mxu0 0
    %742 = vmatprep.subr.bf16.mxu0 0
    %743 = vmatpush1.bf16.msra.mxu0 0
    %744 = vmatprep.subr.bf16.mxu0 0
    %745 = vmatpush1.bf16.msra.mxu0 0
    %746 = vmatprep.mubr.bf16.mxu0 0
    %747 = vmatmul.mubr.bf16.gmra.mrb[0].mxu0 %v589
    %v748 = vpop.f32.mrb[0].mxu0
    %v749 = vadd.f32 %v708, %v748
    %v750 = vpop.f32.mrb[0].mxu0
    %v751 = vpop.f32.mrb[0].mxu0
    %v752 = vadd.f32 %v711, %v751
    %v753 = vpop.f32.mrb[0].mxu0
    %754 = vdwg.mxu0
    %v755 = vmax.f32 %v749, 0.0
    %v756 = vmax.f32 %v752, 0.0
    %vm759 = vcmask 1042432
    %v760 = vrot.slane %v755, 5
    %v761 = vrot.slane %v756, 5
    %v762 = vsel %vm759, %v760, %v761
    %v765 = vsel %vm759, 0.0, %v760
    %vm766 = vcmp.ge.s32.totalorder %v53, 3
    %vm767 = vcmp.ge.s32.totalorder %v54, 3
    %v768 = vsel %vm766, %v765, 0.0
    %v769 = vsel %vm767, %v762, 0.0
    %v772 = vcombine.high %v768, %v768
    %v774 = vunpack.c.l.s4 1983009808
    %v775 = vunpack.c.0.s8 %v774
    %v776 = vlaneseq
    %v777 = vshrl.u32 %v776, 7
    %v778 = vsub.s32 %v775, %v777
    %v779 = vrot.slane %v768, %v778
    %v781 = vunpack.c.l.s4 1983009808
    %v782 = vunpack.c.0.s8 %v781
    %v783 = vlaneseq
    %v784 = vshrl.u32 %v783, 7
    %v785 = vsub.s32 %v782, %v784
    %v786 = vrot.slane %v772, %v785
    %v787 = vcombine.high %v779, %v779
    %v788 = vcombine.high %v786, %v786
    %v789 = vcombine.high %v769, %v769
    %v791 = vunpack.c.l.s4 1983009808
    %v792 = vunpack.c.0.s8 %v791
    %v793 = vlaneseq
    %v794 = vshrl.u32 %v793, 7
    %v795 = vsub.s32 %v792, %v794
    %v796 = vrot.slane %v769, %v795
    %v798 = vunpack.c.l.s4 1983009808
    %v799 = vunpack.c.0.s8 %v798
    %v800 = vlaneseq
    %v801 = vshrl.u32 %v800, 7
    %v802 = vsub.s32 %v799, %v801
    %v803 = vrot.slane %v789, %v802
    %v804 = vcombine.high %v796, %v796
    %v805 = vcombine.high %v803, %v803
    %v806 = vrot.slane %v755, 6
    %v807 = vrot.slane %v756, 6
    %v808 = vsel %vm61, %v806, %v807
    %v811 = vsel %vm61, 0.0, %v806
    %v812 = vsel %vm80, %v811, 0.0
    %v813 = vsel %vm81, %v808, 0.0
    %v816 = vcombine.high %v812, %v812
    %v818 = vunpack.c.l.s4 1983009808
    %v819 = vunpack.c.0.s8 %v818
    %v820 = vlaneseq
    %v821 = vshrl.u32 %v820, 7
    %v822 = vsub.s32 %v819, %v821
    %v823 = vrot.slane %v812, %v822
    %v825 = vunpack.c.l.s4 1983009808
    %v826 = vunpack.c.0.s8 %v825
    %v827 = vlaneseq
    %v828 = vshrl.u32 %v827, 7
    %v829 = vsub.s32 %v826, %v828
    %v830 = vrot.slane %v816, %v829
    %v831 = vcombine.high %v823, %v823
    %v832 = vcombine.high %v830, %v830
    %v833 = vcombine.high %v813, %v813
    %v835 = vunpack.c.l.s4 1983009808
    %v836 = vunpack.c.0.s8 %v835
    %v837 = vlaneseq
    %v838 = vshrl.u32 %v837, 7
    %v839 = vsub.s32 %v836, %v838
    %v840 = vrot.slane %v813, %v839
    %v842 = vunpack.c.l.s4 1983009808
    %v843 = vunpack.c.0.s8 %v842
    %v844 = vlaneseq
    %v845 = vshrl.u32 %v844, 7
    %v846 = vsub.s32 %v843, %v845
    %v847 = vrot.slane %v833, %v846
    %v848 = vcombine.high %v840, %v840
    %v849 = vcombine.high %v847, %v847
    %v850 = vrot.slane %v755, 7
    %v851 = vrot.slane %v756, 7
    %v852 = vsel %vm88, %v850, %v851
    %v855 = vsel %vm88, 0.0, %v850
    %v856 = vsel %vm107, %v855, 0.0
    %v857 = vsel %vm108, %v852, 0.0
    %v860 = vcombine.high %v856, %v856
    %v862 = vunpack.c.l.s4 1983009808
    %v863 = vunpack.c.0.s8 %v862
    %v864 = vlaneseq
    %v865 = vshrl.u32 %v864, 7
    %v866 = vsub.s32 %v863, %v865
    %v867 = vrot.slane %v856, %v866
    %v869 = vunpack.c.l.s4 1983009808
    %v870 = vunpack.c.0.s8 %v869
    %v871 = vlaneseq
    %v872 = vshrl.u32 %v871, 7
    %v873 = vsub.s32 %v870, %v872
    %v874 = vrot.slane %v860, %v873
    %v875 = vcombine.high %v867, %v867
    %v876 = vcombine.high %v874, %v874
    %v877 = vcombine.high %v857, %v857
    %v879 = vunpack.c.l.s4 1983009808
    %v880 = vunpack.c.0.s8 %v879
    %v881 = vlaneseq
    %v882 = vshrl.u32 %v881, 7
    %v883 = vsub.s32 %v880, %v882
    %v884 = vrot.slane %v857, %v883
    %v886 = vunpack.c.l.s4 1983009808
    %v887 = vunpack.c.0.s8 %v886
    %v888 = vlaneseq
    %v889 = vshrl.u32 %v888, 7
    %v890 = vsub.s32 %v887, %v889
    %v891 = vrot.slane %v877, %v890
    %v892 = vcombine.high %v884, %v884
    %v893 = vcombine.high %v891, %v891
    %v894 = vcombine.high %v755, %v755
    %v896 = vunpack.c.l.s4 1983009808
    %v897 = vunpack.c.0.s8 %v896
    %v898 = vlaneseq
    %v899 = vshrl.u32 %v898, 7
    %v900 = vsub.s32 %v897, %v899
    %v901 = vrot.slane %v755, %v900
    %v903 = vunpack.c.l.s4 1983009808
    %v904 = vunpack.c.0.s8 %v903
    %v905 = vlaneseq
    %v906 = vshrl.u32 %v905, 7
    %v907 = vsub.s32 %v904, %v906
    %v908 = vrot.slane %v894, %v907
    %v909 = vcombine.high %v901, %v901
    %v910 = vcombine.high %v908, %v908
    %v911 = vcombine.high %v756, %v756
    %v913 = vunpack.c.l.s4 1983009808
    %v914 = vunpack.c.0.s8 %v913
    %v915 = vlaneseq
    %v916 = vshrl.u32 %v915, 7
    %v917 = vsub.s32 %v914, %v916
    %v918 = vrot.slane %v756, %v917
    %v920 = vunpack.c.l.s4 1983009808
    %v921 = vunpack.c.0.s8 %v920
    %v922 = vlaneseq
    %v923 = vshrl.u32 %v922, 7
    %v924 = vsub.s32 %v921, %v923
    %v925 = vrot.slane %v911, %v924
    %v926 = vcombine.high %v918, %v918
    %v927 = vcombine.high %v925, %v925
    %v928 = vlaneseq
    %v929 = vshrl.u32 %v928, 7
    %v930 = vsub.s32 0, %v929
    %v931 = vrot.slane %v779, %v930
    %v932 = vlaneseq
    %v933 = vshrl.u32 %v932, 7
    %v934 = vsub.s32 0, %v933
    %v935 = vrot.slane %v787, %v934
    %v936 = vlaneseq
    %v937 = vshrl.u32 %v936, 7
    %v938 = vsub.s32 0, %v937
    %v939 = vrot.slane %v786, %v938
    %v940 = vlaneseq
    %v941 = vshrl.u32 %v940, 7
    %v942 = vsub.s32 0, %v941
    %v943 = vrot.slane %v788, %v942
    %v944 = vlaneseq
    %v945 = vshrl.u32 %v944, 7
    %v946 = vsub.s32 0, %v945
    %v947 = vrot.slane %v796, %v946
    %v948 = vlaneseq
    %v949 = vshrl.u32 %v948, 7
    %v950 = vsub.s32 0, %v949
    %v951 = vrot.slane %v804, %v950
    %v952 = vlaneseq
    %v953 = vshrl.u32 %v952, 7
    %v954 = vsub.s32 0, %v953
    %v955 = vrot.slane %v803, %v954
    %v956 = vlaneseq
    %v957 = vshrl.u32 %v956, 7
    %v958 = vsub.s32 0, %v957
    %v959 = vrot.slane %v805, %v958
    %vm960 = vcmask 1041409
    %v961 = vsel %vm960, %v935, %v931
    %vm962 = vcmask 1042434
    %v963 = vsel %vm962, %v939, %v961
    %vm964 = vcmask 1043459
    %v965 = vsel %vm964, %v943, %v963
    %vm966 = vcmask 1044484
    %v967 = vsel %vm966, %v947, %v965
    %vm968 = vcmask 1045509
    %v969 = vsel %vm968, %v951, %v967
    %vm970 = vcmask 1046534
    %v971 = vsel %vm970, %v955, %v969
    %vm972 = vcmask 1047559
    %v973 = vsel %vm972, %v959, %v971
    %v975 = vlaneseq
    %v976 = vshrl.u32 %v975, 7
    %v977 = vsub.s32 0, %v976
    %v978 = vrot.slane %v823, %v977
    %v979 = vlaneseq
    %v980 = vshrl.u32 %v979, 7
    %v981 = vsub.s32 0, %v980
    %v982 = vrot.slane %v831, %v981
    %v983 = vlaneseq
    %v984 = vshrl.u32 %v983, 7
    %v985 = vsub.s32 0, %v984
    %v986 = vrot.slane %v830, %v985
    %v987 = vlaneseq
    %v988 = vshrl.u32 %v987, 7
    %v989 = vsub.s32 0, %v988
    %v990 = vrot.slane %v832, %v989
    %v991 = vlaneseq
    %v992 = vshrl.u32 %v991, 7
    %v993 = vsub.s32 0, %v992
    %v994 = vrot.slane %v840, %v993
    %v995 = vlaneseq
    %v996 = vshrl.u32 %v995, 7
    %v997 = vsub.s32 0, %v996
    %v998 = vrot.slane %v848, %v997
    %v999 = vlaneseq
    %v1000 = vshrl.u32 %v999, 7
    %v1001 = vsub.s32 0, %v1000
    %v1002 = vrot.slane %v847, %v1001
    %v1003 = vlaneseq
    %v1004 = vshrl.u32 %v1003, 7
    %v1005 = vsub.s32 0, %v1004
    %v1006 = vrot.slane %v849, %v1005
    %v1007 = vsel %vm960, %v982, %v978
    %v1008 = vsel %vm962, %v986, %v1007
    %v1009 = vsel %vm964, %v990, %v1008
    %v1010 = vsel %vm966, %v994, %v1009
    %v1011 = vsel %vm968, %v998, %v1010
    %v1012 = vsel %vm970, %v1002, %v1011
    %v1013 = vsel %vm972, %v1006, %v1012
    %1014 = vrot.lane.b32.xlu0 %v1013, 32
    %v1015 = vpop.permute.xlu0 %1014
    %v1017 = vlaneseq
    %v1018 = vshrl.u32 %v1017, 7
    %v1019 = vsub.s32 0, %v1018
    %v1020 = vrot.slane %v867, %v1019
    %v1021 = vlaneseq
    %v1022 = vshrl.u32 %v1021, 7
    %v1023 = vsub.s32 0, %v1022
    %v1024 = vrot.slane %v875, %v1023
    %v1025 = vlaneseq
    %v1026 = vshrl.u32 %v1025, 7
    %v1027 = vsub.s32 0, %v1026
    %v1028 = vrot.slane %v874, %v1027
    %v1029 = vlaneseq
    %v1030 = vshrl.u32 %v1029, 7
    %v1031 = vsub.s32 0, %v1030
    %v1032 = vrot.slane %v876, %v1031
    %v1033 = vlaneseq
    %v1034 = vshrl.u32 %v1033, 7
    %v1035 = vsub.s32 0, %v1034
    %v1036 = vrot.slane %v884, %v1035
    %v1037 = vlaneseq
    %v1038 = vshrl.u32 %v1037, 7
    %v1039 = vsub.s32 0, %v1038
    %v1040 = vrot.slane %v892, %v1039
    %v1041 = vlaneseq
    %v1042 = vshrl.u32 %v1041, 7
    %v1043 = vsub.s32 0, %v1042
    %v1044 = vrot.slane %v891, %v1043
    %v1045 = vlaneseq
    %v1046 = vshrl.u32 %v1045, 7
    %v1047 = vsub.s32 0, %v1046
    %v1048 = vrot.slane %v893, %v1047
    %v1049 = vsel %vm960, %v1024, %v1020
    %v1050 = vsel %vm962, %v1028, %v1049
    %v1051 = vsel %vm964, %v1032, %v1050
    %v1052 = vsel %vm966, %v1036, %v1051
    %v1053 = vsel %vm968, %v1040, %v1052
    %v1054 = vsel %vm970, %v1044, %v1053
    %v1055 = vsel %vm972, %v1048, %v1054
    %1056 = vrot.lane.b32.xlu0 %v1055, 64
    %v1057 = vpop.permute.xlu0 %1056
    %v1059 = vlaneseq
    %v1060 = vshrl.u32 %v1059, 7
    %v1061 = vsub.s32 0, %v1060
    %v1062 = vrot.slane %v901, %v1061
    %v1063 = vlaneseq
    %v1064 = vshrl.u32 %v1063, 7
    %v1065 = vsub.s32 0, %v1064
    %v1066 = vrot.slane %v909, %v1065
    %v1067 = vlaneseq
    %v1068 = vshrl.u32 %v1067, 7
    %v1069 = vsub.s32 0, %v1068
    %v1070 = vrot.slane %v908, %v1069
    %v1071 = vlaneseq
    %v1072 = vshrl.u32 %v1071, 7
    %v1073 = vsub.s32 0, %v1072
    %v1074 = vrot.slane %v910, %v1073
    %v1075 = vlaneseq
    %v1076 = vshrl.u32 %v1075, 7
    %v1077 = vsub.s32 0, %v1076
    %v1078 = vrot.slane %v918, %v1077
    %v1079 = vlaneseq
    %v1080 = vshrl.u32 %v1079, 7
    %v1081 = vsub.s32 0, %v1080
    %v1082 = vrot.slane %v926, %v1081
    %v1083 = vlaneseq
    %v1084 = vshrl.u32 %v1083, 7
    %v1085 = vsub.s32 0, %v1084
    %v1086 = vrot.slane %v925, %v1085
    %v1087 = vlaneseq
    %v1088 = vshrl.u32 %v1087, 7
    %v1089 = vsub.s32 0, %v1088
    %v1090 = vrot.slane %v927, %v1089
    %v1091 = vsel %vm960, %v1066, %v1062
    %v1092 = vsel %vm962, %v1070, %v1091
    %v1093 = vsel %vm964, %v1074, %v1092
    %v1094 = vsel %vm966, %v1078, %v1093
    %v1095 = vsel %vm968, %v1082, %v1094
    %v1096 = vsel %vm970, %v1086, %v1095
    %v1097 = vsel %vm972, %v1090, %v1096
    %1098 = vrot.lane.b32.xlu0 %v1097, 96
    %v1099 = vpop.permute.xlu0 %1098
    %v1101 = vsel %vm156, %v973, %v1015
    %vm1102 = vcmask 523264
    %v1103 = vsel %vm1102, %v1101, %v1057
    %vm1104 = vcmask 785408
    %v1105 = vsel %vm1104, %v1103, %v1099
    %v1106 = vld [vmem:[%s2 + $0x4c8] sm:$0xf]
    %v1107 = vld [vmem:[%s2 + $0x4d4] sm:$0xf]
    %v1108 = vld [vmem:[%s2 + $0x4e0] sm:$0xf]
    %v1109 = vld [vmem:[%s2 + $0x4ec] sm:$0xf]
    %v1110 = vld [vmem:[%s2 + $0x4f8] sm:$0xf]
    %v1111 = vld [vmem:[%s2 + $0x504] sm:$0xf]
    %v1112 = vld [vmem:[%s2 + $0x510] sm:$0xf]
    %v1113 = vld [vmem:[%s2 + $0x51c] sm:$0xf]
    %v1114 = vld [vmem:[%s2 + $0x528] sm:$0xf]
    %v1115 = vld [vmem:[%s2 + $0x534] sm:$0xf]
    %v1116 = vld [vmem:[%s2 + $0x540] sm:$0xf]
    %v1117 = vld [vmem:[%s2 + $0x54c] sm:$0xf]
    %v1118 = vld [vmem:[%s2 + $0x558] sm:$0xf]
    %v1119 = vld [vmem:[%s2 + $0x564] sm:$0xf]
    %v1120 = vld [vmem:[%s2 + $0x570] sm:$0xf]
    %v1121 = vld [vmem:[%s2 + $0x57c] sm:$0xf]
    %v1122 = vpack.c.bf16 %v1105, %v1105
    %v1123 = vld [vmem:[%s3 + $0x1] ss:$0 sm:$0xff]
    %v1140 = vunpack.c.l.b16 %v1106
    %v1141 = vunpack.c.l.b16 %v1107
    %v1142 = vunpack.c.l.b16 %v1108
    %v1143 = vunpack.c.l.b16 %v1109
    %v1144 = vunpack.c.l.b16 %v1110
    %v1145 = vunpack.c.l.b16 %v1111
    %v1146 = vunpack.c.l.b16 %v1112
    %v1147 = vunpack.c.l.b16 %v1113
    %v1148 = vunpack.c.l.b16 %v1114
    %v1149 = vunpack.c.l.b16 %v1115
    %v1150 = vunpack.c.l.b16 %v1116
    %v1151 = vunpack.c.l.b16 %v1117
    %v1152 = vunpack.c.l.b16 %v1118
    %v1153 = vunpack.c.l.b16 %v1119
    %v1154 = vunpack.c.l.b16 %v1120
    %v1155 = vunpack.c.l.b16 %v1121
    %v1156 = vpack.c.b16 %v1141, %v1140
    %v1157 = vpack.c.b16 %v1143, %v1142
    %v1158 = vpack.c.b16 %v1145, %v1144
    %v1159 = vpack.c.b16 %v1147, %v1146
    %v1160 = vpack.c.b16 %v1149, %v1148
    %v1161 = vpack.c.b16 %v1151, %v1150
    %v1162 = vpack.c.b16 %v1153, %v1152
    %v1163 = vpack.c.b16 %v1155, %v1154
    %1172 = vmatprep.subr.bf16.mxu0 0
    %1173 = vmatpush1.bf16.msra.mxu0 %v1156
    %1174 = vmatprep.subr.bf16.mxu0 0
    %1175 = vmatpush1.bf16.msra.mxu0 %v1157
    %1176 = vmatprep.subr.bf16.mxu0 0
    %1177 = vmatpush1.bf16.msra.mxu0 %v1158
    %1178 = vmatprep.subr.bf16.mxu0 0
    %1179 = vmatpush1.bf16.msra.mxu0 %v1159
    %1180 = vmatprep.subr.bf16.mxu0 0
    %1181 = vmatpush1.bf16.msra.mxu0 %v1160
    %1182 = vmatprep.subr.bf16.mxu0 0
    %1183 = vmatpush1.bf16.msra.mxu0 %v1161
    %1184 = vmatprep.subr.bf16.mxu0 0
    %1185 = vmatpush1.bf16.msra.mxu0 %v1162
    %1186 = vmatprep.subr.bf16.mxu0 0
    %1187 = vmatpush1.bf16.msra.mxu0 %v1163
    %1188 = vmatprep.subr.bf16.mxu0 0
    %1189 = vmatpush1.bf16.msra.mxu0 0
    %1190 = vmatprep.subr.bf16.mxu0 0
    %1191 = vmatpush1.bf16.msra.mxu0 0
    %1192 = vmatprep.subr.bf16.mxu0 0
    %1193 = vmatpush1.bf16.msra.mxu0 0
    %1194 = vmatprep.subr.bf16.mxu0 0
    %1195 = vmatpush1.bf16.msra.mxu0 0
    %1196 = vmatprep.subr.bf16.mxu0 0
    %1197 = vmatpush1.bf16.msra.mxu0 0
    %1198 = vmatprep.subr.bf16.mxu0 0
    %1199 = vmatpush1.bf16.msra.mxu0 0
    %1200 = vmatprep.subr.bf16.mxu0 0
    %1201 = vmatpush1.bf16.msra.mxu0 0
    %1202 = vmatprep.subr.bf16.mxu0 0
    %1203 = vmatpush1.bf16.msra.mxu0 0
    %1204 = vmatprep.mubr.bf16.mxu0 0
    %1205 = vmatmul.mubr.bf16.gmra.mrb[0].mxu0 %v1122
    %v1206 = vpop.f32.mrb[0].mxu0
    %v1207 = vadd.f32 %v1123, %v1206
    %v1208 = vpop.f32.mrb[0].mxu0
    %v1209 = vpop.f32.mrb[0].mxu0
    %v1210 = vpop.f32.mrb[0].mxu0
    %1211 = vdwg.mxu0
    %v1212 = vmax.f32 %v1207, 0.0
    %vm1213 = vcmp.lt.s32.totalorder %v29, 0
    %v1214 = vsub.s32 0, %v29
    %v1215 = vsel %vm1213, %v1214, %v29
    %v1216 = vshrl.u32 %v1215, 2
    %v1217 = vand.u32 %v1215, 3
    %v1218 = vsub.s32 0, %v1217
    %v1219 = vsel %vm1213, %v1218, %v1217
    %vm1220 = vcmp.ne.s32.totalorder %v1219, 0
    %vm1221 = vcmp.lt.s32.totalorder %v1219, 0
    %vm1222 = vmand %vm1221, %vm1220
    %v1223 = vadd.s32 %v1219, 4
    %v1224 = vsel %vm1222, %v1223, %v1219
    %v1226 = vrot.slane %v1212, 6
    %v1228 = vsel %vm61, 0.0, %v1226
    %vm1229 = vcmp.ge.s32.totalorder %v1224, 2
    %v1230 = vsel %vm1229, %v1228, 0.0
    %v1231 = vrot.slane %v1212, 7
    %v1233 = vsel %vm88, 0.0, %v1231
    %vm1234 = vcmp.ge.s32.totalorder %v1224, 1
    %v1235 = vsel %vm1234, %v1233, 0.0
    %1237 = vrot.lane.b32.xlu0 %v1235, 32
    %v1238 = vpop.permute.xlu0 %1237
    %1240 = vrot.lane.b32.xlu0 %v1212, 64
    %v1241 = vpop.permute.xlu0 %1240
    %v1243 = vsel %vm156, %v1230, %v1238
    %v1244 = vsel %vm1102, %v1243, %v1241
    %v1245 = vld [vmem:[%s2 + $0x588] sm:$0xf]
    %v1246 = vld [vmem:[%s2 + $0x594] sm:$0xf]
    %v1247 = vld [vmem:[%s2 + $0x5a0] sm:$0xf]
    %v1248 = vld [vmem:[%s2 + $0x5ac] sm:$0xf]
    %v1249 = vld [vmem:[%s2 + $0x5b8] sm:$0xf]
    %v1250 = vld [vmem:[%s2 + $0x5c4] sm:$0xf]
    %v1251 = vld [vmem:[%s2 + $0x5d0] sm:$0xf]
    %v1252 = vld [vmem:[%s2 + $0x5dc] sm:$0xf]
    %v1253 = vld [vmem:[%s2 + $0x5e8] sm:$0xf]
    %v1254 = vld [vmem:[%s2 + $0x5f4] sm:$0xf]
    %v1255 = vld [vmem:[%s2 + $0x600] sm:$0xf]
    %v1256 = vld [vmem:[%s2 + $0x60c] sm:$0xf]
    %v1257 = vpack.c.bf16 %v1244, %v1244
    %v1258 = vld [vmem:[%s3 + $0x2] ss:$0 sm:$0xff]
    %v1271 = vunpack.c.l.b16 %v1245
    %v1272 = vunpack.c.l.b16 %v1246
    %v1273 = vunpack.c.l.b16 %v1247
    %v1274 = vunpack.c.l.b16 %v1248
    %v1275 = vunpack.c.l.b16 %v1249
    %v1276 = vunpack.c.l.b16 %v1250
    %v1277 = vunpack.c.l.b16 %v1251
    %v1278 = vunpack.c.l.b16 %v1252
    %v1279 = vunpack.c.l.b16 %v1253
    %v1280 = vunpack.c.l.b16 %v1254
    %v1281 = vunpack.c.l.b16 %v1255
    %v1282 = vunpack.c.l.b16 %v1256
    %v1283 = vpack.c.b16 %v1272, %v1271
    %v1284 = vpack.c.b16 %v1274, %v1273
    %v1285 = vpack.c.b16 %v1276, %v1275
    %v1286 = vpack.c.b16 %v1278, %v1277
    %v1287 = vpack.c.b16 %v1280, %v1279
    %v1288 = vpack.c.b16 %v1282, %v1281
    %v1296 = vsel %vm1104, %v1257, 0
    %1298 = vmatprep.subr.bf16.mxu0 0
    %1299 = vmatpush1.bf16.msra.mxu0 %v1283
    %1300 = vmatprep.subr.bf16.mxu0 0
    %1301 = vmatpush1.bf16.msra.mxu0 %v1284
    %1302 = vmatprep.subr.bf16.mxu0 0
    %1303 = vmatpush1.bf16.msra.mxu0 %v1285
    %1304 = vmatprep.subr.bf16.mxu0 0
    %1305 = vmatpush1.bf16.msra.mxu0 %v1286
    %1306 = vmatprep.subr.bf16.mxu0 0
    %1307 = vmatpush1.bf16.msra.mxu0 %v1287
    %1308 = vmatprep.subr.bf16.mxu0 0
    %1309 = vmatpush1.bf16.msra.mxu0 %v1288
    %1310 = vmatprep.subr.bf16.mxu0 0
    %1311 = vmatpush1.bf16.msra.mxu0 0
    %1312 = vmatprep.subr.bf16.mxu0 0
    %1313 = vmatpush1.bf16.msra.mxu0 0
    %1314 = vmatprep.subr.bf16.mxu0 0
    %1315 = vmatpush1.bf16.msra.mxu0 0
    %1316 = vmatprep.subr.bf16.mxu0 0
    %1317 = vmatpush1.bf16.msra.mxu0 0
    %1318 = vmatprep.subr.bf16.mxu0 0
    %1319 = vmatpush1.bf16.msra.mxu0 0
    %1320 = vmatprep.subr.bf16.mxu0 0
    %1321 = vmatpush1.bf16.msra.mxu0 0
    %1322 = vmatprep.subr.bf16.mxu0 0
    %1323 = vmatpush1.bf16.msra.mxu0 0
    %1324 = vmatprep.subr.bf16.mxu0 0
    %1325 = vmatpush1.bf16.msra.mxu0 0
    %1326 = vmatprep.subr.bf16.mxu0 0
    %1327 = vmatpush1.bf16.msra.mxu0 0
    %1328 = vmatprep.subr.bf16.mxu0 0
    %1329 = vmatpush1.bf16.msra.mxu0 0
    %1330 = vmatprep.mubr.bf16.mxu0 0
    %1331 = vmatmul.mubr.bf16.gmra.mrb[0].mxu0 %v1296
    %v1332 = vpop.f32.mrb[0].mxu0
    %v1333 = vadd.f32 %v1258, %v1332
    %v1334 = vpop.f32.mrb[0].mxu0
    %v1335 = vpop.f32.mrb[0].mxu0
    %v1336 = vpop.f32.mrb[0].mxu0
    %1337 = vdwg.mxu0
    %v1338 = vmax.f32 %v1333, 0.0
    %v1339 = vld [vmem:[%s2 + $0x618] sm:$0xf]
    %v1340 = vld [vmem:[%s2 + $0x624] sm:$0xf]
    %v1341 = vld [vmem:[%s2 + $0x630] sm:$0xf]
    %v1342 = vld [vmem:[%s2 + $0x63c] sm:$0xf]
    %v1343 = vpack.c.bf16 %v1338, %v1338
    %v1344 = vld [vmem:[%s3 + $0x3] ss:$0 sm:$0xff]
    %v1349 = vunpack.c.l.b16 %v1339
    %v1350 = vunpack.c.l.b16 %v1340
    %v1351 = vunpack.c.l.b16 %v1341
    %v1352 = vunpack.c.l.b16 %v1342
    %v1353 = vpack.c.b16 %v1350, %v1349
    %v1354 = vpack.c.b16 %v1352, %v1351
    %v1358 = vsel %vm156, %v1343, 0
    %1360 = vmatprep.subr.bf16.mxu0 0
    %1361 = vmatpush1.bf16.msra.mxu0 %v1353
    %1362 = vmatprep.subr.bf16.mxu0 0
    %1363 = vmatpush1.bf16.msra.mxu0 %v1354
    %1364 = vmatprep.subr.bf16.mxu0 0
    %1365 = vmatpush1.bf16.msra.mxu0 0
    %1366 = vmatprep.subr.bf16.mxu0 0
    %1367 = vmatpush1.bf16.msra.mxu0 0
    %1368 = vmatprep.subr.bf16.mxu0 0
    %1369 = vmatpush1.bf16.msra.mxu0 0
    %1370 = vmatprep.subr.bf16.mxu0 0
    %1371 = vmatpush1.bf16.msra.mxu0 0
    %1372 = vmatprep.subr.bf16.mxu0 0
    %1373 = vmatpush1.bf16.msra.mxu0 0
    %1374 = vmatprep.subr.bf16.mxu0 0
    %1375 = vmatpush1.bf16.msra.mxu0 0
    %1376 = vmatprep.subr.bf16.mxu0 0
    %1377 = vmatpush1.bf16.msra.mxu0 0
    %1378 = vmatprep.subr.bf16.mxu0 0
    %1379 = vmatpush1.bf16.msra.mxu0 0
    %1380 = vmatprep.subr.bf16.mxu0 0
    %1381 = vmatpush1.bf16.msra.mxu0 0
    %1382 = vmatprep.subr.bf16.mxu0 0
    %1383 = vmatpush1.bf16.msra.mxu0 0
    %1384 = vmatprep.subr.bf16.mxu0 0
    %1385 = vmatpush1.bf16.msra.mxu0 0
    %1386 = vmatprep.subr.bf16.mxu0 0
    %1387 = vmatpush1.bf16.msra.mxu0 0
    %1388 = vmatprep.subr.bf16.mxu0 0
    %1389 = vmatpush1.bf16.msra.mxu0 0
    %1390 = vmatprep.subr.bf16.mxu0 0
    %1391 = vmatpush1.bf16.msra.mxu0 0
    %1392 = vmatprep.mubr.bf16.mxu0 0
    %1393 = vmatmul.mubr.bf16.gmra.mrb[0].mxu0 %v1358
    %v1394 = vpop.f32.mrb[0].mxu0
    %v1395 = vadd.f32 %v1344, %v1394
    %v1396 = vpop.f32.mrb[0].mxu0
    %v1397 = vpop.f32.mrb[0].mxu0
    %v1398 = vpop.f32.mrb[0].mxu0
    %1399 = vdwg.mxu0
    %v1400 = vadd.f32 %v1207, %v1395
    %v1401 = vmax.f32 %v1400, 0.0
    %v1403 = vrot.slane %v1401, 5
    %v1405 = vsel %vm759, 0.0, %v1403
    %vm1406 = vcmp.ge.s32.totalorder %v1224, 3
    %v1407 = vsel %vm1406, %v1405, 0.0
    %1409 = vrot.lane.b32.xlu0 %v1407, 32
    %v1410 = vpop.permute.xlu0 %1409
    %1412 = vrot.lane.b32.xlu0 %v1401, 64
    %v1413 = vpop.permute.xlu0 %1412
    %v1415 = vsel %vm156, 0.0, %v1410
    %v1416 = vsel %vm1102, %v1415, %v1413
    %v1417 = vld [vmem:[%s2 + $0x648] sm:$0xf]
    %v1418 = vld [vmem:[%s2 + $0x654] sm:$0xf]
    %v1419 = vld [vmem:[%s2 + $0x660] sm:$0xf]
    %v1420 = vld [vmem:[%s2 + $0x66c] sm:$0xf]
    %v1421 = vld [vmem:[%s2 + $0x678] sm:$0xf]
    %v1422 = vld [vmem:[%s2 + $0x684] sm:$0xf]
    %v1423 = vld [vmem:[%s2 + $0x690] sm:$0xf]
    %v1424 = vld [vmem:[%s2 + $0x69c] sm:$0xf]
    %v1425 = vld [vmem:[%s2 + $0x6a8] sm:$0xf]
    %v1426 = vld [vmem:[%s2 + $0x6b4] sm:$0xf]
    %v1427 = vld [vmem:[%s2 + $0x6c0] sm:$0xf]
    %v1428 = vld [vmem:[%s2 + $0x6cc] sm:$0xf]
    %v1429 = vpack.c.bf16 %v1416, %v1416
    %v1430 = vld [vmem:[%s3 + $0x4] ss:$0 sm:$0xff]
    %v1443 = vunpack.c.l.b16 %v1417
    %v1444 = vunpack.c.l.b16 %v1418
    %v1445 = vunpack.c.l.b16 %v1419
    %v1446 = vunpack.c.l.b16 %v1420
    %v1447 = vunpack.c.l.b16 %v1421
    %v1448 = vunpack.c.l.b16 %v1422
    %v1449 = vunpack.c.l.b16 %v1423
    %v1450 = vunpack.c.l.b16 %v1424
    %v1451 = vunpack.c.l.b16 %v1425
    %v1452 = vunpack.c.l.b16 %v1426
    %v1453 = vunpack.c.l.b16 %v1427
    %v1454 = vunpack.c.l.b16 %v1428
    %v1455 = vpack.c.b16 %v1444, %v1443
    %v1456 = vpack.c.b16 %v1446, %v1445
    %v1457 = vpack.c.b16 %v1448, %v1447
    %v1458 = vpack.c.b16 %v1450, %v1449
    %v1459 = vpack.c.b16 %v1452, %v1451
    %v1460 = vpack.c.b16 %v1454, %v1453
    %v1468 = vsel %vm1104, %v1429, 0
    %1470 = vmatprep.subr.bf16.mxu0 0
    %1471 = vmatpush1.bf16.msra.mxu0 %v1455
    %1472 = vmatprep.subr.bf16.mxu0 0
    %1473 = vmatpush1.bf16.msra.mxu0 %v1456
    %1474 = vmatprep.subr.bf16.mxu0 0
    %1475 = vmatpush1.bf16.msra.mxu0 %v1457
    %1476 = vmatprep.subr.bf16.mxu0 0
    %1477 = vmatpush1.bf16.msra.mxu0 %v1458
    %1478 = vmatprep.subr.bf16.mxu0 0
    %1479 = vmatpush1.bf16.msra.mxu0 %v1459
    %1480 = vmatprep.subr.bf16.mxu0 0
    %1481 = vmatpush1.bf16.msra.mxu0 %v1460
    %1482 = vmatprep.subr.bf16.mxu0 0
    %1483 = vmatpush1.bf16.msra.mxu0 0
    %1484 = vmatprep.subr.bf16.mxu0 0
    %1485 = vmatpush1.bf16.msra.mxu0 0
    %1486 = vmatprep.subr.bf16.mxu0 0
    %1487 = vmatpush1.bf16.msra.mxu0 0
    %1488 = vmatprep.subr.bf16.mxu0 0
    %1489 = vmatpush1.bf16.msra.mxu0 0
    %1490 = vmatprep.subr.bf16.mxu0 0
    %1491 = vmatpush1.bf16.msra.mxu0 0
    %1492 = vmatprep.subr.bf16.mxu0 0
    %1493 = vmatpush1.bf16.msra.mxu0 0
    %1494 = vmatprep.subr.bf16.mxu0 0
    %1495 = vmatpush1.bf16.msra.mxu0 0
    %1496 = vmatprep.subr.bf16.mxu0 0
    %1497 = vmatpush1.bf16.msra.mxu0 0
    %1498 = vmatprep.subr.bf16.mxu0 0
    %1499 = vmatpush1.bf16.msra.mxu0 0
    %1500 = vmatprep.subr.bf16.mxu0 0
    %1501 = vmatpush1.bf16.msra.mxu0 0
    %1502 = vmatprep.mubr.bf16.mxu0 0
    %1503 = vmatmul.mubr.bf16.gmra.mrb[0].mxu0 %v1468
    %v1504 = vpop.f32.mrb[0].mxu0
    %v1505 = vadd.f32 %v1430, %v1504
    %v1506 = vpop.f32.mrb[0].mxu0
    %v1507 = vpop.f32.mrb[0].mxu0
    %v1508 = vpop.f32.mrb[0].mxu0
    %1509 = vdwg.mxu0
    %v1510 = vmax.f32 %v1505, 0.0
    %v1511 = vld [vmem:[%s2 + $0x6d8] sm:$0xf]
    %v1512 = vld [vmem:[%s2 + $0x6e4] sm:$0xf]
    %v1513 = vld [vmem:[%s2 + $0x6f0] sm:$0xf]
    %v1514 = vld [vmem:[%s2 + $0x6fc] sm:$0xf]
    %v1515 = vpack.c.bf16 %v1510, %v1510
    %v1516 = vld [vmem:[%s3 + $0x5] ss:$0 sm:$0xff]
    %v1521 = vunpack.c.l.b16 %v1511
    %v1522 = vunpack.c.l.b16 %v1512
    %v1523 = vunpack.c.l.b16 %v1513
    %v1524 = vunpack.c.l.b16 %v1514
    %v1525 = vpack.c.b16 %v1522, %v1521
    %v1526 = vpack.c.b16 %v1524, %v1523
    %v1530 = vsel %vm156, %v1515, 0
    %1532 = vmatprep.subr.bf16.mxu0 0
    %1533 = vmatpush1.bf16.msra.mxu0 %v1525
    %1534 = vmatprep.subr.bf16.mxu0 0
    %1535 = vmatpush1.bf16.msra.mxu0 %v1526
    %1536 = vmatprep.subr.bf16.mxu0 0
    %1537 = vmatpush1.bf16.msra.mxu0 0
    %1538 = vmatprep.subr.bf16.mxu0 0
    %1539 = vmatpush1.bf16.msra.mxu0 0
    %1540 = vmatprep.subr.bf16.mxu0 0
    %1541 = vmatpush1.bf16.msra.mxu0 0
    %1542 = vmatprep.subr.bf16.mxu0 0
    %1543 = vmatpush1.bf16.msra.mxu0 0
    %1544 = vmatprep.subr.bf16.mxu0 0
    %1545 = vmatpush1.bf16.msra.mxu0 0
    %1546 = vmatprep.subr.bf16.mxu0 0
    %1547 = vmatpush1.bf16.msra.mxu0 0
    %1548 = vmatprep.subr.bf16.mxu0 0
    %1549 = vmatpush1.bf16.msra.mxu0 0
    %1550 = vmatprep.subr.bf16.mxu0 0
    %1551 = vmatpush1.bf16.msra.mxu0 0
    %1552 = vmatprep.subr.bf16.mxu0 0
    %1553 = vmatpush1.bf16.msra.mxu0 0
    %1554 = vmatprep.subr.bf16.mxu0 0
    %1555 = vmatpush1.bf16.msra.mxu0 0
    %1556 = vmatprep.subr.bf16.mxu0 0
    %1557 = vmatpush1.bf16.msra.mxu0 0
    %1558 = vmatprep.subr.bf16.mxu0 0
    %1559 = vmatpush1.bf16.msra.mxu0 0
    %1560 = vmatprep.subr.bf16.mxu0 0
    %1561 = vmatpush1.bf16.msra.mxu0 0
    %1562 = vmatprep.subr.bf16.mxu0 0
    %1563 = vmatpush1.bf16.msra.mxu0 0
    %1564 = vmatprep.mubr.bf16.mxu0 0
    %1565 = vmatmul.mubr.bf16.gmra.mrb[0].mxu0 %v1530
    %v1566 = vpop.f32.mrb[0].mxu0
    %v1567 = vadd.f32 %v1516, %v1566
    %v1568 = vpop.f32.mrb[0].mxu0
    %v1569 = vpop.f32.mrb[0].mxu0
    %v1570 = vpop.f32.mrb[0].mxu0
    %1571 = vdwg.mxu0
    %v1572 = vadd.f32 %v1400, %v1567
    %v1574 = vrot.slane %v1572, 5
    %v1576 = vsel %vm759, 0.0, %v1574
    %v1577 = vsel %vm1406, %v1576, 0.0
    %v1579 = vcombine.high %v1577, %v1577
    %v1581 = vunpack.c.l.s4 1983009808
    %v1582 = vunpack.c.0.s8 %v1581
    %v1583 = vlaneseq
    %v1584 = vshrl.u32 %v1583, 7
    %v1585 = vsub.s32 %v1582, %v1584
    %v1586 = vrot.slane %v1577, %v1585
    %v1588 = vunpack.c.l.s4 1983009808
    %v1589 = vunpack.c.0.s8 %v1588
    %v1590 = vlaneseq
    %v1591 = vshrl.u32 %v1590, 7
    %v1592 = vsub.s32 %v1589, %v1591
    %v1593 = vrot.slane %v1579, %v1592
    %v1594 = vcombine.high %v1586, %v1586
    %v1595 = vcombine.high %v1593, %v1593
    %v1596 = vrot.slane %v1572, 6
    %v1598 = vsel %vm61, 0.0, %v1596
    %v1599 = vsel %vm1229, %v1598, 0.0
    %v1601 = vcombine.high %v1599, %v1599
    %v1603 = vunpack.c.l.s4 1983009808
    %v1604 = vunpack.c.0.s8 %v1603
    %v1605 = vlaneseq
    %v1606 = vshrl.u32 %v1605, 7
    %v1607 = vsub.s32 %v1604, %v1606
    %v1608 = vrot.slane %v1599, %v1607
    %v1610 = vunpack.c.l.s4 1983009808
    %v1611 = vunpack.c.0.s8 %v1610
    %v1612 = vlaneseq
    %v1613 = vshrl.u32 %v1612, 7
    %v1614 = vsub.s32 %v1611, %v1613
    %v1615 = vrot.slane %v1601, %v1614
    %v1616 = vcombine.high %v1608, %v1608
    %v1617 = vcombine.high %v1615, %v1615
    %v1618 = vrot.slane %v1572, 7
    %v1620 = vsel %vm88, 0.0, %v1618
    %v1621 = vsel %vm1234, %v1620, 0.0
    %v1623 = vcombine.high %v1621, %v1621
    %v1625 = vunpack.c.l.s4 1983009808
    %v1626 = vunpack.c.0.s8 %v1625
    %v1627 = vlaneseq
    %v1628 = vshrl.u32 %v1627, 7
    %v1629 = vsub.s32 %v1626, %v1628
    %v1630 = vrot.slane %v1621, %v1629
    %v1632 = vunpack.c.l.s4 1983009808
    %v1633 = vunpack.c.0.s8 %v1632
    %v1634 = vlaneseq
    %v1635 = vshrl.u32 %v1634, 7
    %v1636 = vsub.s32 %v1633, %v1635
    %v1637 = vrot.slane %v1623, %v1636
    %v1638 = vcombine.high %v1630, %v1630
    %v1639 = vcombine.high %v1637, %v1637
    %v1640 = vcombine.high %v1572, %v1572
    %v1642 = vunpack.c.l.s4 1983009808
    %v1643 = vunpack.c.0.s8 %v1642
    %v1644 = vlaneseq
    %v1645 = vshrl.u32 %v1644, 7
    %v1646 = vsub.s32 %v1643, %v1645
    %v1647 = vrot.slane %v1572, %v1646
    %v1649 = vunpack.c.l.s4 1983009808
    %v1650 = vunpack.c.0.s8 %v1649
    %v1651 = vlaneseq
    %v1652 = vshrl.u32 %v1651, 7
    %v1653 = vsub.s32 %v1650, %v1652
    %v1654 = vrot.slane %v1640, %v1653
    %v1655 = vcombine.high %v1647, %v1647
    %v1656 = vcombine.high %v1654, %v1654
    %v1657 = vlaneseq
    %v1658 = vshrl.u32 %v1657, 7
    %v1659 = vsub.s32 0, %v1658
    %v1660 = vrot.slane %v1586, %v1659
    %v1661 = vlaneseq
    %v1662 = vshrl.u32 %v1661, 7
    %v1663 = vsub.s32 0, %v1662
    %v1664 = vrot.slane %v1594, %v1663
    %v1665 = vlaneseq
    %v1666 = vshrl.u32 %v1665, 7
    %v1667 = vsub.s32 0, %v1666
    %v1668 = vrot.slane %v1593, %v1667
    %v1669 = vlaneseq
    %v1670 = vshrl.u32 %v1669, 7
    %v1671 = vsub.s32 0, %v1670
    %v1672 = vrot.slane %v1595, %v1671
    %v1673 = vsel %vm960, %v1664, %v1660
    %v1674 = vsel %vm962, %v1668, %v1673
    %v1675 = vsel %vm964, %v1672, %v1674
    %v1677 = vlaneseq
    %v1678 = vshrl.u32 %v1677, 7
    %v1679 = vsub.s32 0, %v1678
    %v1680 = vrot.slane %v1608, %v1679
    %v1681 = vlaneseq
    %v1682 = vshrl.u32 %v1681, 7
    %v1683 = vsub.s32 0, %v1682
    %v1684 = vrot.slane %v1616, %v1683
    %v1685 = vlaneseq
    %v1686 = vshrl.u32 %v1685, 7
    %v1687 = vsub.s32 0, %v1686
    %v1688 = vrot.slane %v1615, %v1687
    %v1689 = vlaneseq
    %v1690 = vshrl.u32 %v1689, 7
    %v1691 = vsub.s32 0, %v1690
    %v1692 = vrot.slane %v1617, %v1691
    %v1693 = vsel %vm960, %v1684, %v1680
    %v1694 = vsel %vm962, %v1688, %v1693
    %v1695 = vsel %vm964, %v1692, %v1694
    %1696 = vrot.lane.b32.xlu0 %v1695, 32
    %v1697 = vpop.permute.xlu0 %1696
    %v1699 = vlaneseq
    %v1700 = vshrl.u32 %v1699, 7
    %v1701 = vsub.s32 0, %v1700
    %v1702 = vrot.slane %v1630, %v1701
    %v1703 = vlaneseq
    %v1704 = vshrl.u32 %v1703, 7
    %v1705 = vsub.s32 0, %v1704
    %v1706 = vrot.slane %v1638, %v1705
    %v1707 = vlaneseq
    %v1708 = vshrl.u32 %v1707, 7
    %v1709 = vsub.s32 0, %v1708
    %v1710 = vrot.slane %v1637, %v1709
    %v1711 = vlaneseq
    %v1712 = vshrl.u32 %v1711, 7
    %v1713 = vsub.s32 0, %v1712
    %v1714 = vrot.slane %v1639, %v1713
    %v1715 = vsel %vm960, %v1706, %v1702
    %v1716 = vsel %vm962, %v1710, %v1715
    %v1717 = vsel %vm964, %v1714, %v1716
    %1718 = vrot.lane.b32.xlu0 %v1717, 64
    %v1719 = vpop.permute.xlu0 %1718
    %v1721 = vlaneseq
    %v1722 = vshrl.u32 %v1721, 7
    %v1723 = vsub.s32 0, %v1722
    %v1724 = vrot.slane %v1647, %v1723
    %v1725 = vlaneseq
    %v1726 = vshrl.u32 %v1725, 7
    %v1727 = vsub.s32 0, %v1726
    %v1728 = vrot.slane %v1655, %v1727
    %v1729 = vlaneseq
    %v1730 = vshrl.u32 %v1729, 7
    %v1731 = vsub.s32 0, %v1730
    %v1732 = vrot.slane %v1654, %v1731
    %v1733 = vlaneseq
    %v1734 = vshrl.u32 %v1733, 7
    %v1735 = vsub.s32 0, %v1734
    %v1736 = vrot.slane %v1656, %v1735
    %v1737 = vsel %vm960, %v1728, %v1724
    %v1738 = vsel %vm962, %v1732, %v1737
    %v1739 = vsel %vm964, %v1736, %v1738
    %1740 = vrot.lane.b32.xlu0 %v1739, 96
    %v1741 = vpop.permute.xlu0 %1740
    %v1743 = vsel %vm156, %v1675, %v1697
    %v1744 = vsel %vm1102, %v1743, %v1719
    %v1745 = vsel %vm1104, %v1744, %v1741
    %v1746 = vld [vmem:[%s2 + $0x708] sm:$0xf]
    %v1747 = vld [vmem:[%s2 + $0x714] sm:$0xf]
    %v1748 = vld [vmem:[%s2 + $0x720] sm:$0xf]
    %v1749 = vld [vmem:[%s2 + $0x72c] sm:$0xf]
    %v1750 = vld [vmem:[%s2 + $0x738] sm:$0xf]
    %v1751 = vld [vmem:[%s2 + $0x744] sm:$0xf]
    %v1752 = vld [vmem:[%s2 + $0x750] sm:$0xf]
    %v1753 = vld [vmem:[%s2 + $0x75c] sm:$0xf]
    %v1754 = vld [vmem:[%s2 + $0x768] sm:$0xf]
    %v1755 = vld [vmem:[%s2 + $0x774] sm:$0xf]
    %v1756 = vld [vmem:[%s2 + $0x780] sm:$0xf]
    %v1757 = vld [vmem:[%s2 + $0x78c] sm:$0xf]
    %v1758 = vld [vmem:[%s2 + $0x798] sm:$0xf]
    %v1759 = vld [vmem:[%s2 + $0x7a4] sm:$0xf]
    %v1760 = vld [vmem:[%s2 + $0x7b0] sm:$0xf]
    %v1761 = vld [vmem:[%s2 + $0x7bc] sm:$0xf]
    %v1762 = vpack.c.bf16 %v1745, %v1745
    %v1763 = vld [vmem:[%s3 + $0x6] ss:$0 sm:$0xff]
    %v1780 = vunpack.c.l.b16 %v1746
    %v1781 = vunpack.c.l.b16 %v1747
    %v1782 = vunpack.c.l.b16 %v1748
    %v1783 = vunpack.c.l.b16 %v1749
    %v1784 = vunpack.c.l.b16 %v1750
    %v1785 = vunpack.c.l.b16 %v1751
    %v1786 = vunpack.c.l.b16 %v1752
    %v1787 = vunpack.c.l.b16 %v1753
    %v1788 = vunpack.c.l.b16 %v1754
    %v1789 = vunpack.c.l.b16 %v1755
    %v1790 = vunpack.c.l.b16 %v1756
    %v1791 = vunpack.c.l.b16 %v1757
    %v1792 = vunpack.c.l.b16 %v1758
    %v1793 = vunpack.c.l.b16 %v1759
    %v1794 = vunpack.c.l.b16 %v1760
    %v1795 = vunpack.c.l.b16 %v1761
    %v1796 = vpack.c.b16 %v1781, %v1780
    %v1797 = vpack.c.b16 %v1783, %v1782
    %v1798 = vpack.c.b16 %v1785, %v1784
    %v1799 = vpack.c.b16 %v1787, %v1786
    %v1800 = vpack.c.b16 %v1789, %v1788
    %v1801 = vpack.c.b16 %v1791, %v1790
    %v1802 = vpack.c.b16 %v1793, %v1792
    %v1803 = vpack.c.b16 %v1795, %v1794
    %1812 = vmatprep.subr.bf16.mxu0 0
    %1813 = vmatpush1.bf16.msra.mxu0 %v1796
    %1814 = vmatprep.subr.bf16.mxu0 0
    %1815 = vmatpush1.bf16.msra.mxu0 %v1797
    %1816 = vmatprep.subr.bf16.mxu0 0
    %1817 = vmatpush1.bf16.msra.mxu0 %v1798
    %1818 = vmatprep.subr.bf16.mxu0 0
    %1819 = vmatpush1.bf16.msra.mxu0 %v1799
    %1820 = vmatprep.subr.bf16.mxu0 0
    %1821 = vmatpush1.bf16.msra.mxu0 %v1800
    %1822 = vmatprep.subr.bf16.mxu0 0
    %1823 = vmatpush1.bf16.msra.mxu0 %v1801
    %1824 = vmatprep.subr.bf16.mxu0 0
    %1825 = vmatpush1.bf16.msra.mxu0 %v1802
    %1826 = vmatprep.subr.bf16.mxu0 0
    %1827 = vmatpush1.bf16.msra.mxu0 %v1803
    %1828 = vmatprep.subr.bf16.mxu0 0
    %1829 = vmatpush1.bf16.msra.mxu0 0
    %1830 = vmatprep.subr.bf16.mxu0 0
    %1831 = vmatpush1.bf16.msra.mxu0 0
    %1832 = vmatprep.subr.bf16.mxu0 0
    %1833 = vmatpush1.bf16.msra.mxu0 0
    %1834 = vmatprep.subr.bf16.mxu0 0
    %1835 = vmatpush1.bf16.msra.mxu0 0
    %1836 = vmatprep.subr.bf16.mxu0 0
    %1837 = vmatpush1.bf16.msra.mxu0 0
    %1838 = vmatprep.subr.bf16.mxu0 0
    %1839 = vmatpush1.bf16.msra.mxu0 0
    %1840 = vmatprep.subr.bf16.mxu0 0
    %1841 = vmatpush1.bf16.msra.mxu0 0
    %1842 = vmatprep.subr.bf16.mxu0 0
    %1843 = vmatpush1.bf16.msra.mxu0 0
    %1844 = vmatprep.mubr.bf16.mxu0 0
    %1845 = vmatmul.mubr.bf16.gmra.mrb[0].mxu0 %v1762
    %v1846 = vpop.f32.mrb[0].mxu0
    %v1847 = vadd.f32 %v1763, %v1846
    %v1848 = vpop.f32.mrb[0].mxu0
    %v1849 = vpop.f32.mrb[0].mxu0
    %v1850 = vpop.f32.mrb[0].mxu0
    %1851 = vdwg.mxu0
    %v1852 = vmax.f32 %v1847, 0.0
    %vm1853 = vcmp.lt.s32.totalorder %v29, 0
    %v1854 = vsub.s32 0, %v29
    %v1855 = vsel %vm1853, %v1854, %v29
    %v1856 = vshrl.u32 %v1855, 1
    %v1857 = vand.u32 %v1855, 1
    %v1858 = vsub.s32 0, %v1857
    %v1859 = vsel %vm1853, %v1858, %v1857
    %vm1860 = vcmp.ne.s32.totalorder %v1859, 0
    %vm1861 = vcmp.lt.s32.totalorder %v1859, 0
    %vm1862 = vmand %vm1861, %vm1860
    %v1863 = vadd.s32 %v1859, 2
    %v1864 = vsel %vm1862, %v1863, %v1859
    %v1866 = vrot.slane %v1852, 7
    %v1868 = vsel %vm88, 0.0, %v1866
    %vm1869 = vcmp.ge.s32.totalorder %v1864, 1
    %v1870 = vsel %vm1869, %v1868, 0.0
    %1872 = vrot.lane.b32.xlu0 %v1870, 32
    %v1873 = vpop.permute.xlu0 %1872
    %1875 = vrot.lane.b32.xlu0 %v1852, 64
    %v1876 = vpop.permute.xlu0 %1875
    %v1878 = vsel %vm156, 0.0, %v1873
    %v1879 = vsel %vm1102, %v1878, %v1876
    %v1880 = vld [vmem:[%s2 + $0x7c8] sm:$0xf]
    %v1881 = vld [vmem:[%s2 + $0x7d4] sm:$0xf]
    %v1882 = vld [vmem:[%s2 + $0x7e0] sm:$0xf]
    %v1883 = vld [vmem:[%s2 + $0x7ec] sm:$0xf]
    %v1884 = vld [vmem:[%s2 + $0x7f8] sm:$0xf]
    %v1885 = vld [vmem:[%s2 + $0x804] sm:$0xf]
    %v1886 = vld [vmem:[%s2 + $0x810] sm:$0xf]
    %v1887 = vld [vmem:[%s2 + $0x81c] sm:$0xf]
    %v1888 = vld [vmem:[%s2 + $0x828] sm:$0xf]
    %v1889 = vld [vmem:[%s2 + $0x834] sm:$0xf]
    %v1890 = vld [vmem:[%s2 + $0x840] sm:$0xf]
    %v1891 = vld [vmem:[%s2 + $0x84c] sm:$0xf]
    %v1892 = vpack.c.bf16 %v1879, %v1879
    %v1893 = vld [vmem:[%s3 + $0x7] ss:$0 sm:$0xff]
    %v1906 = vunpack.c.l.b16 %v1880
    %v1907 = vunpack.c.l.b16 %v1881
    %v1908 = vunpack.c.l.b16 %v1882
    %v1909 = vunpack.c.l.b16 %v1883
    %v1910 = vunpack.c.l.b16 %v1884
    %v1911 = vunpack.c.l.b16 %v1885
    %v1912 = vunpack.c.l.b16 %v1886
    %v1913 = vunpack.c.l.b16 %v1887
    %v1914 = vunpack.c.l.b16 %v1888
    %v1915 = vunpack.c.l.b16 %v1889
    %v1916 = vunpack.c.l.b16 %v1890
    %v1917 = vunpack.c.l.b16 %v1891
    %v1918 = vpack.c.b16 %v1907, %v1906
    %v1919 = vpack.c.b16 %v1909, %v1908
    %v1920 = vpack.c.b16 %v1911, %v1910
    %v1921 = vpack.c.b16 %v1913, %v1912
    %v1922 = vpack.c.b16 %v1915, %v1914
    %v1923 = vpack.c.b16 %v1917, %v1916
    %v1931 = vsel %vm1104, %v1892, 0
    %1933 = vmatprep.subr.bf16.mxu0 0
    %1934 = vmatpush1.bf16.msra.mxu0 %v1918
    %1935 = vmatprep.subr.bf16.mxu0 0
    %1936 = vmatpush1.bf16.msra.mxu0 %v1919
    %1937 = vmatprep.subr.bf16.mxu0 0
    %1938 = vmatpush1.bf16.msra.mxu0 %v1920
    %1939 = vmatprep.subr.bf16.mxu0 0
    %1940 = vmatpush1.bf16.msra.mxu0 %v1921
    %1941 = vmatprep.subr.bf16.mxu0 0
    %1942 = vmatpush1.bf16.msra.mxu0 %v1922
    %1943 = vmatprep.subr.bf16.mxu0 0
    %1944 = vmatpush1.bf16.msra.mxu0 %v1923
    %1945 = vmatprep.subr.bf16.mxu0 0
    %1946 = vmatpush1.bf16.msra.mxu0 0
    %1947 = vmatprep.subr.bf16.mxu0 0
    %1948 = vmatpush1.bf16.msra.mxu0 0
    %1949 = vmatprep.subr.bf16.mxu0 0
    %1950 = vmatpush1.bf16.msra.mxu0 0
    %1951 = vmatprep.subr.bf16.mxu0 0
    %1952 = vmatpush1.bf16.msra.mxu0 0
    %1953 = vmatprep.subr.bf16.mxu0 0
    %1954 = vmatpush1.bf16.msra.mxu0 0
    %1955 = vmatprep.subr.bf16.mxu0 0
    %1956 = vmatpush1.bf16.msra.mxu0 0
    %1957 = vmatprep.subr.bf16.mxu0 0
    %1958 = vmatpush1.bf16.msra.mxu0 0
    %1959 = vmatprep.subr.bf16.mxu0 0
    %1960 = vmatpush1.bf16.msra.mxu0 0
    %1961 = vmatprep.subr.bf16.mxu0 0
    %1962 = vmatpush1.bf16.msra.mxu0 0
    %1963 = vmatprep.subr.bf16.mxu0 0
    %1964 = vmatpush1.bf16.msra.mxu0 0
    %1965 = vmatprep.mubr.bf16.mxu0 0
    %1966 = vmatmul.mubr.bf16.gmra.mrb[0].mxu0 %v1931
    %v1967 = vpop.f32.mrb[0].mxu0
    %v1968 = vadd.f32 %v1893, %v1967
    %v1969 = vpop.f32.mrb[0].mxu0
    %v1970 = vpop.f32.mrb[0].mxu0
    %v1971 = vpop.f32.mrb[0].mxu0
    %1972 = vdwg.mxu0
    %v1973 = vmax.f32 %v1968, 0.0
    %v1974 = vld [vmem:[%s2 + $0x858] sm:$0xf]
    %v1975 = vld [vmem:[%s2 + $0x864] sm:$0xf]
    %v1976 = vld [vmem:[%s2 + $0x870] sm:$0xf]
    %v1977 = vld [vmem:[%s2 + $0x87c] sm:$0xf]
    %v1978 = vpack.c.bf16 %v1973, %v1973
    %v1979 = vld [vmem:[%s3 + $0x18] ss:$0 sm:$0xff]
    %v1984 = vunpack.c.l.b16 %v1974
    %v1985 = vunpack.c.l.b16 %v1975
    %v1986 = vunpack.c.l.b16 %v1976
    %v1987 = vunpack.c.l.b16 %v1977
    %v1988 = vpack.c.b16 %v1985, %v1984
    %v1989 = vpack.c.b16 %v1987, %v1986
    %v1993 = vsel %vm156, %v1978, 0
    %1995 = vmatprep.subr.bf16.mxu0 0
    %1996 = vmatpush1.bf16.msra.mxu0 %v1988
    %1997 = vmatprep.subr.bf16.mxu0 0
    %1998 = vmatpush1.bf16.msra.mxu0 %v1989
    %1999 = vmatprep.subr.bf16.mxu0 0
    %2000 = vmatpush1.bf16.msra.mxu0 0
    %2001 = vmatprep.subr.bf16.mxu0 0
    %2002 = vmatpush1.bf16.msra.mxu0 0
    %2003 = vmatprep.subr.bf16.mxu0 0
    %2004 = vmatpush1.bf16.msra.mxu0 0
    %2005 = vmatprep.subr.bf16.mxu0 0
    %2006 = vmatpush1.bf16.msra.mxu0 0
    %2007 = vmatprep.subr.bf16.mxu0 0
    %2008 = vmatpush1.bf16.msra.mxu0 0
    %2009 = vmatprep.subr.bf16.mxu0 0
    %2010 = vmatpush1.bf16.msra.mxu0 0
    %2011 = vmatprep.subr.bf16.mxu0 0
    %2012 = vmatpush1.bf16.msra.mxu0 0
    %2013 = vmatprep.subr.bf16.mxu0 0
    %2014 = vmatpush1.bf16.msra.mxu0 0
    %2015 = vmatprep.subr.bf16.mxu0 0
    %2016 = vmatpush1.bf16.msra.mxu0 0
    %2017 = vmatprep.subr.bf16.mxu0 0
    %2018 = vmatpush1.bf16.msra.mxu0 0
    %2019 = vmatprep.subr.bf16.mxu0 0
    %2020 = vmatpush1.bf16.msra.mxu0 0
    %2021 = vmatprep.subr.bf16.mxu0 0
    %2022 = vmatpush1.bf16.msra.mxu0 0
    %2023 = vmatprep.subr.bf16.mxu0 0
    %2024 = vmatpush1.bf16.msra.mxu0 0
    %2025 = vmatprep.subr.bf16.mxu0 0
    %2026 = vmatpush1.bf16.msra.mxu0 0
    %2027 = vmatprep.mubr.bf16.mxu0 0
    %2028 = vmatmul.mubr.bf16.gmra.mrb[0].mxu0 %v1993
    %v2029 = vpop.f32.mrb[0].mxu0
    %v2030 = vadd.f32 %v1979, %v2029
    %v2031 = vpop.f32.mrb[0].mxu0
    %v2032 = vpop.f32.mrb[0].mxu0
    %v2033 = vpop.f32.mrb[0].mxu0
    %2034 = vdwg.mxu0
    %v2035 = vadd.f32 %v1847, %v2030
    %v2036 = vmax.f32 %v2035, 0.0
    %2038 = vrot.lane.b32.xlu0 %v2036, 64
    %v2039 = vpop.permute.xlu0 %2038
    %v2041 = vsel %vm1102, 0.0, %v2039
    %v2042 = vld [vmem:[%s2 + $0x888] sm:$0xf]
    %v2043 = vld [vmem:[%s2 + $0x894] sm:$0xf]
    %v2044 = vld [vmem:[%s2 + $0x8a0] sm:$0xf]
    %v2045 = vld [vmem:[%s2 + $0x8ac] sm:$0xf]
    %v2046 = vld [vmem:[%s2 + $0x8b8] sm:$0xf]
    %v2047 = vld [vmem:[%s2 + $0x8c4] sm:$0xf]
    %v2048 = vld [vmem:[%s2 + $0x8d0] sm:$0xf]
    %v2049 = vld [vmem:[%s2 + $0x8dc] sm:$0xf]
    %v2050 = vld [vmem:[%s2 + $0x8e8] sm:$0xf]
    %v2051 = vld [vmem:[%s2 + $0x8f4] sm:$0xf]
    %v2052 = vld [vmem:[%s2 + $0x900] sm:$0xf]
    %v2053 = vld [vmem:[%s2 + $0x90c] sm:$0xf]
    %v2054 = vpack.c.bf16 %v2041, %v2041
    %v2055 = vld [vmem:[%s3 + $0x19] ss:$0 sm:$0xff]
    %v2068 = vunpack.c.l.b16 %v2042
    %v2069 = vunpack.c.l.b16 %v2043
    %v2070 = vunpack.c.l.b16 %v2044
    %v2071 = vunpack.c.l.b16 %v2045
    %v2072 = vunpack.c.l.b16 %v2046
    %v2073 = vunpack.c.l.b16 %v2047
    %v2074 = vunpack.c.l.b16 %v2048
    %v2075 = vunpack.c.l.b16 %v2049
    %v2076 = vunpack.c.l.b16 %v2050
    %v2077 = vunpack.c.l.b16 %v2051
    %v2078 = vunpack.c.l.b16 %v2052
    %v2079 = vunpack.c.l.b16 %v2053
    %v2080 = vpack.c.b16 %v2069, %v2068
    %v2081 = vpack.c.b16 %v2071, %v2070
    %v2082 = vpack.c.b16 %v2073, %v2072
    %v2083 = vpack.c.b16 %v2075, %v2074
    %v2084 = vpack.c.b16 %v2077, %v2076
    %v2085 = vpack.c.b16 %v2079, %v2078
    %v2093 = vsel %vm1104, %v2054, 0
    %2095 = vmatprep.subr.bf16.mxu0 0
    %2096 = vmatpush1.bf16.msra.mxu0 %v2080
    %2097 = vmatprep.subr.bf16.mxu0 0
    %2098 = vmatpush1.bf16.msra.mxu0 %v2081
    %2099 = vmatprep.subr.bf16.mxu0 0
    %2100 = vmatpush1.bf16.msra.mxu0 %v2082
    %2101 = vmatprep.subr.bf16.mxu0 0
    %2102 = vmatpush1.bf16.msra.mxu0 %v2083
    %2103 = vmatprep.subr.bf16.mxu0 0
    %2104 = vmatpush1.bf16.msra.mxu0 %v2084
    %2105 = vmatprep.subr.bf16.mxu0 0
    %2106 = vmatpush1.bf16.msra.mxu0 %v2085
    %2107 = vmatprep.subr.bf16.mxu0 0
    %2108 = vmatpush1.bf16.msra.mxu0 0
    %2109 = vmatprep.subr.bf16.mxu0 0
    %2110 = vmatpush1.bf16.msra.mxu0 0
    %2111 = vmatprep.subr.bf16.mxu0 0
    %2112 = vmatpush1.bf16.msra.mxu0 0
    %2113 = vmatprep.subr.bf16.mxu0 0
    %2114 = vmatpush1.bf16.msra.mxu0 0
    %2115 = vmatprep.subr.bf16.mxu0 0
    %2116 = vmatpush1.bf16.msra.mxu0 0
    %2117 = vmatprep.subr.bf16.mxu0 0
    %2118 = vmatpush1.bf16.msra.mxu0 0
    %2119 = vmatprep.subr.bf16.mxu0 0
    %2120 = vmatpush1.bf16.msra.mxu0 0
    %2121 = vmatprep.subr.bf16.mxu0 0
    %2122 = vmatpush1.bf16.msra.mxu0 0
    %2123 = vmatprep.subr.bf16.mxu0 0
    %2124 = vmatpush1.bf16.msra.mxu0 0
    %2125 = vmatprep.subr.bf16.mxu0 0
    %2126 = vmatpush1.bf16.msra.mxu0 0
    %2127 = vmatprep.mubr.bf16.mxu0 0
    %2128 = vmatmul.mubr.bf16.gmra.mrb[0].mxu0 %v2093
    %v2129 = vpop.f32.mrb[0].mxu0
    %v2130 = vadd.f32 %v2055, %v2129
    %v2131 = vpop.f32.mrb[0].mxu0
    %v2132 = vpop.f32.mrb[0].mxu0
    %v2133 = vpop.f32.mrb[0].mxu0
    %2134 = vdwg.mxu0
    %v2135 = vmax.f32 %v2130, 0.0
    %v2136 = vld [vmem:[%s2 + $0x918] sm:$0xf]
    %v2137 = vld [vmem:[%s2 + $0x924] sm:$0xf]
    %v2138 = vld [vmem:[%s2 + $0x930] sm:$0xf]
    %v2139 = vld [vmem:[%s2 + $0x93c] sm:$0xf]
    %v2140 = vpack.c.bf16 %v2135, %v2135
    %v2141 = vld [vmem:[%s3 + $0x1a] ss:$0 sm:$0xff]
    %v2146 = vunpack.c.l.b16 %v2136
    %v2147 = vunpack.c.l.b16 %v2137
    %v2148 = vunpack.c.l.b16 %v2138
    %v2149 = vunpack.c.l.b16 %v2139
    %v2150 = vpack.c.b16 %v2147, %v2146
    %v2151 = vpack.c.b16 %v2149, %v2148
    %v2155 = vsel %vm156, %v2140, 0
    %2157 = vmatprep.subr.bf16.mxu0 0
    %2158 = vmatpush1.bf16.msra.mxu0 %v2150
    %2159 = vmatprep.subr.bf16.mxu0 0
    %2160 = vmatpush1.bf16.msra.mxu0 %v2151
    %2161 = vmatprep.subr.bf16.mxu0 0
    %2162 = vmatpush1.bf16.msra.mxu0 0
    %2163 = vmatprep.subr.bf16.mxu0 0
    %2164 = vmatpush1.bf16.msra.mxu0 0
    %2165 = vmatprep.subr.bf16.mxu0 0
    %2166 = vmatpush1.bf16.msra.mxu0 0
    %2167 = vmatprep.subr.bf16.mxu0 0
    %2168 = vmatpush1.bf16.msra.mxu0 0
    %2169 = vmatprep.subr.bf16.mxu0 0
    %2170 = vmatpush1.bf16.msra.mxu0 0
    %2171 = vmatprep.subr.bf16.mxu0 0
    %2172 = vmatpush1.bf16.msra.mxu0 0
    %2173 = vmatprep.subr.bf16.mxu0 0
    %2174 = vmatpush1.bf16.msra.mxu0 0
    %2175 = vmatprep.subr.bf16.mxu0 0
    %2176 = vmatpush1.bf16.msra.mxu0 0
    %2177 = vmatprep.subr.bf16.mxu0 0
    %2178 = vmatpush1.bf16.msra.mxu0 0
    %2179 = vmatprep.subr.bf16.mxu0 0
    %2180 = vmatpush1.bf16.msra.mxu0 0
    %2181 = vmatprep.subr.bf16.mxu0 0
    %2182 = vmatpush1.bf16.msra.mxu0 0
    %2183 = vmatprep.subr.bf16.mxu0 0
    %2184 = vmatpush1.bf16.msra.mxu0 0
    %2185 = vmatprep.subr.bf16.mxu0 0
    %2186 = vmatpush1.bf16.msra.mxu0 0
    %2187 = vmatprep.subr.bf16.mxu0 0
    %2188 = vmatpush1.bf16.msra.mxu0 0
    %2189 = vmatprep.mubr.bf16.mxu0 0
    %2190 = vmatmul.mubr.bf16.gmra.mrb[0].mxu0 %v2155
    %v2191 = vpop.f32.mrb[0].mxu0
    %v2192 = vadd.f32 %v2141, %v2191
    %v2193 = vpop.f32.mrb[0].mxu0
    %v2194 = vpop.f32.mrb[0].mxu0
    %v2195 = vpop.f32.mrb[0].mxu0
    %2196 = vdwg.mxu0
    %v2197 = vadd.f32 %v2035, %v2192
    %v2199 = vrot.slane %v2197, 7
    %v2201 = vsel %vm88, 0.0, %v2199
    %v2202 = vsel %vm1869, %v2201, 0.0
    %2204 = vrot.lane.b32.xlu0 %v2202, 32
    %v2205 = vpop.permute.xlu0 %2204
    %2207 = vrot.lane.b32.xlu0 %v2197, 64
    %v2208 = vpop.permute.xlu0 %2207
    %v2210 = vsel %vm156, 0.0, %v2205
    %v2211 = vsel %vm1102, %v2210, %v2208
    %v2212 = vld [vmem:[%s2 + $0x948] sm:$0xf]
    %v2213 = vld [vmem:[%s2 + $0x954] sm:$0xf]
    %v2214 = vld [vmem:[%s2 + $0x960] sm:$0xf]
    %v2215 = vld [vmem:[%s2 + $0x96c] sm:$0xf]
    %v2216 = vld [vmem:[%s2 + $0x978] sm:$0xf]
    %v2217 = vld [vmem:[%s2 + $0x984] sm:$0xf]
    %v2218 = vld [vmem:[%s2 + $0x990] sm:$0xf]
    %v2219 = vld [vmem:[%s2 + $0x99c] sm:$0xf]
    %v2220 = vld [vmem:[%s2 + $0x9a8] sm:$0xf]
    %v2221 = vld [vmem:[%s2 + $0x9b4] sm:$0xf]
    %v2222 = vld [vmem:[%s2 + $0x9c0] sm:$0xf]
    %v2223 = vld [vmem:[%s2 + $0x9cc] sm:$0xf]
    %v2224 = vpack.c.bf16 %v2211, %v2211
    %v2225 = vld [vmem:[%s3 + $0x1b] ss:$0 sm:$0xff]
    %v2238 = vunpack.c.l.b16 %v2212
    %v2239 = vunpack.c.l.b16 %v2213
    %v2240 = vunpack.c.l.b16 %v2214
    %v2241 = vunpack.c.l.b16 %v2215
    %v2242 = vunpack.c.l.b16 %v2216
    %v2243 = vunpack.c.l.b16 %v2217
    %v2244 = vunpack.c.l.b16 %v2218
    %v2245 = vunpack.c.l.b16 %v2219
    %v2246 = vunpack.c.l.b16 %v2220
    %v2247 = vunpack.c.l.b16 %v2221
    %v2248 = vunpack.c.l.b16 %v2222
    %v2249 = vunpack.c.l.b16 %v2223
    %v2250 = vpack.c.b16 %v2239, %v2238
    %v2251 = vpack.c.b16 %v2241, %v2240
    %v2252 = vpack.c.b16 %v2243, %v2242
    %v2253 = vpack.c.b16 %v2245, %v2244
    %v2254 = vpack.c.b16 %v2247, %v2246
    %v2255 = vpack.c.b16 %v2249, %v2248
    %v2263 = vsel %vm1104, %v2224, 0
    %2265 = vmatprep.subr.bf16.mxu0 0
    %2266 = vmatpush1.bf16.msra.mxu0 %v2250
    %2267 = vmatprep.subr.bf16.mxu0 0
    %2268 = vmatpush1.bf16.msra.mxu0 %v2251
    %2269 = vmatprep.subr.bf16.mxu0 0
    %2270 = vmatpush1.bf16.msra.mxu0 %v2252
    %2271 = vmatprep.subr.bf16.mxu0 0
    %2272 = vmatpush1.bf16.msra.mxu0 %v2253
    %2273 = vmatprep.subr.bf16.mxu0 0
    %2274 = vmatpush1.bf16.msra.mxu0 %v2254
    %2275 = vmatprep.subr.bf16.mxu0 0
    %2276 = vmatpush1.bf16.msra.mxu0 %v2255
    %2277 = vmatprep.subr.bf16.mxu0 0
    %2278 = vmatpush1.bf16.msra.mxu0 0
    %2279 = vmatprep.subr.bf16.mxu0 0
    %2280 = vmatpush1.bf16.msra.mxu0 0
    %2281 = vmatprep.subr.bf16.mxu0 0
    %2282 = vmatpush1.bf16.msra.mxu0 0
    %2283 = vmatprep.subr.bf16.mxu0 0
    %2284 = vmatpush1.bf16.msra.mxu0 0
    %2285 = vmatprep.subr.bf16.mxu0 0
    %2286 = vmatpush1.bf16.msra.mxu0 0
    %2287 = vmatprep.subr.bf16.mxu0 0
    %2288 = vmatpush1.bf16.msra.mxu0 0
    %2289 = vmatprep.subr.bf16.mxu0 0
    %2290 = vmatpush1.bf16.msra.mxu0 0
    %2291 = vmatprep.subr.bf16.mxu0 0
    %2292 = vmatpush1.bf16.msra.mxu0 0
    %2293 = vmatprep.subr.bf16.mxu0 0
    %2294 = vmatpush1.bf16.msra.mxu0 0
    %2295 = vmatprep.subr.bf16.mxu0 0
    %2296 = vmatpush1.bf16.msra.mxu0 0
    %2297 = vmatprep.mubr.bf16.mxu0 0
    %2298 = vmatmul.mubr.bf16.gmra.mrb[0].mxu0 %v2263
    %v2299 = vpop.f32.mrb[0].mxu0
    %v2300 = vadd.f32 %v2225, %v2299
    %v2301 = vpop.f32.mrb[0].mxu0
    %v2302 = vpop.f32.mrb[0].mxu0
    %v2303 = vpop.f32.mrb[0].mxu0
    %2304 = vdwg.mxu0
    %v2306 = vrot.slane %v2300, 7
    %v2308 = vsel %vm88, 0.0, %v2306
    %v2309 = vsel %vm1869, %v2308, 0.0
    %2311 = vrot.lane.b32.xlu0 %v2309, 32
    %v2312 = vpop.permute.xlu0 %2311
    %2314 = vrot.lane.b32.xlu0 %v2300, 64
    %v2315 = vpop.permute.xlu0 %2314
    %v2317 = vsel %vm156, 0.0, %v2312
    %v2318 = vsel %vm1102, %v2317, %v2315
    %v2319 = vld [vmem:[%s2 + $0x9d8] sm:$0xf]
    %v2320 = vld [vmem:[%s2 + $0x9e4] sm:$0xf]
    %v2321 = vld [vmem:[%s2 + $0x9f0] sm:$0xf]
    %v2322 = vld [vmem:[%s2 + $0x9fc] sm:$0xf]
    %v2323 = vld [vmem:[%s2 + $0xa08] sm:$0xf]
    %v2324 = vld [vmem:[%s2 + $0xa14] sm:$0xf]
    %v2325 = vld [vmem:[%s2 + $0xa20] sm:$0xf]
    %v2326 = vld [vmem:[%s2 + $0xa2c] sm:$0xf]
    %v2327 = vld [vmem:[%s2 + $0xa38] sm:$0xf]
    %v2328 = vld [vmem:[%s2 + $0xa44] sm:$0xf]
    %v2329 = vld [vmem:[%s2 + $0xa50] sm:$0xf]
    %v2330 = vld [vmem:[%s2 + $0xa5c] sm:$0xf]
    %v2331 = vpack.c.bf16 %v2318, %v2318
    %v2332 = vld [vmem:[%s3 + $0x1c] ss:$0 sm:$0xff]
    %v2345 = vunpack.c.l.b16 %v2319
    %v2346 = vunpack.c.l.b16 %v2320
    %v2347 = vunpack.c.l.b16 %v2321
    %v2348 = vunpack.c.l.b16 %v2322
    %v2349 = vunpack.c.l.b16 %v2323
    %v2350 = vunpack.c.l.b16 %v2324
    %v2351 = vunpack.c.l.b16 %v2325
    %v2352 = vunpack.c.l.b16 %v2326
    %v2353 = vunpack.c.l.b16 %v2327
    %v2354 = vunpack.c.l.b16 %v2328
    %v2355 = vunpack.c.l.b16 %v2329
    %v2356 = vunpack.c.l.b16 %v2330
    %v2357 = vpack.c.b16 %v2346, %v2345
    %v2358 = vpack.c.b16 %v2348, %v2347
    %v2359 = vpack.c.b16 %v2350, %v2349
    %v2360 = vpack.c.b16 %v2352, %v2351
    %v2361 = vpack.c.b16 %v2354, %v2353
    %v2362 = vpack.c.b16 %v2356, %v2355
    %v2370 = vsel %vm1104, %v2331, 0
    %2372 = vmatprep.subr.bf16.mxu0 0
    %2373 = vmatpush1.bf16.msra.mxu0 %v2357
    %2374 = vmatprep.subr.bf16.mxu0 0
    %2375 = vmatpush1.bf16.msra.mxu0 %v2358
    %2376 = vmatprep.subr.bf16.mxu0 0
    %2377 = vmatpush1.bf16.msra.mxu0 %v2359
    %2378 = vmatprep.subr.bf16.mxu0 0
    %2379 = vmatpush1.bf16.msra.mxu0 %v2360
    %2380 = vmatprep.subr.bf16.mxu0 0
    %2381 = vmatpush1.bf16.msra.mxu0 %v2361
    %2382 = vmatprep.subr.bf16.mxu0 0
    %2383 = vmatpush1.bf16.msra.mxu0 %v2362
    %2384 = vmatprep.subr.bf16.mxu0 0
    %2385 = vmatpush1.bf16.msra.mxu0 0
    %2386 = vmatprep.subr.bf16.mxu0 0
    %2387 = vmatpush1.bf16.msra.mxu0 0
    %2388 = vmatprep.subr.bf16.mxu0 0
    %2389 = vmatpush1.bf16.msra.mxu0 0
    %2390 = vmatprep.subr.bf16.mxu0 0
    %2391 = vmatpush1.bf16.msra.mxu0 0
    %2392 = vmatprep.subr.bf16.mxu0 0
    %2393 = vmatpush1.bf16.msra.mxu0 0
    %2394 = vmatprep.subr.bf16.mxu0 0
    %2395 = vmatpush1.bf16.msra.mxu0 0
    %2396 = vmatprep.subr.bf16.mxu0 0
    %2397 = vmatpush1.bf16.msra.mxu0 0
    %2398 = vmatprep.subr.bf16.mxu0 0
    %2399 = vmatpush1.bf16.msra.mxu0 0
    %2400 = vmatprep.subr.bf16.mxu0 0
    %2401 = vmatpush1.bf16.msra.mxu0 0
    %2402 = vmatprep.subr.bf16.mxu0 0
    %2403 = vmatpush1.bf16.msra.mxu0 0
    %2404 = vmatprep.mubr.bf16.mxu0 0
    %2405 = vmatmul.mubr.bf16.gmra.mrb[0].mxu0 %v2370
    %v2406 = vpop.f32.mrb[0].mxu0
    %v2407 = vadd.f32 %v2332, %v2406
    %v2408 = vpop.f32.mrb[0].mxu0
    %v2409 = vpop.f32.mrb[0].mxu0
    %v2410 = vpop.f32.mrb[0].mxu0
    %2411 = vdwg.mxu0
    %v2412 = vld [vmem:[%s1] sm:$0xf]
    %v2413 = vmul.f32 %v2407, 0.5
    %v2414 = vmul.f32 %v2413, 1.442695
    %v2415 = vpow.pop %v2414
    %2417 = vrot.lane.b32.xlu0 %v2415, 112
    %v2418 = vpop.permute.xlu0 %2417
    %v2420 = vmul.f32 %v2412, %v2418
    %v2421 = vadd.f32 %v2407, %v2420
    %v2422 = vld [vmem:[%s2 + $0xa68] sm:$0xf]
    %v2423 = vld [vmem:[%s2 + $0xa74] sm:$0xf]
    %v2424 = vpack.c.bf16 %v2421, %v2421
    %v2425 = vld [vmem:[%s3 + $0x1d] ss:$0 sm:$0xff]
    %v2428 = vunpack.c.l.b16 %v2422
    %v2429 = vunpack.c.l.b16 %v2423
    %v2430 = vpack.c.b16 %v2429, %v2428
    %v2433 = vsel %vm133, %v2424, 0
    %2435 = vmatprep.subr.bf16.mxu0 0
    %2436 = vmatpush1.bf16.msra.mxu0 %v2430
    %2437 = vmatprep.subr.bf16.mxu0 0
    %2438 = vmatpush1.bf16.msra.mxu0 0
    %2439 = vmatprep.subr.bf16.mxu0 0
    %2440 = vmatpush1.bf16.msra.mxu0 0
    %2441 = vmatprep.subr.bf16.mxu0 0
    %2442 = vmatpush1.bf16.msra.mxu0 0
    %2443 = vmatprep.subr.bf16.mxu0 0
    %2444 = vmatpush1.bf16.msra.mxu0 0
    %2445 = vmatprep.subr.bf16.mxu0 0
    %2446 = vmatpush1.bf16.msra.mxu0 0
    %2447 = vmatprep.subr.bf16.mxu0 0
    %2448 = vmatpush1.bf16.msra.mxu0 0
    %2449 = vmatprep.subr.bf16.mxu0 0
    %2450 = vmatpush1.bf16.msra.mxu0 0
    %2451 = vmatprep.subr.bf16.mxu0 0
    %2452 = vmatpush1.bf16.msra.mxu0 0
    %2453 = vmatprep.subr.bf16.mxu0 0
    %2454 = vmatpush1.bf16.msra.mxu0 0
    %2455 = vmatprep.subr.bf16.mxu0 0
    %2456 = vmatpush1.bf16.msra.mxu0 0
    %2457 = vmatprep.subr.bf16.mxu0 0
    %2458 = vmatpush1.bf16.msra.mxu0 0
    %2459 = vmatprep.subr.bf16.mxu0 0
    %2460 = vmatpush1.bf16.msra.mxu0 0
    %2461 = vmatprep.subr.bf16.mxu0 0
    %2462 = vmatpush1.bf16.msra.mxu0 0
    %2463 = vmatprep.subr.bf16.mxu0 0
    %2464 = vmatpush1.bf16.msra.mxu0 0
    %2465 = vmatprep.subr.bf16.mxu0 0
    %2466 = vmatpush1.bf16.msra.mxu0 0
    %2467 = vmatprep.mubr.bf16.mxu0 0
    %2468 = vmatmul.mubr.bf16.gmra.mrb[0].mxu0 %v2433
    %v2469 = vpop.f32.mrb[0].mxu0
    %v2470 = vadd.f32 %v2425, %v2469
    %v2471 = vpop.f32.mrb[0].mxu0
    %v2472 = vpop.f32.mrb[0].mxu0
    %v2473 = vpop.f32.mrb[0].mxu0
    %2474 = vdwg.mxu0
    %v2476 = vrot.slane %v2470, 7
    %v2478 = vsel %vm88, 0.0, %v2476
    %v2479 = vsel %vm1869, %v2478, 0.0
    %2481 = vrot.lane.b32.xlu0 %v2479, 32
    %v2482 = vpop.permute.xlu0 %2481
    %2484 = vrot.lane.b32.xlu0 %v2470, 64
    %v2485 = vpop.permute.xlu0 %2484
    %v2487 = vsel %vm156, 0.0, %v2482
    %v2488 = vsel %vm1102, %v2487, %v2485
    %v2489 = vld [vmem:[%s2 + $0xa80] sm:$0xf]
    %v2490 = vld [vmem:[%s2 + $0xa8c] sm:$0xf]
    %v2491 = vld [vmem:[%s2 + $0xa98] sm:$0xf]
    %v2492 = vld [vmem:[%s2 + $0xaa4] sm:$0xf]
    %v2493 = vld [vmem:[%s2 + $0xab0] sm:$0xf]
    %v2494 = vld [vmem:[%s2 + $0xabc] sm:$0xf]
    %v2495 = vld [vmem:[%s2 + $0xac8] sm:$0xf]
    %v2496 = vld [vmem:[%s2 + $0xad4] sm:$0xf]
    %v2497 = vld [vmem:[%s2 + $0xae0] sm:$0xf]
    %v2498 = vld [vmem:[%s2 + $0xaec] sm:$0xf]
    %v2499 = vld [vmem:[%s2 + $0xaf8] sm:$0xf]
    %v2500 = vld [vmem:[%s2 + $0xb04] sm:$0xf]
    %v2501 = vpack.c.bf16 %v2488, %v2488
    %v2502 = vld [vmem:[%s3 + $0x1e] ss:$0 sm:$0xff]
    %v2515 = vunpack.c.l.b16 %v2489
    %v2516 = vunpack.c.l.b16 %v2490
    %v2517 = vunpack.c.l.b16 %v2491
    %v2518 = vunpack.c.l.b16 %v2492
    %v2519 = vunpack.c.l.b16 %v2493
    %v2520 = vunpack.c.l.b16 %v2494
    %v2521 = vunpack.c.l.b16 %v2495
    %v2522 = vunpack.c.l.b16 %v2496
    %v2523 = vunpack.c.l.b16 %v2497
    %v2524 = vunpack.c.l.b16 %v2498
    %v2525 = vunpack.c.l.b16 %v2499
    %v2526 = vunpack.c.l.b16 %v2500
    %v2527 = vpack.c.b16 %v2516, %v2515
    %v2528 = vpack.c.b16 %v2518, %v2517
    %v2529 = vpack.c.b16 %v2520, %v2519
    %v2530 = vpack.c.b16 %v2522, %v2521
    %v2531 = vpack.c.b16 %v2524, %v2523
    %v2532 = vpack.c.b16 %v2526, %v2525
    %v2540 = vsel %vm1104, %v2501, 0
    %2542 = vmatprep.subr.bf16.mxu0 0
    %2543 = vmatpush1.bf16.msra.mxu0 %v2527
    %2544 = vmatprep.subr.bf16.mxu0 0
    %2545 = vmatpush1.bf16.msra.mxu0 %v2528
    %2546 = vmatprep.subr.bf16.mxu0 0
    %2547 = vmatpush1.bf16.msra.mxu0 %v2529
    %2548 = vmatprep.subr.bf16.mxu0 0
    %2549 = vmatpush1.bf16.msra.mxu0 %v2530
    %2550 = vmatprep.subr.bf16.mxu0 0
    %2551 = vmatpush1.bf16.msra.mxu0 %v2531
    %2552 = vmatprep.subr.bf16.mxu0 0
    %2553 = vmatpush1.bf16.msra.mxu0 %v2532
    %2554 = vmatprep.subr.bf16.mxu0 0
    %2555 = vmatpush1.bf16.msra.mxu0 0
    %2556 = vmatprep.subr.bf16.mxu0 0
    %2557 = vmatpush1.bf16.msra.mxu0 0
    %2558 = vmatprep.subr.bf16.mxu0 0
    %2559 = vmatpush1.bf16.msra.mxu0 0
    %2560 = vmatprep.subr.bf16.mxu0 0
    %2561 = vmatpush1.bf16.msra.mxu0 0
    %2562 = vmatprep.subr.bf16.mxu0 0
    %2563 = vmatpush1.bf16.msra.mxu0 0
    %2564 = vmatprep.subr.bf16.mxu0 0
    %2565 = vmatpush1.bf16.msra.mxu0 0
    %2566 = vmatprep.subr.bf16.mxu0 0
    %2567 = vmatpush1.bf16.msra.mxu0 0
    %2568 = vmatprep.subr.bf16.mxu0 0
    %2569 = vmatpush1.bf16.msra.mxu0 0
    %2570 = vmatprep.subr.bf16.mxu0 0
    %2571 = vmatpush1.bf16.msra.mxu0 0
    %2572 = vmatprep.subr.bf16.mxu0 0
    %2573 = vmatpush1.bf16.msra.mxu0 0
    %2574 = vmatprep.mubr.bf16.mxu0 0
    %2575 = vmatmul.mubr.bf16.gmra.mrb[0].mxu0 %v2540
    %v2576 = vpop.f32.mrb[0].mxu0
    %v2577 = vadd.f32 %v2502, %v2576
    %v2578 = vpop.f32.mrb[0].mxu0
    %v2579 = vpop.f32.mrb[0].mxu0
    %v2580 = vpop.f32.mrb[0].mxu0
    %2581 = vdwg.mxu0
    %v2582 = vmax.f32 %v2577, 0.0
    %v2583 = vmax.f32 %v2582, 0.0
    %v2585 = vrot.slane %v2583, 7
    %v2587 = vsel %vm88, 0.0, %v2585
    %v2588 = vsel %vm1869, %v2587, 0.0
    %2590 = vrot.lane.b32.xlu0 %v2588, 32
    %v2591 = vpop.permute.xlu0 %2590
    %2593 = vrot.lane.b32.xlu0 %v2583, 64
    %v2594 = vpop.permute.xlu0 %2593
    %v2596 = vsel %vm156, 0.0, %v2591
    %v2597 = vsel %vm1102, %v2596, %v2594
    %v2598 = vld [vmem:[%s2 + $0xb10] sm:$0xf]
    %v2599 = vld [vmem:[%s2 + $0xb1c] sm:$0xf]
    %v2600 = vld [vmem:[%s2 + $0xb28] sm:$0xf]
    %v2601 = vld [vmem:[%s2 + $0xb34] sm:$0xf]
    %v2602 = vld [vmem:[%s2 + $0xb40] sm:$0xf]
    %v2603 = vld [vmem:[%s2 + $0xb4c] sm:$0xf]
    %v2604 = vld [vmem:[%s2 + $0xb58] sm:$0xf]
    %v2605 = vld [vmem:[%s2 + $0xb64] sm:$0xf]
    %v2606 = vld [vmem:[%s2 + $0xb70] sm:$0xf]
    %v2607 = vld [vmem:[%s2 + $0xb7c] sm:$0xf]
    %v2608 = vld [vmem:[%s2 + $0xb88] sm:$0xf]
    %v2609 = vld [vmem:[%s2 + $0xb94] sm:$0xf]
    %v2610 = vpack.c.bf16 %v2597, %v2597
    %v2611 = vld [vmem:[%s3 + $0x1f] ss:$0 sm:$0xff]
    %v2624 = vunpack.c.l.b16 %v2598
    %v2625 = vunpack.c.l.b16 %v2599
    %v2626 = vunpack.c.l.b16 %v2600
    %v2627 = vunpack.c.l.b16 %v2601
    %v2628 = vunpack.c.l.b16 %v2602
    %v2629 = vunpack.c.l.b16 %v2603
    %v2630 = vunpack.c.l.b16 %v2604
    %v2631 = vunpack.c.l.b16 %v2605
    %v2632 = vunpack.c.l.b16 %v2606
    %v2633 = vunpack.c.l.b16 %v2607
    %v2634 = vunpack.c.l.b16 %v2608
    %v2635 = vunpack.c.l.b16 %v2609
    %v2636 = vpack.c.b16 %v2625, %v2624
    %v2637 = vpack.c.b16 %v2627, %v2626
    %v2638 = vpack.c.b16 %v2629, %v2628
    %v2639 = vpack.c.b16 %v2631, %v2630
    %v2640 = vpack.c.b16 %v2633, %v2632
    %v2641 = vpack.c.b16 %v2635, %v2634
    %v2649 = vsel %vm1104, %v2610, 0
    %2651 = vmatprep.subr.bf16.mxu0 0
    %2652 = vmatpush1.bf16.msra.mxu0 %v2636
    %2653 = vmatprep.subr.bf16.mxu0 0
    %2654 = vmatpush1.bf16.msra.mxu0 %v2637
    %2655 = vmatprep.subr.bf16.mxu0 0
    %2656 = vmatpush1.bf16.msra.mxu0 %v2638
    %2657 = vmatprep.subr.bf16.mxu0 0
    %2658 = vmatpush1.bf16.msra.mxu0 %v2639
    %2659 = vmatprep.subr.bf16.mxu0 0
    %2660 = vmatpush1.bf16.msra.mxu0 %v2640
    %2661 = vmatprep.subr.bf16.mxu0 0
    %2662 = vmatpush1.bf16.msra.mxu0 %v2641
    %2663 = vmatprep.subr.bf16.mxu0 0
    %2664 = vmatpush1.bf16.msra.mxu0 0
    %2665 = vmatprep.subr.bf16.mxu0 0
    %2666 = vmatpush1.bf16.msra.mxu0 0
    %2667 = vmatprep.subr.bf16.mxu0 0
    %2668 = vmatpush1.bf16.msra.mxu0 0
    %2669 = vmatprep.subr.bf16.mxu0 0
    %2670 = vmatpush1.bf16.msra.mxu0 0
    %2671 = vmatprep.subr.bf16.mxu0 0
    %2672 = vmatpush1.bf16.msra.mxu0 0
    %2673 = vmatprep.subr.bf16.mxu0 0
    %2674 = vmatpush1.bf16.msra.mxu0 0
    %2675 = vmatprep.subr.bf16.mxu0 0
    %2676 = vmatpush1.bf16.msra.mxu0 0
    %2677 = vmatprep.subr.bf16.mxu0 0
    %2678 = vmatpush1.bf16.msra.mxu0 0
    %2679 = vmatprep.subr.bf16.mxu0 0
    %2680 = vmatpush1.bf16.msra.mxu0 0
    %2681 = vmatprep.subr.bf16.mxu0 0
    %2682 = vmatpush1.bf16.msra.mxu0 0
    %2683 = vmatprep.mubr.bf16.mxu0 0
    %2684 = vmatmul.mubr.bf16.gmra.mrb[0].mxu0 %v2649
    %v2685 = vpop.f32.mrb[0].mxu0
    %v2686 = vadd.f32 %v2611, %v2685
    %v2687 = vpop.f32.mrb[0].mxu0
    %v2688 = vpop.f32.mrb[0].mxu0
    %v2689 = vpop.f32.mrb[0].mxu0
    %2690 = vdwg.mxu0
    %v2691 = vmax.f32 %v2686, 0.0
    %v2692 = vld [vmem:[%s2 + $0xba0] sm:$0xf]
    %v2693 = vld [vmem:[%s2 + $0xbac] sm:$0xf]
    %v2694 = vld [vmem:[%s2 + $0xbb8] sm:$0xf]
    %v2695 = vld [vmem:[%s2 + $0xbc4] sm:$0xf]
    %v2696 = vpack.c.bf16 %v2691, %v2691
    %v2697 = vld [vmem:[%s3 + $0x30] ss:$0 sm:$0xff]
    %v2702 = vunpack.c.l.b16 %v2692
    %v2703 = vunpack.c.l.b16 %v2693
    %v2704 = vunpack.c.l.b16 %v2694
    %v2705 = vunpack.c.l.b16 %v2695
    %v2706 = vpack.c.b16 %v2703, %v2702
    %v2707 = vpack.c.b16 %v2705, %v2704
    %v2711 = vsel %vm156, %v2696, 0
    %2713 = vmatprep.subr.bf16.mxu0 0
    %2714 = vmatpush1.bf16.msra.mxu0 %v2706
    %2715 = vmatprep.subr.bf16.mxu0 0
    %2716 = vmatpush1.bf16.msra.mxu0 %v2707
    %2717 = vmatprep.subr.bf16.mxu0 0
    %2718 = vmatpush1.bf16.msra.mxu0 0
    %2719 = vmatprep.subr.bf16.mxu0 0
    %2720 = vmatpush1.bf16.msra.mxu0 0
    %2721 = vmatprep.subr.bf16.mxu0 0
    %2722 = vmatpush1.bf16.msra.mxu0 0
    %2723 = vmatprep.subr.bf16.mxu0 0
    %2724 = vmatpush1.bf16.msra.mxu0 0
    %2725 = vmatprep.subr.bf16.mxu0 0
    %2726 = vmatpush1.bf16.msra.mxu0 0
    %2727 = vmatprep.subr.bf16.mxu0 0
    %2728 = vmatpush1.bf16.msra.mxu0 0
    %2729 = vmatprep.subr.bf16.mxu0 0
    %2730 = vmatpush1.bf16.msra.mxu0 0
    %2731 = vmatprep.subr.bf16.mxu0 0
    %2732 = vmatpush1.bf16.msra.mxu0 0
    %2733 = vmatprep.subr.bf16.mxu0 0
    %2734 = vmatpush1.bf16.msra.mxu0 0
    %2735 = vmatprep.subr.bf16.mxu0 0
    %2736 = vmatpush1.bf16.msra.mxu0 0
    %2737 = vmatprep.subr.bf16.mxu0 0
    %2738 = vmatpush1.bf16.msra.mxu0 0
    %2739 = vmatprep.subr.bf16.mxu0 0
    %2740 = vmatpush1.bf16.msra.mxu0 0
    %2741 = vmatprep.subr.bf16.mxu0 0
    %2742 = vmatpush1.bf16.msra.mxu0 0
    %2743 = vmatprep.subr.bf16.mxu0 0
    %2744 = vmatpush1.bf16.msra.mxu0 0
    %2745 = vmatprep.mubr.bf16.mxu0 0
    %2746 = vmatmul.mubr.bf16.gmra.mrb[0].mxu0 %v2711
    %v2747 = vpop.f32.mrb[0].mxu0
    %v2748 = vadd.f32 %v2697, %v2747
    %v2749 = vpop.f32.mrb[0].mxu0
    %v2750 = vpop.f32.mrb[0].mxu0
    %v2751 = vpop.f32.mrb[0].mxu0
    %2752 = vdwg.mxu0
    %v2753 = vadd.f32 %v2582, %v2748
    %v2754 = vmax.f32 %v2753, 0.0
    %2756 = vrot.lane.b32.xlu0 %v2754, 64
    %v2757 = vpop.permute.xlu0 %2756
    %v2759 = vsel %vm1102, 0.0, %v2757
    %v2760 = vld [vmem:[%s2 + $0xbd0] sm:$0xf]
    %v2761 = vld [vmem:[%s2 + $0xbdc] sm:$0xf]
    %v2762 = vld [vmem:[%s2 + $0xbe8] sm:$0xf]
    %v2763 = vld [vmem:[%s2 + $0xbf4] sm:$0xf]
    %v2764 = vld [vmem:[%s2 + $0xc00] sm:$0xf]
    %v2765 = vld [vmem:[%s2 + $0xc0c] sm:$0xf]
    %v2766 = vld [vmem:[%s2 + $0xc18] sm:$0xf]
    %v2767 = vld [vmem:[%s2 + $0xc24] sm:$0xf]
    %v2768 = vld [vmem:[%s2 + $0xc30] sm:$0xf]
    %v2769 = vld [vmem:[%s2 + $0xc3c] sm:$0xf]
    %v2770 = vld [vmem:[%s2 + $0xc48] sm:$0xf]
    %v2771 = vld [vmem:[%s2 + $0xc54] sm:$0xf]
    %v2772 = vpack.c.bf16 %v2759, %v2759
    %v2773 = vld [vmem:[%s3 + $0x31] ss:$0 sm:$0xff]
    %v2786 = vunpack.c.l.b16 %v2760
    %v2787 = vunpack.c.l.b16 %v2761
    %v2788 = vunpack.c.l.b16 %v2762
    %v2789 = vunpack.c.l.b16 %v2763
    %v2790 = vunpack.c.l.b16 %v2764
    %v2791 = vunpack.c.l.b16 %v2765
    %v2792 = vunpack.c.l.b16 %v2766
    %v2793 = vunpack.c.l.b16 %v2767
    %v2794 = vunpack.c.l.b16 %v2768
    %v2795 = vunpack.c.l.b16 %v2769
    %v2796 = vunpack.c.l.b16 %v2770
    %v2797 = vunpack.c.l.b16 %v2771
    %v2798 = vpack.c.b16 %v2787, %v2786
    %v2799 = vpack.c.b16 %v2789, %v2788
    %v2800 = vpack.c.b16 %v2791, %v2790
    %v2801 = vpack.c.b16 %v2793, %v2792
    %v2802 = vpack.c.b16 %v2795, %v2794
    %v2803 = vpack.c.b16 %v2797, %v2796
    %v2811 = vsel %vm1104, %v2772, 0
    %2813 = vmatprep.subr.bf16.mxu0 0
    %2814 = vmatpush1.bf16.msra.mxu0 %v2798
    %2815 = vmatprep.subr.bf16.mxu0 0
    %2816 = vmatpush1.bf16.msra.mxu0 %v2799
    %2817 = vmatprep.subr.bf16.mxu0 0
    %2818 = vmatpush1.bf16.msra.mxu0 %v2800
    %2819 = vmatprep.subr.bf16.mxu0 0
    %2820 = vmatpush1.bf16.msra.mxu0 %v2801
    %2821 = vmatprep.subr.bf16.mxu0 0
    %2822 = vmatpush1.bf16.msra.mxu0 %v2802
    %2823 = vmatprep.subr.bf16.mxu0 0
    %2824 = vmatpush1.bf16.msra.mxu0 %v2803
    %2825 = vmatprep.subr.bf16.mxu0 0
    %2826 = vmatpush1.bf16.msra.mxu0 0
    %2827 = vmatprep.subr.bf16.mxu0 0
    %2828 = vmatpush1.bf16.msra.mxu0 0
    %2829 = vmatprep.subr.bf16.mxu0 0
    %2830 = vmatpush1.bf16.msra.mxu0 0
    %2831 = vmatprep.subr.bf16.mxu0 0
    %2832 = vmatpush1.bf16.msra.mxu0 0
    %2833 = vmatprep.subr.bf16.mxu0 0
    %2834 = vmatpush1.bf16.msra.mxu0 0
    %2835 = vmatprep.subr.bf16.mxu0 0
    %2836 = vmatpush1.bf16.msra.mxu0 0
    %2837 = vmatprep.subr.bf16.mxu0 0
    %2838 = vmatpush1.bf16.msra.mxu0 0
    %2839 = vmatprep.subr.bf16.mxu0 0
    %2840 = vmatpush1.bf16.msra.mxu0 0
    %2841 = vmatprep.subr.bf16.mxu0 0
    %2842 = vmatpush1.bf16.msra.mxu0 0
    %2843 = vmatprep.subr.bf16.mxu0 0
    %2844 = vmatpush1.bf16.msra.mxu0 0
    %2845 = vmatprep.mubr.bf16.mxu0 0
    %2846 = vmatmul.mubr.bf16.gmra.mrb[0].mxu0 %v2811
    %v2847 = vpop.f32.mrb[0].mxu0
    %v2848 = vadd.f32 %v2773, %v2847
    %v2849 = vpop.f32.mrb[0].mxu0
    %v2850 = vpop.f32.mrb[0].mxu0
    %v2851 = vpop.f32.mrb[0].mxu0
    %2852 = vdwg.mxu0
    %v2853 = vmax.f32 %v2848, 0.0
    %v2854 = vld [vmem:[%s2 + $0xc60] sm:$0xf]
    %v2855 = vld [vmem:[%s2 + $0xc6c] sm:$0xf]
    %v2856 = vld [vmem:[%s2 + $0xc78] sm:$0xf]
    %v2857 = vld [vmem:[%s2 + $0xc84] sm:$0xf]
    %v2858 = vpack.c.bf16 %v2853, %v2853
    %v2859 = vld [vmem:[%s3 + $0x32] ss:$0 sm:$0xff]
    %v2864 = vunpack.c.l.b16 %v2854
    %v2865 = vunpack.c.l.b16 %v2855
    %v2866 = vunpack.c.l.b16 %v2856
    %v2867 = vunpack.c.l.b16 %v2857
    %v2868 = vpack.c.b16 %v2865, %v2864
    %v2869 = vpack.c.b16 %v2867, %v2866
    %v2873 = vsel %vm156, %v2858, 0
    %2875 = vmatprep.subr.bf16.mxu0 0
    %2876 = vmatpush1.bf16.msra.mxu0 %v2868
    %2877 = vmatprep.subr.bf16.mxu0 0
    %2878 = vmatpush1.bf16.msra.mxu0 %v2869
    %2879 = vmatprep.subr.bf16.mxu0 0
    %2880 = vmatpush1.bf16.msra.mxu0 0
    %2881 = vmatprep.subr.bf16.mxu0 0
    %2882 = vmatpush1.bf16.msra.mxu0 0
    %2883 = vmatprep.subr.bf16.mxu0 0
    %2884 = vmatpush1.bf16.msra.mxu0 0
    %2885 = vmatprep.subr.bf16.mxu0 0
    %2886 = vmatpush1.bf16.msra.mxu0 0
    %2887 = vmatprep.subr.bf16.mxu0 0
    %2888 = vmatpush1.bf16.msra.mxu0 0
    %2889 = vmatprep.subr.bf16.mxu0 0
    %2890 = vmatpush1.bf16.msra.mxu0 0
    %2891 = vmatprep.subr.bf16.mxu0 0
    %2892 = vmatpush1.bf16.msra.mxu0 0
    %2893 = vmatprep.subr.bf16.mxu0 0
    %2894 = vmatpush1.bf16.msra.mxu0 0
    %2895 = vmatprep.subr.bf16.mxu0 0
    %2896 = vmatpush1.bf16.msra.mxu0 0
    %2897 = vmatprep.subr.bf16.mxu0 0
    %2898 = vmatpush1.bf16.msra.mxu0 0
    %2899 = vmatprep.subr.bf16.mxu0 0
    %2900 = vmatpush1.bf16.msra.mxu0 0
    %2901 = vmatprep.subr.bf16.mxu0 0
    %2902 = vmatpush1.bf16.msra.mxu0 0
    %2903 = vmatprep.subr.bf16.mxu0 0
    %2904 = vmatpush1.bf16.msra.mxu0 0
    %2905 = vmatprep.subr.bf16.mxu0 0
    %2906 = vmatpush1.bf16.msra.mxu0 0
    %2907 = vmatprep.mubr.bf16.mxu0 0
    %2908 = vmatmul.mubr.bf16.gmra.mrb[0].mxu0 %v2873
    %v2909 = vpop.f32.mrb[0].mxu0
    %v2910 = vadd.f32 %v2859, %v2909
    %v2911 = vpop.f32.mrb[0].mxu0
    %v2912 = vpop.f32.mrb[0].mxu0
    %v2913 = vpop.f32.mrb[0].mxu0
    %2914 = vdwg.mxu0
    %v2915 = vadd.f32 %v2753, %v2910
    %v2918 = vunpack.c.l.s4 1966171168
    %v2919 = vunpack.c.0.s8 %v2918
    %v2920 = vlaneseq
    %v2921 = vshrl.u32 %v2920, 7
    %v2922 = vsub.s32 %v2919, %v2921
    %v2923 = vrot.slane %v2915, %v2922
    %v2924 = vcombine.high %v2923, %v2923
    %v2926 = vunpack.c.l.s4 1966171168
    %v2927 = vunpack.c.0.s8 %v2926
    %v2928 = vlaneseq
    %v2929 = vshrl.u32 %v2928, 7
    %v2930 = vsub.s32 %v2927, %v2929
    %v2931 = vrot.slane %v2923, %v2930
    %v2933 = vunpack.c.l.s4 1966171168
    %v2934 = vunpack.c.0.s8 %v2933
    %v2935 = vlaneseq
    %v2936 = vshrl.u32 %v2935, 7
    %v2937 = vsub.s32 %v2934, %v2936
    %v2938 = vrot.slane %v2924, %v2937
    %v2939 = vcombine.high %v2931, %v2931
    %v2940 = vcombine.high %v2938, %v2938
    %v2941 = vlaneseq
    %v2942 = vshrl.u32 %v2941, 7
    %v2943 = vsub.s32 0, %v2942
    %v2944 = vrot.slane %v2931, %v2943
    %v2945 = vlaneseq
    %v2946 = vshrl.u32 %v2945, 7
    %v2947 = vsub.s32 0, %v2946
    %v2948 = vrot.slane %v2938, %v2947
    %v2949 = vlaneseq
    %v2950 = vshrl.u32 %v2949, 7
    %v2951 = vsub.s32 0, %v2950
    %v2952 = vrot.slane %v2939, %v2951
    %v2953 = vlaneseq
    %v2954 = vshrl.u32 %v2953, 7
    %v2955 = vsub.s32 0, %v2954
    %v2956 = vrot.slane %v2940, %v2955
    %v2957 = vcombine.low %v2944, %v2944
    %v2958 = vcombine.low %v2948, %v2952
    %v2960 = vunpack.c.l.s4 1983009808
    %v2961 = vunpack.c.0.s8 %v2960
    %v2962 = vlaneseq
    %v2963 = vshrl.u32 %v2962, 7
    %v2964 = vsub.s32 %v2961, %v2963
    %v2965 = vrot.slane %v2957, %v2964
    %v2967 = vunpack.c.l.s4 1983009808
    %v2968 = vunpack.c.0.s8 %v2967
    %v2969 = vlaneseq
    %v2970 = vshrl.u32 %v2969, 7
    %v2971 = vsub.s32 %v2968, %v2970
    %v2972 = vrot.slane %v2958, %v2971
    %v2973 = vcombine.low %v2965, %v2972
    %v2975 = vsel %vm61, 0.0, %v2973
    %v2976 = vsel %vm1229, %v2975, 0.0
    %v2977 = vcombine.low %v2944, %v2948
    %v2978 = vcombine.low %v2952, %v2956
    %v2980 = vunpack.c.l.s4 1983009808
    %v2981 = vunpack.c.0.s8 %v2980
    %v2982 = vlaneseq
    %v2983 = vshrl.u32 %v2982, 7
    %v2984 = vsub.s32 %v2981, %v2983
    %v2985 = vrot.slane %v2977, %v2984
    %v2987 = vunpack.c.l.s4 1983009808
    %v2988 = vunpack.c.0.s8 %v2987
    %v2989 = vlaneseq
    %v2990 = vshrl.u32 %v2989, 7
    %v2991 = vsub.s32 %v2988, %v2990
    %v2992 = vrot.slane %v2978, %v2991
    %v2993 = vcombine.low %v2985, %v2992
    %v2994 = vrot.slane %v2993, 7
    %v2996 = vsel %vm88, 0.0, %v2994
    %v2997 = vsel %vm1234, %v2996, 0.0
    %2999 = vrot.lane.b32.xlu0 %v2997, 32
    %v3000 = vpop.permute.xlu0 %2999
    %3002 = vrot.lane.b32.xlu0 %v2993, 64
    %v3003 = vpop.permute.xlu0 %3002
    %v3005 = vsel %vm156, %v2976, %v3000
    %v3006 = vsel %vm1102, %v3005, %v3003
    %v3007 = vld [vmem:[%s2 + $0xc90] sm:$0xf]
    %v3008 = vld [vmem:[%s2 + $0xc9c] sm:$0xf]
    %v3009 = vld [vmem:[%s2 + $0xca8] sm:$0xf]
    %v3010 = vld [vmem:[%s2 + $0xcb4] sm:$0xf]
    %v3011 = vld [vmem:[%s2 + $0xcc0] sm:$0xf]
    %v3012 = vld [vmem:[%s2 + $0xccc] sm:$0xf]
    %v3013 = vld [vmem:[%s2 + $0xcd8] sm:$0xf]
    %v3014 = vld [vmem:[%s2 + $0xce4] sm:$0xf]
    %v3015 = vld [vmem:[%s2 + $0xcf0] sm:$0xf]
    %v3016 = vld [vmem:[%s2 + $0xcfc] sm:$0xf]
    %v3017 = vld [vmem:[%s2 + $0xd08] sm:$0xf]
    %v3018 = vld [vmem:[%s2 + $0xd14] sm:$0xf]
    %v3019 = vpack.c.bf16 %v3006, %v3006
    %v3020 = vld [vmem:[%s3 + $0x33] ss:$0 sm:$0xff]
    %v3033 = vunpack.c.l.b16 %v3007
    %v3034 = vunpack.c.l.b16 %v3008
    %v3035 = vunpack.c.l.b16 %v3009
    %v3036 = vunpack.c.l.b16 %v3010
    %v3037 = vunpack.c.l.b16 %v3011
    %v3038 = vunpack.c.l.b16 %v3012
    %v3039 = vunpack.c.l.b16 %v3013
    %v3040 = vunpack.c.l.b16 %v3014
    %v3041 = vunpack.c.l.b16 %v3015
    %v3042 = vunpack.c.l.b16 %v3016
    %v3043 = vunpack.c.l.b16 %v3017
    %v3044 = vunpack.c.l.b16 %v3018
    %v3045 = vpack.c.b16 %v3034, %v3033
    %v3046 = vpack.c.b16 %v3036, %v3035
    %v3047 = vpack.c.b16 %v3038, %v3037
    %v3048 = vpack.c.b16 %v3040, %v3039
    %v3049 = vpack.c.b16 %v3042, %v3041
    %v3050 = vpack.c.b16 %v3044, %v3043
    %v3058 = vsel %vm1104, %v3019, 0
    %3060 = vmatprep.subr.bf16.mxu0 0
    %3061 = vmatpush1.bf16.msra.mxu0 %v3045
    %3062 = vmatprep.subr.bf16.mxu0 0
    %3063 = vmatpush1.bf16.msra.mxu0 %v3046
    %3064 = vmatprep.subr.bf16.mxu0 0
    %3065 = vmatpush1.bf16.msra.mxu0 %v3047
    %3066 = vmatprep.subr.bf16.mxu0 0
    %3067 = vmatpush1.bf16.msra.mxu0 %v3048
    %3068 = vmatprep.subr.bf16.mxu0 0
    %3069 = vmatpush1.bf16.msra.mxu0 %v3049
    %3070 = vmatprep.subr.bf16.mxu0 0
    %3071 = vmatpush1.bf16.msra.mxu0 %v3050
    %3072 = vmatprep.subr.bf16.mxu0 0
    %3073 = vmatpush1.bf16.msra.mxu0 0
    %3074 = vmatprep.subr.bf16.mxu0 0
    %3075 = vmatpush1.bf16.msra.mxu0 0
    %3076 = vmatprep.subr.bf16.mxu0 0
    %3077 = vmatpush1.bf16.msra.mxu0 0
    %3078 = vmatprep.subr.bf16.mxu0 0
    %3079 = vmatpush1.bf16.msra.mxu0 0
    %3080 = vmatprep.subr.bf16.mxu0 0
    %3081 = vmatpush1.bf16.msra.mxu0 0
    %3082 = vmatprep.subr.bf16.mxu0 0
    %3083 = vmatpush1.bf16.msra.mxu0 0
    %3084 = vmatprep.subr.bf16.mxu0 0
    %3085 = vmatpush1.bf16.msra.mxu0 0
    %3086 = vmatprep.subr.bf16.mxu0 0
    %3087 = vmatpush1.bf16.msra.mxu0 0
    %3088 = vmatprep.subr.bf16.mxu0 0
    %3089 = vmatpush1.bf16.msra.mxu0 0
    %3090 = vmatprep.subr.bf16.mxu0 0
    %3091 = vmatpush1.bf16.msra.mxu0 0
    %3092 = vmatprep.mubr.bf16.mxu0 0
    %3093 = vmatmul.mubr.bf16.gmra.mrb[0].mxu0 %v3058
    %v3094 = vpop.f32.mrb[0].mxu0
    %v3095 = vadd.f32 %v3020, %v3094
    %v3096 = vpop.f32.mrb[0].mxu0
    %v3097 = vpop.f32.mrb[0].mxu0
    %v3098 = vpop.f32.mrb[0].mxu0
    %3099 = vdwg.mxu0
    %v3100 = vmax.f32 %v3095, 0.0
    %v3102 = vrot.slane %v3100, 6
    %v3104 = vsel %vm61, 0.0, %v3102
    %v3105 = vsel %vm1229, %v3104, 0.0
    %v3106 = vrot.slane %v3100, 7
    %v3108 = vsel %vm88, 0.0, %v3106
    %v3109 = vsel %vm1234, %v3108, 0.0
    %3111 = vrot.lane.b32.xlu0 %v3109, 32
    %v3112 = vpop.permute.xlu0 %3111
    %3114 = vrot.lane.b32.xlu0 %v3100, 64
    %v3115 = vpop.permute.xlu0 %3114
    %v3117 = vsel %vm156, %v3105, %v3112
    %v3118 = vsel %vm1102, %v3117, %v3115
    %v3119 = vld [vmem:[%s2 + $0xd20] sm:$0xf]
    %v3120 = vld [vmem:[%s2 + $0xd2c] sm:$0xf]
    %v3121 = vld [vmem:[%s2 + $0xd38] sm:$0xf]
    %v3122 = vld [vmem:[%s2 + $0xd44] sm:$0xf]
    %v3123 = vld [vmem:[%s2 + $0xd50] sm:$0xf]
    %v3124 = vld [vmem:[%s2 + $0xd5c] sm:$0xf]
    %v3125 = vld [vmem:[%s2 + $0xd68] sm:$0xf]
    %v3126 = vld [vmem:[%s2 + $0xd74] sm:$0xf]
    %v3127 = vld [vmem:[%s2 + $0xd80] sm:$0xf]
    %v3128 = vld [vmem:[%s2 + $0xd8c] sm:$0xf]
    %v3129 = vld [vmem:[%s2 + $0xd98] sm:$0xf]
    %v3130 = vld [vmem:[%s2 + $0xda4] sm:$0xf]
    %v3131 = vpack.c.bf16 %v3118, %v3118
    %v3132 = vld [vmem:[%s3 + $0x34] ss:$0 sm:$0xff]
    %v3145 = vunpack.c.l.b16 %v3119
    %v3146 = vunpack.c.l.b16 %v3120
    %v3147 = vunpack.c.l.b16 %v3121
    %v3148 = vunpack.c.l.b16 %v3122
    %v3149 = vunpack.c.l.b16 %v3123
    %v3150 = vunpack.c.l.b16 %v3124
    %v3151 = vunpack.c.l.b16 %v3125
    %v3152 = vunpack.c.l.b16 %v3126
    %v3153 = vunpack.c.l.b16 %v3127
    %v3154 = vunpack.c.l.b16 %v3128
    %v3155 = vunpack.c.l.b16 %v3129
    %v3156 = vunpack.c.l.b16 %v3130
    %v3157 = vpack.c.b16 %v3146, %v3145
    %v3158 = vpack.c.b16 %v3148, %v3147
    %v3159 = vpack.c.b16 %v3150, %v3149
    %v3160 = vpack.c.b16 %v3152, %v3151
    %v3161 = vpack.c.b16 %v3154, %v3153
    %v3162 = vpack.c.b16 %v3156, %v3155
    %v3170 = vsel %vm1104, %v3131, 0
    %3172 = vmatprep.subr.bf16.mxu0 0
    %3173 = vmatpush1.bf16.msra.mxu0 %v3157
    %3174 = vmatprep.subr.bf16.mxu0 0
    %3175 = vmatpush1.bf16.msra.mxu0 %v3158
    %3176 = vmatprep.subr.bf16.mxu0 0
    %3177 = vmatpush1.bf16.msra.mxu0 %v3159
    %3178 = vmatprep.subr.bf16.mxu0 0
    %3179 = vmatpush1.bf16.msra.mxu0 %v3160
    %3180 = vmatprep.subr.bf16.mxu0 0
    %3181 = vmatpush1.bf16.msra.mxu0 %v3161
    %3182 = vmatprep.subr.bf16.mxu0 0
    %3183 = vmatpush1.bf16.msra.mxu0 %v3162
    %3184 = vmatprep.subr.bf16.mxu0 0
    %3185 = vmatpush1.bf16.msra.mxu0 0
    %3186 = vmatprep.subr.bf16.mxu0 0
    %3187 = vmatpush1.bf16.msra.mxu0 0
    %3188 = vmatprep.subr.bf16.mxu0 0
    %3189 = vmatpush1.bf16.msra.mxu0 0
    %3190 = vmatprep.subr.bf16.mxu0 0
    %3191 = vmatpush1.bf16.msra.mxu0 0
    %3192 = vmatprep.subr.bf16.mxu0 0
    %3193 = vmatpush1.bf16.msra.mxu0 0
    %3194 = vmatprep.subr.bf16.mxu0 0
    %3195 = vmatpush1.bf16.msra.mxu0 0
    %3196 = vmatprep.subr.bf16.mxu0 0
    %3197 = vmatpush1.bf16.msra.mxu0 0
    %3198 = vmatprep.subr.bf16.mxu0 0
    %3199 = vmatpush1.bf16.msra.mxu0 0
    %3200 = vmatprep.subr.bf16.mxu0 0
    %3201 = vmatpush1.bf16.msra.mxu0 0
    %3202 = vmatprep.subr.bf16.mxu0 0
    %3203 = vmatpush1.bf16.msra.mxu0 0
    %3204 = vmatprep.mubr.bf16.mxu0 0
    %3205 = vmatmul.mubr.bf16.gmra.mrb[0].mxu0 %v3170
    %v3206 = vpop.f32.mrb[0].mxu0
    %v3207 = vadd.f32 %v3132, %v3206
    %v3208 = vpop.f32.mrb[0].mxu0
    %v3209 = vpop.f32.mrb[0].mxu0
    %v3210 = vpop.f32.mrb[0].mxu0
    %3211 = vdwg.mxu0
    %v3212 = vmax.f32 %v3207, 0.0
    %v3213 = vld [vmem:[%s2 + $0xdb0] sm:$0xf]
    %v3214 = vld [vmem:[%s2 + $0xdbc] sm:$0xf]
    %v3215 = vld [vmem:[%s2 + $0xdc8] sm:$0xf]
    %v3216 = vld [vmem:[%s2 + $0xdd4] sm:$0xf]
    %v3217 = vpack.c.bf16 %v3212, %v3212
    %v3218 = vld [vmem:[%s3 + $0x35] ss:$0 sm:$0xff]
    %v3223 = vunpack.c.l.b16 %v3213
    %v3224 = vunpack.c.l.b16 %v3214
    %v3225 = vunpack.c.l.b16 %v3215
    %v3226 = vunpack.c.l.b16 %v3216
    %v3227 = vpack.c.b16 %v3224, %v3223
    %v3228 = vpack.c.b16 %v3226, %v3225
    %v3232 = vsel %vm156, %v3217, 0
    %3234 = vmatprep.subr.bf16.mxu0 0
    %3235 = vmatpush1.bf16.msra.mxu0 %v3227
    %3236 = vmatprep.subr.bf16.mxu0 0
    %3237 = vmatpush1.bf16.msra.mxu0 %v3228
    %3238 = vmatprep.subr.bf16.mxu0 0
    %3239 = vmatpush1.bf16.msra.mxu0 0
    %3240 = vmatprep.subr.bf16.mxu0 0
    %3241 = vmatpush1.bf16.msra.mxu0 0
    %3242 = vmatprep.subr.bf16.mxu0 0
    %3243 = vmatpush1.bf16.msra.mxu0 0
    %3244 = vmatprep.subr.bf16.mxu0 0
    %3245 = vmatpush1.bf16.msra.mxu0 0
    %3246 = vmatprep.subr.bf16.mxu0 0
    %3247 = vmatpush1.bf16.msra.mxu0 0
    %3248 = vmatprep.subr.bf16.mxu0 0
    %3249 = vmatpush1.bf16.msra.mxu0 0
    %3250 = vmatprep.subr.bf16.mxu0 0
    %3251 = vmatpush1.bf16.msra.mxu0 0
    %3252 = vmatprep.subr.bf16.mxu0 0
    %3253 = vmatpush1.bf16.msra.mxu0 0
    %3254 = vmatprep.subr.bf16.mxu0 0
    %3255 = vmatpush1.bf16.msra.mxu0 0
    %3256 = vmatprep.subr.bf16.mxu0 0
    %3257 = vmatpush1.bf16.msra.mxu0 0
    %3258 = vmatprep.subr.bf16.mxu0 0
    %3259 = vmatpush1.bf16.msra.mxu0 0
    %3260 = vmatprep.subr.bf16.mxu0 0
    %3261 = vmatpush1.bf16.msra.mxu0 0
    %3262 = vmatprep.subr.bf16.mxu0 0
    %3263 = vmatpush1.bf16.msra.mxu0 0
    %3264 = vmatprep.subr.bf16.mxu0 0
    %3265 = vmatpush1.bf16.msra.mxu0 0
    %3266 = vmatprep.mubr.bf16.mxu0 0
    %3267 = vmatmul.mubr.bf16.gmra.mrb[0].mxu0 %v3232
    %v3268 = vpop.f32.mrb[0].mxu0
    %v3269 = vadd.f32 %v3218, %v3268
    %v3270 = vpop.f32.mrb[0].mxu0
    %v3271 = vpop.f32.mrb[0].mxu0
    %v3272 = vpop.f32.mrb[0].mxu0
    %3273 = vdwg.mxu0
    %v3274 = vadd.f32 %v3095, %v3269
    %v3275 = vmax.f32 %v3274, 0.0
    %v3277 = vrot.slane %v3275, 5
    %v3279 = vsel %vm759, 0.0, %v3277
    %v3280 = vsel %vm1406, %v3279, 0.0
    %3282 = vrot.lane.b32.xlu0 %v3280, 32
    %v3283 = vpop.permute.xlu0 %3282
    %3285 = vrot.lane.b32.xlu0 %v3275, 64
    %v3286 = vpop.permute.xlu0 %3285
    %v3288 = vsel %vm156, 0.0, %v3283
    %v3289 = vsel %vm1102, %v3288, %v3286
    %v3290 = vld [vmem:[%s2 + $0xde0] sm:$0xf]
    %v3291 = vld [vmem:[%s2 + $0xdec] sm:$0xf]
    %v3292 = vld [vmem:[%s2 + $0xdf8] sm:$0xf]
    %v3293 = vld [vmem:[%s2 + $0xe04] sm:$0xf]
    %v3294 = vld [vmem:[%s2 + $0xe10] sm:$0xf]
    %v3295 = vld [vmem:[%s2 + $0xe1c] sm:$0xf]
    %v3296 = vld [vmem:[%s2 + $0xe28] sm:$0xf]
    %v3297 = vld [vmem:[%s2 + $0xe34] sm:$0xf]
    %v3298 = vld [vmem:[%s2 + $0xe40] sm:$0xf]
    %v3299 = vld [vmem:[%s2 + $0xe4c] sm:$0xf]
    %v3300 = vld [vmem:[%s2 + $0xe58] sm:$0xf]
    %v3301 = vld [vmem:[%s2 + $0xe64] sm:$0xf]
    %v3302 = vpack.c.bf16 %v3289, %v3289
    %v3303 = vld [vmem:[%s3 + $0x36] ss:$0 sm:$0xff]
    %v3316 = vunpack.c.l.b16 %v3290
    %v3317 = vunpack.c.l.b16 %v3291
    %v3318 = vunpack.c.l.b16 %v3292
    %v3319 = vunpack.c.l.b16 %v3293
    %v3320 = vunpack.c.l.b16 %v3294
    %v3321 = vunpack.c.l.b16 %v3295
    %v3322 = vunpack.c.l.b16 %v3296
    %v3323 = vunpack.c.l.b16 %v3297
    %v3324 = vunpack.c.l.b16 %v3298
    %v3325 = vunpack.c.l.b16 %v3299
    %v3326 = vunpack.c.l.b16 %v3300
    %v3327 = vunpack.c.l.b16 %v3301
    %v3328 = vpack.c.b16 %v3317, %v3316
    %v3329 = vpack.c.b16 %v3319, %v3318
    %v3330 = vpack.c.b16 %v3321, %v3320
    %v3331 = vpack.c.b16 %v3323, %v3322
    %v3332 = vpack.c.b16 %v3325, %v3324
    %v3333 = vpack.c.b16 %v3327, %v3326
    %v3341 = vsel %vm1104, %v3302, 0
    %3343 = vmatprep.subr.bf16.mxu0 0
    %3344 = vmatpush1.bf16.msra.mxu0 %v3328
    %3345 = vmatprep.subr.bf16.mxu0 0
    %3346 = vmatpush1.bf16.msra.mxu0 %v3329
    %3347 = vmatprep.subr.bf16.mxu0 0
    %3348 = vmatpush1.bf16.msra.mxu0 %v3330
    %3349 = vmatprep.subr.bf16.mxu0 0
    %3350 = vmatpush1.bf16.msra.mxu0 %v3331
    %3351 = vmatprep.subr.bf16.mxu0 0
    %3352 = vmatpush1.bf16.msra.mxu0 %v3332
    %3353 = vmatprep.subr.bf16.mxu0 0
    %3354 = vmatpush1.bf16.msra.mxu0 %v3333
    %3355 = vmatprep.subr.bf16.mxu0 0
    %3356 = vmatpush1.bf16.msra.mxu0 0
    %3357 = vmatprep.subr.bf16.mxu0 0
    %3358 = vmatpush1.bf16.msra.mxu0 0
    %3359 = vmatprep.subr.bf16.mxu0 0
    %3360 = vmatpush1.bf16.msra.mxu0 0
    %3361 = vmatprep.subr.bf16.mxu0 0
    %3362 = vmatpush1.bf16.msra.mxu0 0
    %3363 = vmatprep.subr.bf16.mxu0 0
    %3364 = vmatpush1.bf16.msra.mxu0 0
    %3365 = vmatprep.subr.bf16.mxu0 0
    %3366 = vmatpush1.bf16.msra.mxu0 0
    %3367 = vmatprep.subr.bf16.mxu0 0
    %3368 = vmatpush1.bf16.msra.mxu0 0
    %3369 = vmatprep.subr.bf16.mxu0 0
    %3370 = vmatpush1.bf16.msra.mxu0 0
    %3371 = vmatprep.subr.bf16.mxu0 0
    %3372 = vmatpush1.bf16.msra.mxu0 0
    %3373 = vmatprep.subr.bf16.mxu0 0
    %3374 = vmatpush1.bf16.msra.mxu0 0
    %3375 = vmatprep.mubr.bf16.mxu0 0
    %3376 = vmatmul.mubr.bf16.gmra.mrb[0].mxu0 %v3341
    %v3377 = vpop.f32.mrb[0].mxu0
    %v3378 = vadd.f32 %v3303, %v3377
    %v3379 = vpop.f32.mrb[0].mxu0
    %v3380 = vpop.f32.mrb[0].mxu0
    %v3381 = vpop.f32.mrb[0].mxu0
    %3382 = vdwg.mxu0
    %v3383 = vmax.f32 %v3378, 0.0
    %v3384 = vld [vmem:[%s2 + $0xe70] sm:$0xf]
    %v3385 = vld [vmem:[%s2 + $0xe7c] sm:$0xf]
    %v3386 = vld [vmem:[%s2 + $0xe88] sm:$0xf]
    %v3387 = vld [vmem:[%s2 + $0xe94] sm:$0xf]
    %v3388 = vpack.c.bf16 %v3383, %v3383
    %v3389 = vld [vmem:[%s3 + $0x37] ss:$0 sm:$0xff]
    %v3394 = vunpack.c.l.b16 %v3384
    %v3395 = vunpack.c.l.b16 %v3385
    %v3396 = vunpack.c.l.b16 %v3386
    %v3397 = vunpack.c.l.b16 %v3387
    %v3398 = vpack.c.b16 %v3395, %v3394
    %v3399 = vpack.c.b16 %v3397, %v3396
    %v3403 = vsel %vm156, %v3388, 0
    %3405 = vmatprep.subr.bf16.mxu0 0
    %3406 = vmatpush1.bf16.msra.mxu0 %v3398
    %3407 = vmatprep.subr.bf16.mxu0 0
    %3408 = vmatpush1.bf16.msra.mxu0 %v3399
    %3409 = vmatprep.subr.bf16.mxu0 0
    %3410 = vmatpush1.bf16.msra.mxu0 0
    %3411 = vmatprep.subr.bf16.mxu0 0
    %3412 = vmatpush1.bf16.msra.mxu0 0
    %3413 = vmatprep.subr.bf16.mxu0 0
    %3414 = vmatpush1.bf16.msra.mxu0 0
    %3415 = vmatprep.subr.bf16.mxu0 0
    %3416 = vmatpush1.bf16.msra.mxu0 0
    %3417 = vmatprep.subr.bf16.mxu0 0
    %3418 = vmatpush1.bf16.msra.mxu0 0
    %3419 = vmatprep.subr.bf16.mxu0 0
    %3420 = vmatpush1.bf16.msra.mxu0 0
    %3421 = vmatprep.subr.bf16.mxu0 0
    %3422 = vmatpush1.bf16.msra.mxu0 0
    %3423 = vmatprep.subr.bf16.mxu0 0
    %3424 = vmatpush1.bf16.msra.mxu0 0
    %3425 = vmatprep.subr.bf16.mxu0 0
    %3426 = vmatpush1.bf16.msra.mxu0 0
    %3427 = vmatprep.subr.bf16.mxu0 0
    %3428 = vmatpush1.bf16.msra.mxu0 0
    %3429 = vmatprep.subr.bf16.mxu0 0
    %3430 = vmatpush1.bf16.msra.mxu0 0
    %3431 = vmatprep.subr.bf16.mxu0 0
    %3432 = vmatpush1.bf16.msra.mxu0 0
    %3433 = vmatprep.subr.bf16.mxu0 0
    %3434 = vmatpush1.bf16.msra.mxu0 0
    %3435 = vmatprep.subr.bf16.mxu0 0
    %3436 = vmatpush1.bf16.msra.mxu0 0
    %3437 = vmatprep.mubr.bf16.mxu0 0
    %3438 = vmatmul.mubr.bf16.gmra.mrb[0].mxu0 %v3403
    %v3439 = vpop.f32.mrb[0].mxu0
    %v3440 = vadd.f32 %v3389, %v3439
    %v3441 = vpop.f32.mrb[0].mxu0
    %v3442 = vpop.f32.mrb[0].mxu0
    %v3443 = vpop.f32.mrb[0].mxu0
    %3444 = vdwg.mxu0
    %v3445 = vadd.f32 %v3274, %v3440
    %v3447 = vcombine.high %v3445, %v3445
    %v3449 = vunpack.c.l.s4 1966171168
    %v3450 = vunpack.c.0.s8 %v3449
    %v3451 = vlaneseq
    %v3452 = vshrl.u32 %v3451, 7
    %v3453 = vsub.s32 %v3450, %v3452
    %v3454 = vrot.slane %v3445, %v3453
    %v3456 = vunpack.c.l.s4 1966171168
    %v3457 = vunpack.c.0.s8 %v3456
    %v3458 = vlaneseq
    %v3459 = vshrl.u32 %v3458, 7
    %v3460 = vsub.s32 %v3457, %v3459
    %v3461 = vrot.slane %v3447, %v3460
    %v3462 = vcombine.high %v3454, %v3454
    %v3463 = vcombine.high %v3461, %v3461
    %v3465 = vunpack.c.l.s4 1966171168
    %v3466 = vunpack.c.0.s8 %v3465
    %v3467 = vlaneseq
    %v3468 = vshrl.u32 %v3467, 7
    %v3469 = vsub.s32 %v3466, %v3468
    %v3470 = vrot.slane %v3454, %v3469
    %v3472 = vunpack.c.l.s4 1966171168
    %v3473 = vunpack.c.0.s8 %v3472
    %v3474 = vlaneseq
    %v3475 = vshrl.u32 %v3474, 7
    %v3476 = vsub.s32 %v3473, %v3475
    %v3477 = vrot.slane %v3461, %v3476
    %v3479 = vunpack.c.l.s4 1966171168
    %v3480 = vunpack.c.0.s8 %v3479
    %v3481 = vlaneseq
    %v3482 = vshrl.u32 %v3481, 7
    %v3483 = vsub.s32 %v3480, %v3482
    %v3484 = vrot.slane %v3462, %v3483
    %v3486 = vunpack.c.l.s4 1966171168
    %v3487 = vunpack.c.0.s8 %v3486
    %v3488 = vlaneseq
    %v3489 = vshrl.u32 %v3488, 7
    %v3490 = vsub.s32 %v3487, %v3489
    %v3491 = vrot.slane %v3463, %v3490
    %v3492 = vcombine.high %v3470, %v3470
    %v3493 = vcombine.high %v3477, %v3477
    %v3494 = vcombine.high %v3484, %v3484
    %v3495 = vcombine.high %v3491, %v3491
    %v3496 = vlaneseq
    %v3497 = vshrl.u32 %v3496, 7
    %v3498 = vsub.s32 0, %v3497
    %v3499 = vrot.slane %v3470, %v3498
    %v3500 = vlaneseq
    %v3501 = vshrl.u32 %v3500, 7
    %v3502 = vsub.s32 0, %v3501
    %v3503 = vrot.slane %v3484, %v3502
    %v3504 = vlaneseq
    %v3505 = vshrl.u32 %v3504, 7
    %v3506 = vsub.s32 0, %v3505
    %v3507 = vrot.slane %v3492, %v3506
    %v3508 = vlaneseq
    %v3509 = vshrl.u32 %v3508, 7
    %v3510 = vsub.s32 0, %v3509
    %v3511 = vrot.slane %v3494, %v3510
    %v3512 = vlaneseq
    %v3513 = vshrl.u32 %v3512, 7
    %v3514 = vsub.s32 0, %v3513
    %v3515 = vrot.slane %v3477, %v3514
    %v3516 = vlaneseq
    %v3517 = vshrl.u32 %v3516, 7
    %v3518 = vsub.s32 0, %v3517
    %v3519 = vrot.slane %v3491, %v3518
    %v3520 = vlaneseq
    %v3521 = vshrl.u32 %v3520, 7
    %v3522 = vsub.s32 0, %v3521
    %v3523 = vrot.slane %v3493, %v3522
    %v3524 = vlaneseq
    %v3525 = vshrl.u32 %v3524, 7
    %v3526 = vsub.s32 0, %v3525
    %v3527 = vrot.slane %v3495, %v3526
    %v3528 = vcombine.low %v3499, %v3499
    %v3529 = vcombine.low %v3503, %v3507
    %v3531 = vunpack.c.l.s4 1983009808
    %v3532 = vunpack.c.0.s8 %v3531
    %v3533 = vlaneseq
    %v3534 = vshrl.u32 %v3533, 7
    %v3535 = vsub.s32 %v3532, %v3534
    %v3536 = vrot.slane %v3528, %v3535
    %v3538 = vunpack.c.l.s4 1983009808
    %v3539 = vunpack.c.0.s8 %v3538
    %v3540 = vlaneseq
    %v3541 = vshrl.u32 %v3540, 7
    %v3542 = vsub.s32 %v3539, %v3541
    %v3543 = vrot.slane %v3529, %v3542
    %v3544 = vcombine.low %v3536, %v3543
    %v3545 = vcombine.low %v3511, %v3515
    %v3546 = vcombine.low %v3519, %v3523
    %v3548 = vunpack.c.l.s4 1983009808
    %v3549 = vunpack.c.0.s8 %v3548
    %v3550 = vlaneseq
    %v3551 = vshrl.u32 %v3550, 7
    %v3552 = vsub.s32 %v3549, %v3551
    %v3553 = vrot.slane %v3545, %v3552
    %v3555 = vunpack.c.l.s4 1983009808
    %v3556 = vunpack.c.0.s8 %v3555
    %v3557 = vlaneseq
    %v3558 = vshrl.u32 %v3557, 7
    %v3559 = vsub.s32 %v3556, %v3558
    %v3560 = vrot.slane %v3546, %v3559
    %v3561 = vcombine.low %v3553, %v3560
    %v3564 = vsel %vm61, 0.0, %v3544
    %v3565 = vsel %vm80, %v3564, 0.0
    %v3566 = vsel %vm81, %v3561, 0.0
    %v3567 = vcombine.low %v3499, %v3503
    %v3568 = vcombine.low %v3507, %v3511
    %v3570 = vunpack.c.l.s4 1983009808
    %v3571 = vunpack.c.0.s8 %v3570
    %v3572 = vlaneseq
    %v3573 = vshrl.u32 %v3572, 7
    %v3574 = vsub.s32 %v3571, %v3573
    %v3575 = vrot.slane %v3567, %v3574
    %v3577 = vunpack.c.l.s4 1983009808
    %v3578 = vunpack.c.0.s8 %v3577
    %v3579 = vlaneseq
    %v3580 = vshrl.u32 %v3579, 7
    %v3581 = vsub.s32 %v3578, %v3580
    %v3582 = vrot.slane %v3568, %v3581
    %v3583 = vcombine.low %v3575, %v3582
    %v3584 = vcombine.low %v3515, %v3519
    %v3585 = vcombine.low %v3523, %v3527
    %v3587 = vunpack.c.l.s4 1983009808
    %v3588 = vunpack.c.0.s8 %v3587
    %v3589 = vlaneseq
    %v3590 = vshrl.u32 %v3589, 7
    %v3591 = vsub.s32 %v3588, %v3590
    %v3592 = vrot.slane %v3584, %v3591
    %v3594 = vunpack.c.l.s4 1983009808
    %v3595 = vunpack.c.0.s8 %v3594
    %v3596 = vlaneseq
    %v3597 = vshrl.u32 %v3596, 7
    %v3598 = vsub.s32 %v3595, %v3597
    %v3599 = vrot.slane %v3585, %v3598
    %v3600 = vcombine.low %v3592, %v3599
    %v3601 = vrot.slane %v3583, 7
    %v3602 = vrot.slane %v3600, 7
    %v3603 = vsel %vm88, %v3601, %v3602
    %v3606 = vsel %vm88, 0.0, %v3601
    %v3607 = vsel %vm107, %v3606, 0.0
    %v3608 = vsel %vm108, %v3603, 0.0
    %3611 = vrot.lane.b32.xlu0 %v3607, 32
    %v3612 = vpop.permute.xlu0 %3611
    %3613 = vrot.lane.b32.xlu0 %v3608, 32
    %v3614 = vpop.permute.xlu0 %3613
    %3617 = vrot.lane.b32.xlu0 %v3583, 64
    %v3618 = vpop.permute.xlu0 %3617
    %3619 = vrot.lane.b32.xlu0 %v3600, 64
    %v3620 = vpop.permute.xlu0 %3619
    %v3623 = vsel %vm156, %v3565, %v3612
    %v3624 = vsel %vm156, %v3566, %v3614
    %v3625 = vsel %vm1102, %v3623, %v3618
    %v3626 = vsel %vm1102, %v3624, %v3620
    %v3627 = vld [vmem:[%s2 + $0xea0] sm:$0xf]
    %v3628 = vld [vmem:[%s2 + $0xeac] sm:$0xf]
    %v3629 = vld [vmem:[%s2 + $0xeb8] sm:$0xf]
    %v3630 = vld [vmem:[%s2 + $0xec4] sm:$0xf]
    %v3631 = vld [vmem:[%s2 + $0xed0] sm:$0xf]
    %v3632 = vld [vmem:[%s2 + $0xedc] sm:$0xf]
    %v3633 = vld [vmem:[%s2 + $0xee8] sm:$0xf]
    %v3634 = vld [vmem:[%s2 + $0xef4] sm:$0xf]
    %v3635 = vld [vmem:[%s2 + $0xf00] sm:$0xf]
    %v3636 = vld [vmem:[%s2 + $0xf0c] sm:$0xf]
    %v3637 = vld [vmem:[%s2 + $0xf18] sm:$0xf]
    %v3638 = vld [vmem:[%s2 + $0xf24] sm:$0xf]
    %v3639 = vpack.c.bf16 %v3626, %v3625
    %v3640 = vld [vmem:[%s3 + $0x48] ss:$0 sm:$0xff]
    %v3653 = vunpack.c.l.b16 %v3627
    %v3654 = vunpack.c.l.b16 %v3628
    %v3655 = vunpack.c.l.b16 %v3629
    %v3656 = vunpack.c.l.b16 %v3630
    %v3657 = vunpack.c.l.b16 %v3631
    %v3658 = vunpack.c.l.b16 %v3632
    %v3659 = vunpack.c.l.b16 %v3633
    %v3660 = vunpack.c.l.b16 %v3634
    %v3661 = vunpack.c.l.b16 %v3635
    %v3662 = vunpack.c.l.b16 %v3636
    %v3663 = vunpack.c.l.b16 %v3637
    %v3664 = vunpack.c.l.b16 %v3638
    %v3665 = vpack.c.b16 %v3654, %v3653
    %v3666 = vpack.c.b16 %v3656, %v3655
    %v3667 = vpack.c.b16 %v3658, %v3657
    %v3668 = vpack.c.b16 %v3660, %v3659
    %v3669 = vpack.c.b16 %v3662, %v3661
    %v3670 = vpack.c.b16 %v3664, %v3663
    %v3678 = vsel %vm1104, %v3639, 0
    %3680 = vmatprep.subr.bf16.mxu0 0
    %3681 = vmatpush1.bf16.msra.mxu0 %v3665
    %3682 = vmatprep.subr.bf16.mxu0 0
    %3683 = vmatpush1.bf16.msra.mxu0 %v3666
    %3684 = vmatprep.subr.bf16.mxu0 0
    %3685 = vmatpush1.bf16.msra.mxu0 %v3667
    %3686 = vmatprep.subr.bf16.mxu0 0
    %3687 = vmatpush1.bf16.msra.mxu0 %v3668
    %3688 = vmatprep.subr.bf16.mxu0 0
    %3689 = vmatpush1.bf16.msra.mxu0 %v3669
    %3690 = vmatprep.subr.bf16.mxu0 0
    %3691 = vmatpush1.bf16.msra.mxu0 %v3670
    %3692 = vmatprep.subr.bf16.mxu0 0
    %3693 = vmatpush1.bf16.msra.mxu0 0
    %3694 = vmatprep.subr.bf16.mxu0 0
    %3695 = vmatpush1.bf16.msra.mxu0 0
    %3696 = vmatprep.subr.bf16.mxu0 0
    %3697 = vmatpush1.bf16.msra.mxu0 0
    %3698 = vmatprep.subr.bf16.mxu0 0
    %3699 = vmatpush1.bf16.msra.mxu0 0
    %3700 = vmatprep.subr.bf16.mxu0 0
    %3701 = vmatpush1.bf16.msra.mxu0 0
    %3702 = vmatprep.subr.bf16.mxu0 0
    %3703 = vmatpush1.bf16.msra.mxu0 0
    %3704 = vmatprep.subr.bf16.mxu0 0
    %3705 = vmatpush1.bf16.msra.mxu0 0
    %3706 = vmatprep.subr.bf16.mxu0 0
    %3707 = vmatpush1.bf16.msra.mxu0 0
    %3708 = vmatprep.subr.bf16.mxu0 0
    %3709 = vmatpush1.bf16.msra.mxu0 0
    %3710 = vmatprep.subr.bf16.mxu0 0
    %3711 = vmatpush1.bf16.msra.mxu0 0
    %3712 = vmatprep.mubr.bf16.mxu0 0
    %3713 = vmatmul.mubr.bf16.gmra.mrb[0].mxu0 %v3678
    %v3714 = vpop.f32.mrb[0].mxu0
    %v3715 = vadd.f32 %v3640, %v3714
    %v3716 = vpop.f32.mrb[0].mxu0
    %v3717 = vpop.f32.mrb[0].mxu0
    %v3718 = vadd.f32 %v3640, %v3717
    %v3719 = vpop.f32.mrb[0].mxu0
    %3720 = vdwg.mxu0
    %v3723 = vrot.slane %v3715, 6
    %v3724 = vrot.slane %v3718, 6
    %v3725 = vsel %vm61, %v3723, %v3724
    %v3728 = vsel %vm61, 0.0, %v3723
    %v3729 = vsel %vm80, %v3728, 0.0
    %v3730 = vsel %vm81, %v3725, 0.0
    %v3731 = vrot.slane %v3715, 7
    %v3732 = vrot.slane %v3718, 7
    %v3733 = vsel %vm88, %v3731, %v3732
    %v3736 = vsel %vm88, 0.0, %v3731
    %v3737 = vsel %vm107, %v3736, 0.0
    %v3738 = vsel %vm108, %v3733, 0.0
    %3741 = vrot.lane.b32.xlu0 %v3737, 32
    %v3742 = vpop.permute.xlu0 %3741
    %3743 = vrot.lane.b32.xlu0 %v3738, 32
    %v3744 = vpop.permute.xlu0 %3743
    %3747 = vrot.lane.b32.xlu0 %v3715, 64
    %v3748 = vpop.permute.xlu0 %3747
    %3749 = vrot.lane.b32.xlu0 %v3718, 64
    %v3750 = vpop.permute.xlu0 %3749
    %v3753 = vsel %vm156, %v3729, %v3742
    %v3754 = vsel %vm156, %v3730, %v3744
    %v3755 = vsel %vm1102, %v3753, %v3748
    %v3756 = vsel %vm1102, %v3754, %v3750
    %v3757 = vld [vmem:[%s2 + $0xf30] sm:$0xf]
    %v3758 = vld [vmem:[%s2 + $0xf3c] sm:$0xf]
    %v3759 = vld [vmem:[%s2 + $0xf48] sm:$0xf]
    %v3760 = vld [vmem:[%s2 + $0xf54] sm:$0xf]
    %v3761 = vld [vmem:[%s2 + $0xf60] sm:$0xf]
    %v3762 = vld [vmem:[%s2 + $0xf6c] sm:$0xf]
    %v3763 = vld [vmem:[%s2 + $0xf78] sm:$0xf]
    %v3764 = vld [vmem:[%s2 + $0xf84] sm:$0xf]
    %v3765 = vld [vmem:[%s2 + $0xf90] sm:$0xf]
    %v3766 = vld [vmem:[%s2 + $0xf9c] sm:$0xf]
    %v3767 = vld [vmem:[%s2 + $0xfa8] sm:$0xf]
    %v3768 = vld [vmem:[%s2 + $0xfb4] sm:$0xf]
    %v3769 = vpack.c.bf16 %v3756, %v3755
    %v3770 = vld [vmem:[%s3 + $0x49] ss:$0 sm:$0xff]
    %v3783 = vunpack.c.l.b16 %v3757
    %v3784 = vunpack.c.l.b16 %v3758
    %v3785 = vunpack.c.l.b16 %v3759
    %v3786 = vunpack.c.l.b16 %v3760
    %v3787 = vunpack.c.l.b16 %v3761
    %v3788 = vunpack.c.l.b16 %v3762
    %v3789 = vunpack.c.l.b16 %v3763
    %v3790 = vunpack.c.l.b16 %v3764
    %v3791 = vunpack.c.l.b16 %v3765
    %v3792 = vunpack.c.l.b16 %v3766
    %v3793 = vunpack.c.l.b16 %v3767
    %v3794 = vunpack.c.l.b16 %v3768
    %v3795 = vpack.c.b16 %v3784, %v3783
    %v3796 = vpack.c.b16 %v3786, %v3785
    %v3797 = vpack.c.b16 %v3788, %v3787
    %v3798 = vpack.c.b16 %v3790, %v3789
    %v3799 = vpack.c.b16 %v3792, %v3791
    %v3800 = vpack.c.b16 %v3794, %v3793
    %v3808 = vsel %vm1104, %v3769, 0
    %3810 = vmatprep.subr.bf16.mxu0 0
    %3811 = vmatpush1.bf16.msra.mxu0 %v3795
    %3812 = vmatprep.subr.bf16.mxu0 0
    %3813 = vmatpush1.bf16.msra.mxu0 %v3796
    %3814 = vmatprep.subr.bf16.mxu0 0
    %3815 = vmatpush1.bf16.msra.mxu0 %v3797
    %3816 = vmatprep.subr.bf16.mxu0 0
    %3817 = vmatpush1.bf16.msra.mxu0 %v3798
    %3818 = vmatprep.subr.bf16.mxu0 0
    %3819 = vmatpush1.bf16.msra.mxu0 %v3799
    %3820 = vmatprep.subr.bf16.mxu0 0
    %3821 = vmatpush1.bf16.msra.mxu0 %v3800
    %3822 = vmatprep.subr.bf16.mxu0 0
    %3823 = vmatpush1.bf16.msra.mxu0 0
    %3824 = vmatprep.subr.bf16.mxu0 0
    %3825 = vmatpush1.bf16.msra.mxu0 0
    %3826 = vmatprep.subr.bf16.mxu0 0
    %3827 = vmatpush1.bf16.msra.mxu0 0
    %3828 = vmatprep.subr.bf16.mxu0 0
    %3829 = vmatpush1.bf16.msra.mxu0 0
    %3830 = vmatprep.subr.bf16.mxu0 0
    %3831 = vmatpush1.bf16.msra.mxu0 0
    %3832 = vmatprep.subr.bf16.mxu0 0
    %3833 = vmatpush1.bf16.msra.mxu0 0
    %3834 = vmatprep.subr.bf16.mxu0 0
    %3835 = vmatpush1.bf16.msra.mxu0 0
    %3836 = vmatprep.subr.bf16.mxu0 0
    %3837 = vmatpush1.bf16.msra.mxu0 0
    %3838 = vmatprep.subr.bf16.mxu0 0
    %3839 = vmatpush1.bf16.msra.mxu0 0
    %3840 = vmatprep.subr.bf16.mxu0 0
    %3841 = vmatpush1.bf16.msra.mxu0 0
    %3842 = vmatprep.mubr.bf16.mxu0 0
    %3843 = vmatmul.mubr.bf16.gmra.mrb[0].mxu0 %v3808
    %v3844 = vpop.f32.mrb[0].mxu0
    %v3845 = vadd.f32 %v3770, %v3844
    %v3846 = vpop.f32.mrb[0].mxu0
    %v3847 = vpop.f32.mrb[0].mxu0
    %v3848 = vadd.f32 %v3770, %v3847
    %v3849 = vpop.f32.mrb[0].mxu0
    %3850 = vdwg.mxu0
    %v3851 = vmax.f32 %v3845, 0.0
    %v3852 = vmax.f32 %v3848, 0.0
    %v3855 = vrot.slane %v3851, 6
    %v3856 = vrot.slane %v3852, 6
    %v3857 = vsel %vm61, %v3855, %v3856
    %v3860 = vsel %vm61, 0.0, %v3855
    %v3861 = vsel %vm80, %v3860, 0.0
    %v3862 = vsel %vm81, %v3857, 0.0
    %v3863 = vrot.slane %v3851, 7
    %v3864 = vrot.slane %v3852, 7
    %v3865 = vsel %vm88, %v3863, %v3864
    %v3868 = vsel %vm88, 0.0, %v3863
    %v3869 = vsel %vm107, %v3868, 0.0
    %v3870 = vsel %vm108, %v3865, 0.0
    %3873 = vrot.lane.b32.xlu0 %v3869, 32
    %v3874 = vpop.permute.xlu0 %3873
    %3875 = vrot.lane.b32.xlu0 %v3870, 32
    %v3876 = vpop.permute.xlu0 %3875
    %3879 = vrot.lane.b32.xlu0 %v3851, 64
    %v3880 = vpop.permute.xlu0 %3879
    %3881 = vrot.lane.b32.xlu0 %v3852, 64
    %v3882 = vpop.permute.xlu0 %3881
    %v3885 = vsel %vm156, %v3861, %v3874
    %v3886 = vsel %vm156, %v3862, %v3876
    %v3887 = vsel %vm1102, %v3885, %v3880
    %v3888 = vsel %vm1102, %v3886, %v3882
    %v3889 = vld [vmem:[%s2 + $0xfc0] sm:$0xff]
    %v3890 = vld [vmem:[%s2 + $0xfc8] sm:$0xf]
    %v3891 = vld [vmem:[%s2 + $0xfcc] sm:$0xff]
    %v3892 = vld [vmem:[%s2 + $0xfd4] sm:$0xf]
    %v3893 = vld [vmem:[%s2 + $0xfd8] sm:$0xff]
    %v3894 = vld [vmem:[%s2 + $0xfe0] sm:$0xf]
    %v3895 = vld [vmem:[%s2 + $0xfe4] sm:$0xff]
    %v3896 = vld [vmem:[%s2 + $0xfec] sm:$0xf]
    %v3897 = vld [vmem:[%s2 + $0xff0] sm:$0xff]
    %v3898 = vld [vmem:[%s2 + $0xff8] sm:$0xf]
    %v3899 = vld [vmem:[%s2 + $0xffc] sm:$0xff]
    %v3900 = vld [vmem:[%s2 + $0x1004] sm:$0xf]
    %v3901 = vld [vmem:[%s2 + $0x1008] sm:$0xff]
    %v3902 = vld [vmem:[%s2 + $0x1010] sm:$0xf]
    %v3903 = vld [vmem:[%s2 + $0x1014] sm:$0xff]
    %v3904 = vld [vmem:[%s2 + $0x101c] sm:$0xf]
    %v3905 = vld [vmem:[%s2 + $0x1020] sm:$0xff]
    %v3906 = vld [vmem:[%s2 + $0x1028] sm:$0xf]
    %v3907 = vld [vmem:[%s2 + $0x102c] sm:$0xff]
    %v3908 = vld [vmem:[%s2 + $0x1034] sm:$0xf]
    %v3909 = vld [vmem:[%s2 + $0x1038] sm:$0xff]
    %v3910 = vld [vmem:[%s2 + $0x1040] sm:$0xf]
    %v3911 = vld [vmem:[%s2 + $0x1044] sm:$0xff]
    %v3912 = vld [vmem:[%s2 + $0x104c] sm:$0xf]
    %v3913 = vpack.c.bf16 %v3888, %v3887
    %s3914 = scalar_lea.vmem %s3, 74
    %v3915 = vld [vmem:[%s3914] ss:$8 sm:$0x7]
    %v3917 = vlaneseq
    %v3918 = vshrl.u32 %v3917, 7
    %v3919 = vsub.s32 0, %v3918
    %v3920 = vrot.slane %v3915, %v3919
    %v3921 = vlaneseq
    %v3922 = vshrl.u32 %v3921, 7
    %v3923 = vsub.s32 1, %v3922
    %v3924 = vrot.slane %v3915, %v3923
    %v3925 = vlaneseq
    %v3926 = vshrl.u32 %v3925, 7
    %v3927 = vsub.s32 2, %v3926
    %v3928 = vrot.slane %v3915, %v3927
    %v3956 = vunpack.c.l.b16 %v3889
    %v3957 = vunpack.c.h.b16 %v3889
    %v3958 = vunpack.c.l.b16 %v3890
    %v3959 = vunpack.c.l.b16 %v3891
    %v3960 = vunpack.c.h.b16 %v3891
    %v3961 = vunpack.c.l.b16 %v3892
    %v3962 = vunpack.c.l.b16 %v3893
    %v3963 = vunpack.c.h.b16 %v3893
    %v3964 = vunpack.c.l.b16 %v3894
    %v3965 = vunpack.c.l.b16 %v3895
    %v3966 = vunpack.c.h.b16 %v3895
    %v3967 = vunpack.c.l.b16 %v3896
    %v3968 = vunpack.c.l.b16 %v3897
    %v3969 = vunpack.c.h.b16 %v3897
    %v3970 = vunpack.c.l.b16 %v3898
    %v3971 = vunpack.c.l.b16 %v3899
    %v3972 = vunpack.c.h.b16 %v3899
    %v3973 = vunpack.c.l.b16 %v3900
    %v3974 = vunpack.c.l.b16 %v3901
    %v3975 = vunpack.c.h.b16 %v3901
    %v3976 = vunpack.c.l.b16 %v3902
    %v3977 = vunpack.c.l.b16 %v3903
    %v3978 = vunpack.c.h.b16 %v3903
    %v3979 = vunpack.c.l.b16 %v3904
    %v3980 = vunpack.c.l.b16 %v3905
    %v3981 = vunpack.c.h.b16 %v3905
    %v3982 = vunpack.c.l.b16 %v3906
    %v3983 = vunpack.c.l.b16 %v3907
    %v3984 = vunpack.c.h.b16 %v3907
    %v3985 = vunpack.c.l.b16 %v3908
    %v3986 = vunpack.c.l.b16 %v3909
    %v3987 = vunpack.c.h.b16 %v3909
    %v3988 = vunpack.c.l.b16 %v3910
    %v3989 = vunpack.c.l.b16 %v3911
    %v3990 = vunpack.c.h.b16 %v3911
    %v3991 = vunpack.c.l.b16 %v3912
    %v3992 = vpack.c.b16 %v3959, %v3956
    %v3993 = vpack.c.b16 %v3960, %v3957
    %v3994 = vpack.c.b16 %v3961, %v3958
    %v3995 = vpack.c.b16 %v3965, %v3962
    %v3996 = vpack.c.b16 %v3966, %v3963
    %v3997 = vpack.c.b16 %v3967, %v3964
    %v3998 = vpack.c.b16 %v3971, %v3968
    %v3999 = vpack.c.b16 %v3972, %v3969
    %v4000 = vpack.c.b16 %v3973, %v3970
    %v4001 = vpack.c.b16 %v3977, %v3974
    %v4002 = vpack.c.b16 %v3978, %v3975
    %v4003 = vpack.c.b16 %v3979, %v3976
    %v4004 = vpack.c.b16 %v3983, %v3980
    %v4005 = vpack.c.b16 %v3984, %v3981
    %v4006 = vpack.c.b16 %v3985, %v3982
    %v4007 = vpack.c.b16 %v3989, %v3986
    %v4008 = vpack.c.b16 %v3990, %v3987
    %v4009 = vpack.c.b16 %v3991, %v3988
    %v4029 = vsel %vm1104, %v3913, 0
    %4031 = vmatprep.subr.bf16.mxu0 %v3993
    %4032 = vmatpush1.bf16.msra.mxu0 %v3992
    %4033 = vmatprep.subr.bf16.mxu0 %v3996
    %4034 = vmatpush1.bf16.msra.mxu0 %v3995
    %4035 = vmatprep.subr.bf16.mxu0 %v3999
    %4036 = vmatpush1.bf16.msra.mxu0 %v3998
    %4037 = vmatprep.subr.bf16.mxu0 %v4002
    %4038 = vmatpush1.bf16.msra.mxu0 %v4001
    %4039 = vmatprep.subr.bf16.mxu0 %v4005
    %4040 = vmatpush1.bf16.msra.mxu0 %v4004
    %4041 = vmatprep.subr.bf16.mxu0 %v4008
    %4042 = vmatpush1.bf16.msra.mxu0 %v4007
    %4043 = vmatprep.subr.bf16.mxu0 0
    %4044 = vmatpush1.bf16.msra.mxu0 0
    %4045 = vmatprep.subr.bf16.mxu0 0
    %4046 = vmatpush1.bf16.msra.mxu0 0
    %4047 = vmatprep.subr.bf16.mxu0 0
    %4048 = vmatpush1.bf16.msra.mxu0 0
    %4049 = vmatprep.subr.bf16.mxu0 0
    %4050 = vmatpush1.bf16.msra.mxu0 0
    %4051 = vmatprep.subr.bf16.mxu0 0
    %4052 = vmatpush1.bf16.msra.mxu0 0
    %4053 = vmatprep.subr.bf16.mxu0 0
    %4054 = vmatpush1.bf16.msra.mxu0 0
    %4055 = vmatprep.subr.bf16.mxu0 0
    %4056 = vmatpush1.bf16.msra.mxu0 0
    %4057 = vmatprep.subr.bf16.mxu0 0
    %4058 = vmatpush1.bf16.msra.mxu0 0
    %4059 = vmatprep.subr.bf16.mxu0 0
    %4060 = vmatpush1.bf16.msra.mxu0 0
    %4061 = vmatprep.subr.bf16.mxu0 0
    %4062 = vmatpush1.bf16.msra.mxu0 0
    %4063 = vmatprep.mubr.bf16.mxu0 0
    %4064 = vmatmul.mubr.bf16.gmra.mrb[0].mxu0 %v4029
    %v4065 = vpop.f32.mrb[0].mxu0
    %v4066 = vadd.f32 %v3920, %v4065
    %v4067 = vpop.f32.mrb[0].mxu0
    %v4068 = vadd.f32 %v3924, %v4067
    %v4069 = vpop.f32.mrb[0].mxu0
    %v4070 = vadd.f32 %v3920, %v4069
    %v4071 = vpop.f32.mrb[0].mxu0
    %v4072 = vadd.f32 %v3924, %v4071
    %4073 = vdwg.mxu0
    %4074 = vmatprep.subr.bf16.mxu0 0
    %4075 = vmatpush1.bf16.msra.mxu0 %v3994
    %4076 = vmatprep.subr.bf16.mxu0 0
    %4077 = vmatpush1.bf16.msra.mxu0 %v3997
    %4078 = vmatprep.subr.bf16.mxu0 0
    %4079 = vmatpush1.bf16.msra.mxu0 %v4000
    %4080 = vmatprep.subr.bf16.mxu0 0
    %4081 = vmatpush1.bf16.msra.mxu0 %v4003
    %4082 = vmatprep.subr.bf16.mxu0 0
    %4083 = vmatpush1.bf16.msra.mxu0 %v4006
    %4084 = vmatprep.subr.bf16.mxu0 0
    %4085 = vmatpush1.bf16.msra.mxu0 %v4009
    %4086 = vmatprep.subr.bf16.mxu0 0
    %4087 = vmatpush1.bf16.msra.mxu0 0
    %4088 = vmatprep.subr.bf16.mxu0 0
    %4089 = vmatpush1.bf16.msra.mxu0 0
    %4090 = vmatprep.subr.bf16.mxu0 0
    %4091 = vmatpush1.bf16.msra.mxu0 0
    %4092 = vmatprep.subr.bf16.mxu0 0
    %4093 = vmatpush1.bf16.msra.mxu0 0
    %4094 = vmatprep.subr.bf16.mxu0 0
    %4095 = vmatpush1.bf16.msra.mxu0 0
    %4096 = vmatprep.subr.bf16.mxu0 0
    %4097 = vmatpush1.bf16.msra.mxu0 0
    %4098 = vmatprep.subr.bf16.mxu0 0
    %4099 = vmatpush1.bf16.msra.mxu0 0
    %4100 = vmatprep.subr.bf16.mxu0 0
    %4101 = vmatpush1.bf16.msra.mxu0 0
    %4102 = vmatprep.subr.bf16.mxu0 0
    %4103 = vmatpush1.bf16.msra.mxu0 0
    %4104 = vmatprep.subr.bf16.mxu0 0
    %4105 = vmatpush1.bf16.msra.mxu0 0
    %4106 = vmatprep.mubr.bf16.mxu0 0
    %4107 = vmatmul.mubr.bf16.gmra.mrb[0].mxu0 %v4029
    %v4108 = vpop.f32.mrb[0].mxu0
    %v4109 = vadd.f32 %v3928, %v4108
    %v4110 = vpop.f32.mrb[0].mxu0
    %v4111 = vpop.f32.mrb[0].mxu0
    %v4112 = vadd.f32 %v3928, %v4111
    %v4113 = vpop.f32.mrb[0].mxu0
    %4114 = vdwg.mxu0
    %4115 = vst [vmem:[#allocation2] sm:$0xff] %v4066
    %4116 = vst [vmem:[#allocation2 + $0x8] sm:$0xff] %v4068
    %4117 = vst.msk [vmem:[#allocation2 + $0x10] sm:$0xff] %vm133, %v4109
    %4118 = vst [vmem:[#allocation2 + $0x18] sm:$0xff] %v4070
    %4119 = vst [vmem:[#allocation2 + $0x20] sm:$0xff] %v4072
    %4120 = vst.msk [vmem:[#allocation2 + $0x28] sm:$0xff] %vm133, %v4112
    %vm4121 = vcmask 257024
    %4122 = vst.msk [vmem:[#allocation4] sm:$0xf] %vm4121, %v2407
    // Predicated region
    $region18: #{tpu_custom_call.1} parent=1 // pred_check
      _
    $region19: #{tpu_custom_call.1} parent=1 // pred_check_branch
      %4124 = sbr.rel (0) target = $region21
    $region20: #{tpu_custom_call.1} parent=1 // pred_region
      %s4126 = ssub.s32 768, 768
      %4127 = vsyncadd [#allocation3], %s4126
      %s4128 = sshll.u32 [#allocation2], 4
      %s4129 = int_to_ptr.vmem [resolvable:$true] %s4128
      %4134 = dma.vmem_to_hbm [thread:$0]  %s4129, 768, %s4, [#allocation3], 384, 384, 24
    $region21: #{tpu_custom_call.1} parent=1 // pred_fallthru
      _
    // Predicated region
    $region22: #{tpu_custom_call.1} parent=1 // pred_check
      _
    $region23: #{tpu_custom_call.1} parent=1 // pred_check_branch
      %4136 = sbr.rel (0) target = $region25
    $region24: #{tpu_custom_call.1} parent=1 // pred_region
      %s4138 = ssub.s32 64, 64
      %4139 = vsyncadd [#allocation5], %s4138
      %s4141 = sshll.u32 [#allocation4], 4
      %s4142 = int_to_ptr.vmem [resolvable:$true] %s4141
      %4144 = dma.vmem_to_hbm [thread:$0]  %s4142, 64, %s5, [#allocation5]
    $region25: #{tpu_custom_call.1} parent=1 // pred_fallthru
      _
    // Predicated region
    $region26: #{tpu_custom_call.1} parent=1 // pred_check
      _
    $region27: #{tpu_custom_call.1} parent=1 // pred_check_branch
      %4146 = sbr.rel (0) target = $region29
    $region28: #{tpu_custom_call.1} parent=1 // pred_region
      %4147 = dma.done [#allocation3], 768
    $region29: #{tpu_custom_call.1} parent=1 // pred_fallthru
      _
    // Predicated region
    $region30: #{tpu_custom_call.1} parent=1 // pred_check
      _
    $region31: #{tpu_custom_call.1} parent=1 // pred_check_branch
      %4149 = sbr.rel (0) target = $region33
    $region32: #{tpu_custom_call.1} parent=1 // pred_region
      %4150 = dma.done [#allocation5], 64
    $region33: #{tpu_custom_call.1} parent=1 // pred_fallthru
      _
    %4151 = vsyncpa [#allocation3], 1
    %4152 = vsyncpa [#allocation5], 1

</llo_original>
